<compile_context>
chip_gen: v5e
topology: v5e:2x2
jax: 0.10.0
libtpu: 0.0.40
codegen_flags: <defaults>
</compile_context>

<pallas_src>
import functools

import numpy as np
import jax
import jax.numpy as jnp
from jax.experimental import pallas as pl
from jax.experimental.pallas import tpu as pltpu  # noqa: F401  (imported per template)

# ----------------------------- synthetic opt / embs -----------------------------
TXT_WORD, TXT_LEMMA, TXT_POS, TXT_NER = 0, 1, 2, 3


class Opt:
    txt_rnn_size = 32     # bidirectional hidden*2
    txt_enlayers = 2
    brnn = True
    dropout = 0.0         # eval mode -> Dropout is identity
    cat_bias = True
    lemma_bias = True
    alpha = 0.0
    cuda = False


EMB_DIMS = dict(word_fix=16, lemma=8, pos=4, ner=4)   # sum == LSTM input size (32)
VOCABS = dict(word_fix=50, lemma=40, pos=18, ner=9)
N_CAT, N_HIGH, N_AUX = 12, 20, 10                     # cat_lut / high_lut / aux_lut sizes

NUM_DIR = 2 if Opt.brnn else 1
HID = Opt.txt_rnn_size // NUM_DIR                     # 16
INPUT_SIZE = sum(EMB_DIMS.values())                   # 32
D_ENC = Opt.txt_rnn_size                              # 32
N_CLS = N_CAT + (N_HIGH + 1) + N_AUX                  # 43 = 12 + 21 + 10
CLS_PAD = 128                                         # lane-dense output width
ENC_LANE = 64                                         # encoder output packed at lanes [64, 96)
EMB_ORDER = ('word_fix', 'lemma', 'pos', 'ner')       # torch: cat([word, lemma, pos, ner])
V_TOT = sum(VOCABS[k] for k in EMB_ORDER)             # 117

assert NUM_DIR == 2 and INPUT_SIZE == NUM_DIR * HID == D_ENC
assert ENC_LANE >= N_CLS and ENC_LANE + D_ENC <= CLS_PAD


# ----------------------------- fused forward kernel -----------------------------
def _fused_kernel(tok_ref, lut_ref, wih_ref, whh_ref, b_ref, wcls_ref, bcls_ref,
                  out_ref, *, T, B):
    """Entire ConceptIdentifier forward, VMEM resident, single launch.

    tok_ref  : (T*B, 4) int32               [word, lemma, pos, ner] indices, time-major
    lut_ref  : (V_TOT, 32) f32              block-diagonal embedding table
    wih_ref  : (L, 32, 128) f32             input weights, lanes = [dir0 i|f|g|o | dir1 i|f|g|o]
    whh_ref  : (L*ND, 16, 64) f32           recurrent weights per (layer, dir), gates fused
    b_ref    : (L, 1, 128) f32              b_ih + b_hh, folded into the input projection
    wcls_ref : (32, 128) f32                fused [cat | le | ner | 0-pad] head weights
    bcls_ref : (1, 128) f32
    out_ref  : (T*B, 128) f32               lanes [0:43) probs, lanes [64:96) = [h_fwd|h_bwd]
    """
    f32 = jnp.float32
    H = HID
    TB = T * B
    dot = functools.partial(jnp.dot, preferred_element_type=f32)

    # ---- embeddings: one batched one-hot x block-diagonal LUT matmul ----
    voc_off = []
    o = 0
    for k in EMB_ORDER:
        voc_off.append(o)
        o += VOCABS[k]
    tok = tok_ref[...]                                            # (TB, 4) int32
    lane_v = jax.lax.broadcasted_iota(jnp.int32, (TB, V_TOT), 1)  # hoisted, emitted once
    hit = lane_v == (tok[:, 0:1] + voc_off[0])
    for c in range(1, 4):
        hit = hit | (lane_v == (tok[:, c:c + 1] + voc_off[c]))
    x = dot(hit.astype(f32), lut_ref[...])                        # (TB, 32)

    # hoisted gate-blend mask: lanes [2H, 3H) of the fused 4H block use tanh (torch i,f,g,o)
    lane64 = jax.lax.broadcasted_iota(jnp.int32, (B, 4 * H), 1)
    g_mask = (lane64 >= 2 * H) & (lane64 < 3 * H)

    # ---- stacked bi-LSTM: batched input projections + minimal serial recurrence ----
    # TODO(synk): for much larger T, move the step loop to lax.fori_loop with VMEM scratch
    #             to bound trace size / vreg live ranges; at T=8 full unroll is fine.
    for layer in range(Opt.txt_enlayers):
        # all timesteps, both directions, all 4 gates, bias folded in: ONE matmul
        proj = dot(x, wih_ref[layer]) + b_ref[layer]              # (TB, 128)
        hseq = [[None] * T, [None] * T]
        for d in range(NUM_DIR):
            whh = whh_ref[layer * NUM_DIR + d]                    # (H, 4H)
            pd = proj[:, d * 4 * H:(d + 1) * 4 * H]               # (TB, 4H)
            h = jnp.zeros((B, H), f32)
            c = jnp.zeros((B, H), f32)
            for step in range(T):
                t = step if d == 0 else (T - 1 - step)
                pre = pd[t * B:(t + 1) * B, :] + dot(h, whh)      # (B, 4H) fused gates
                act = jnp.where(g_mask, jnp.tanh(pre), jax.nn.sigmoid(pre))
                i_g = act[:, 0:H]
                f_g = act[:, H:2 * H]
                g_g = act[:, 2 * H:3 * H]
                o_g = act[:, 3 * H:4 * H]
                c = f_g * c + i_g * g_g
                h = o_g * jnp.tanh(c)
                hseq[d][t] = h
        # next layer input (and final encoder output): (TB, 2H) = [h_fwd | h_bwd] per t
        x = jnp.concatenate(
            [jnp.concatenate([hseq[0][t], hseq[1][t]], axis=-1) for t in range(T)],
            axis=0)

    # ---- fused classifier heads + per-segment softmax on the whole (TB, 128) slab ----
    logits = dot(x, wcls_ref[...]) + bcls_ref[...]                # (TB, 128)
    lane = jax.lax.broadcasted_iota(jnp.int32, (TB, CLS_PAD), 1)
    bounds = ((0, N_CAT), (N_CAT, N_CAT + N_HIGH + 1), (N_CAT + N_HIGH + 1, N_CLS))
    masks = [(lane >= lo) & (lane < hi) for lo, hi in bounds]
    masks_f = [m.astype(f32) for m in masks]
    valid_f = (lane < N_CLS).astype(f32)
    inv_f = 1.0 - valid_f

    sub = jnp.zeros_like(logits)
    for m, mf in zip(masks, masks_f):
        sub = sub + mf * jnp.max(jnp.where(m, logits, -1e30), axis=-1, keepdims=True)
    e = jnp.exp(logits - sub) * valid_f                           # zeros outside [0, N_CLS)
    denom = inv_f
    for mf in masks_f:
        denom = denom + mf * jnp.sum(e * mf, axis=-1, keepdims=True)
    probs = e * pl.reciprocal(denom, approx=True)

    # pack the encoder output [h_fwd | h_bwd] into lanes [64, 96); single full-slab store
    enc_padded = jnp.concatenate(
        [jnp.zeros((TB, ENC_LANE), f32), x,
         jnp.zeros((TB, CLS_PAD - ENC_LANE - D_ENC), f32)], axis=-1)
    out_ref[...] = probs + enc_padded


def concept_identifier_forward(tokens, params):
    # TODO(synk): true PackedSequence semantics (ragged batch_sizes) are not modeled;
    #             equal-length sequences are assumed so .data == time-major flatten.
    # TODO(synk): on v7x, add a leading "parallel" grid axis over batch tiles once B grows,
    #             to use the second TensorCore; at B=2 a single grid-less call is best.
    T, B, _ = tokens.shape
    tok_flat = tokens.reshape(T * B, 4).astype(jnp.int32)
    kernel = functools.partial(_fused_kernel, T=T, B=B)
    out = pl.pallas_call(
        kernel,
        out_shape=jax.ShapeDtypeStruct((T * B, CLS_PAD), jnp.float32),
    )(tok_flat,
      params['lut_comb'], params['w_ih'], params['w_hh'], params['b'],
      params['w_cls'], params['b_cls'])

    # cheap layout glue outside the kernel
    cat_p = out[:, :N_CAT]
    le_p = out[:, N_CAT:N_CAT + N_HIGH + 1]
    ner_p = out[:, N_CAT + N_HIGH + 1:N_CLS]
    enc_flat = out[:, ENC_LANE:ENC_LANE + D_ENC]
    return (cat_p, le_p, ner_p), enc_flat


# ----------------------------- deterministic parameter init -----------------------------
def init_params(key):
    keys = iter(jax.random.split(key, 64))

    def mat(shape, scale=0.1):
        return (scale * jax.random.normal(next(keys), shape)).astype(jnp.float32)

    params = {
        'word_fix_lut': mat((VOCABS['word_fix'], EMB_DIMS['word_fix'])),
        'lemma_lut': mat((VOCABS['lemma'], EMB_DIMS['lemma'])),
        'pos_lut': mat((VOCABS['pos'], EMB_DIMS['pos'])),
        'ner_lut': mat((VOCABS['ner'], EMB_DIMS['ner'])),
    }

    # block-diagonal LUT: one (TB, V_TOT) one-hot x (V_TOT, 32) matmul performs the four
    # embedding lookups and torch.cat([word, lemma, pos, ner]) for the whole sequence.
    lut_comb = jnp.zeros((V_TOT, INPUT_SIZE), jnp.float32)
    v_off, e_off = 0, 0
    for k in EMB_ORDER:
        V, E = VOCABS[k], EMB_DIMS[k]
        lut_comb = lut_comb.at[v_off:v_off + V, e_off:e_off + E].set(params[k + '_lut'])
        v_off += V
        e_off += E
    params['lut_comb'] = lut_comb

    # LSTM weights (torch layout: (4H, in), gate rows i|f|g|o), repacked fused:
    #   w_ih: (L, in, 2*4H)  lane blocks = [dir0 gates | dir1 gates]
    #   w_hh: (L*ND, H, 4H)
    #   b   : (L, 1, 2*4H)   = b_ih + b_hh (folded into the batched input projection)
    wih_layers, b_layers, whh_all = [], [], []
    for l in range(Opt.txt_enlayers):
        in_sz = INPUT_SIZE if l == 0 else HID * NUM_DIR          # 32 for both layers here
        wih_dirs, b_dirs = [], []
        for _d in range(NUM_DIR):
            w_ih = mat((4 * HID, in_sz))
            w_hh = mat((4 * HID, HID))
            b_ih = mat((4 * HID,))
            b_hh = mat((4 * HID,))
            wih_dirs.append(w_ih.T)                              # (in, 4H) gates i|f|g|o
            whh_all.append(w_hh.T)                               # (H, 4H)
            b_dirs.append((b_ih + b_hh).reshape(1, 4 * HID))
        wih_layers.append(jnp.concatenate(wih_dirs, axis=1))     # (in, 2*4H)
        b_layers.append(jnp.concatenate(b_dirs, axis=1))         # (1, 2*4H)
    params['w_ih'] = jnp.stack(wih_layers)                       # (L, 32, 128)
    params['w_hh'] = jnp.stack(whh_all)                          # (L*ND, 16, 64)
    params['b'] = jnp.stack(b_layers)                            # (L, 1, 128)

    # classifier heads fused into one lane-dense (D, 128) weight: [cat | le | ner | 0-pad]
    D = D_ENC
    w_cat = mat((N_CAT, D))
    b_cat = mat((N_CAT,)) if Opt.cat_bias else jnp.zeros((N_CAT,), jnp.float32)
    w_le = mat((N_HIGH + 1, D))
    b_le = mat((N_HIGH + 1,)) if Opt.lemma_bias else jnp.zeros((N_HIGH + 1,), jnp.float32)
    w_ner = mat((N_AUX, D))
    # NOTE: ner-head bias is gated on opt.cat_bias, exactly as in the PyTorch reference.
    b_ner = mat((N_AUX,)) if Opt.cat_bias else jnp.zeros((N_AUX,), jnp.float32)

    w_cls = jnp.zeros((D, CLS_PAD), jnp.float32)
    b_cls = jnp.zeros((1, CLS_PAD), jnp.float32)
    w_cls = w_cls.at[:, 0:N_CAT].set(w_cat.T)
    w_cls = w_cls.at[:, N_CAT:N_CAT + N_HIGH + 1].set(w_le.T)
    w_cls = w_cls.at[:, N_CAT + N_HIGH + 1:N_CLS].set(w_ner.T)
    b_cls = b_cls.at[0, 0:N_CAT].set(b_cat)
    b_cls = b_cls.at[0, N_CAT:N_CAT + N_HIGH + 1].set(b_le)
    b_cls = b_cls.at[0, N_CAT + N_HIGH + 1:N_CLS].set(b_ner)
    params['w_cls'] = w_cls
    params['b_cls'] = b_cls
    return params


# ----------------------------- pure-JAX reference (for a sanity check) -----------------------------
def reference_forward(tokens, params):
    T, B, _ = tokens.shape
    H = HID
    we = params['word_fix_lut'][tokens[..., TXT_WORD]]
    le = params['lemma_lut'][tokens[..., TXT_LEMMA]]
    pe = params['pos_lut'][tokens[..., TXT_POS]]
    ne = params['ner_lut'][tokens[..., TXT_NER]]
    x = jnp.concatenate([we, le, pe, ne], axis=-1).astype(jnp.float32)   # (T, B, 32)
    for layer in range(Opt.txt_enlayers):
        outs = []
        for d in range(NUM_DIR):
            W = params['w_ih'][layer][:, d * 4 * H:(d + 1) * 4 * H]      # (in, 4H)
            U = params['w_hh'][layer * NUM_DIR + d]                      # (H, 4H)
            bb = params['b'][layer][:, d * 4 * H:(d + 1) * 4 * H]        # (1, 4H)
            seq = x if d == 0 else x[::-1]
            h = jnp.zeros((B, H), jnp.float32)
            c = jnp.zeros((B, H), jnp.float32)
            hs = []
            for t in range(T):
                pre = seq[t] @ W + h @ U + bb
                i_g = jax.nn.sigmoid(pre[:, 0:H])
                f_g = jax.nn.sigmoid(pre[:, H:2 * H])
                g_g = jnp.tanh(pre[:, 2 * H:3 * H])
                o_g = jax.nn.sigmoid(pre[:, 3 * H:4 * H])
                c = f_g * c + i_g * g_g
                h = o_g * jnp.tanh(c)
                hs.append(h)
            hseq = jnp.stack(hs)
            if d == 1:
                hseq = hseq[::-1]
            outs.append(hseq)
        x = jnp.concatenate(outs, axis=-1)
    enc = x.reshape(T * B, D_ENC)
    logits = enc @ params['w_cls'][:, :N_CLS] + params['b_cls'][:, :N_CLS]
    cat_p = jax.nn.softmax(logits[:, :N_CAT], axis=-1)
    le_p = jax.nn.softmax(logits[:, N_CAT:N_CAT + N_HIGH + 1], axis=-1)
    ner_p = jax.nn.softmax(logits[:, N_CAT + N_HIGH + 1:N_CLS], axis=-1)
    return (cat_p, le_p, ner_p), enc


# ----------------------------- main -----------------------------
if __name__ == "__main__":
    key = jax.random.PRNGKey(0)
    params = init_params(key)

    T, B = 8, 2   # seq len, batch size (equal-length "packed" batch)
    tok_key = jax.random.fold_in(key, 999)
    raw = jax.random.randint(tok_key, (T, B, 4), 0, 10_000, dtype=jnp.int32)
    maxv = jnp.array([VOCABS['word_fix'], VOCABS['lemma'], VOCABS['pos'], VOCABS['ner']],
                     dtype=jnp.int32)
    # NOTE: no in-kernel bounds check — out-of-range indices would alias into a
    # neighboring vocab block of the combined LUT; the wrapper keeps indices valid.
    tokens = raw % maxv

    forward = jax.jit(concept_identifier_forward)
    (cat_p, le_p, ner_p), src_enc = forward(tokens, params)
    jax.block_until_ready((cat_p, le_p, ner_p, src_enc))

    assert cat_p.shape == (T * B, N_CAT)
    assert le_p.shape == (T * B, N_HIGH + 1)
    assert ner_p.shape == (T * B, N_AUX)
    assert src_enc.shape == (T * B, Opt.txt_rnn_size)

    # numeric sanity check vs. pure-JAX reference (tolerance covers MXU pass precision
    # and the approx reciprocal used in the in-kernel softmax)
    (rcat, rle, rner), renc = reference_forward(tokens, params)
    np.testing.assert_allclose(np.asarray(cat_p), np.asarray(rcat), atol=2e-2, rtol=2e-2)
    np.testing.assert_allclose(np.asarray(le_p), np.asarray(rle), atol=2e-2, rtol=2e-2)
    np.testing.assert_allclose(np.asarray(ner_p), np.asarray(rner), atol=2e-2, rtol=2e-2)
    np.testing.assert_allclose(np.asarray(src_enc), np.asarray(renc), atol=2e-2, rtol=2e-2)

    print("KERNEL_OK")
</pallas_src>

<mosaic_0001>
module attributes {stable_mosaic.version = 11 : i64} {
  func.func @_fused_kernel(%arg0: memref<16x4xi32, #tpu.memory_space<vmem>>, %arg1: memref<117x32xf32, #tpu.memory_space<vmem>>, %arg2: memref<2x32x128xf32, #tpu.memory_space<vmem>>, %arg3: memref<4x16x64xf32, #tpu.memory_space<vmem>>, %arg4: memref<2x1x128xf32, #tpu.memory_space<vmem>>, %arg5: memref<32x128xf32, #tpu.memory_space<vmem>>, %arg6: memref<1x128xf32, #tpu.memory_space<vmem>>, %arg7: memref<16x128xf32, #tpu.memory_space<vmem>>) attributes {dimension_semantics = [], scalar_prefetch = 0 : i64, scratch_operands = 0 : i64, tpu.core_type = #tpu.core_type<tc>} {
    %c0 = arith.constant 0 : index
    %c0_0 = arith.constant 0 : index
    %0 = vector.load %arg0[%c0, %c0_0] : memref<16x4xi32, #tpu.memory_space<vmem>>, vector<16x4xi32>
    %1 = tpu.iota {dimensions = array<i32: 1>} : vector<16x117xi32>
    %2 = vector.extract_strided_slice %0 {offsets = [0, 0], sizes = [16, 1], strides = [1, 1]} : vector<16x4xi32> to vector<16x1xi32>
    %c0_i32 = arith.constant 0 : i32
    %3 = vector.broadcast %c0_i32 : i32 to vector<16x1xi32>
    %4 = arith.addi %2, %3 : vector<16x1xi32>
    %5 = vector.broadcast %4 : vector<16x1xi32> to vector<16x117xi32>
    %6 = arith.cmpi eq, %1, %5 : vector<16x117xi32>
    %7 = vector.extract_strided_slice %0 {offsets = [0, 1], sizes = [16, 1], strides = [1, 1]} : vector<16x4xi32> to vector<16x1xi32>
    %c50_i32 = arith.constant 50 : i32
    %8 = vector.broadcast %c50_i32 : i32 to vector<16x1xi32>
    %9 = arith.addi %7, %8 : vector<16x1xi32>
    %10 = vector.broadcast %9 : vector<16x1xi32> to vector<16x117xi32>
    %11 = arith.cmpi eq, %1, %10 : vector<16x117xi32>
    %12 = arith.ori %6, %11 : vector<16x117xi1>
    %13 = vector.extract_strided_slice %0 {offsets = [0, 2], sizes = [16, 1], strides = [1, 1]} : vector<16x4xi32> to vector<16x1xi32>
    %c90_i32 = arith.constant 90 : i32
    %14 = vector.broadcast %c90_i32 : i32 to vector<16x1xi32>
    %15 = arith.addi %13, %14 : vector<16x1xi32>
    %16 = vector.broadcast %15 : vector<16x1xi32> to vector<16x117xi32>
    %17 = arith.cmpi eq, %1, %16 : vector<16x117xi32>
    %18 = arith.ori %12, %17 : vector<16x117xi1>
    %19 = vector.extract_strided_slice %0 {offsets = [0, 3], sizes = [16, 1], strides = [1, 1]} : vector<16x4xi32> to vector<16x1xi32>
    %c108_i32 = arith.constant 108 : i32
    %20 = vector.broadcast %c108_i32 : i32 to vector<16x1xi32>
    %21 = arith.addi %19, %20 : vector<16x1xi32>
    %22 = vector.broadcast %21 : vector<16x1xi32> to vector<16x117xi32>
    %23 = arith.cmpi eq, %1, %22 : vector<16x117xi32>
    %24 = arith.ori %18, %23 : vector<16x117xi1>
    %25 = arith.extui %24 : vector<16x117xi1> to vector<16x117xi32>
    %26 = arith.sitofp %25 : vector<16x117xi32> to vector<16x117xf32>
    %c0_1 = arith.constant 0 : index
    %c0_2 = arith.constant 0 : index
    %27 = vector.load %arg1[%c0_1, %c0_2] : memref<117x32xf32, #tpu.memory_space<vmem>>, vector<117x32xf32>
    %cst = arith.constant dense<0.000000e+00> : vector<16x32xf32>
    %28 = tpu.matmul %26, %27, %cst {dimension_numbers = #tpu.dot_dimension_numbers<[1], [0], [0], [1], [0, 0, 1, 1], [], []>} : vector<16x117xf32>, vector<117x32xf32>, vector<16x32xf32> -> vector<16x32xf32>
    %29 = tpu.iota {dimensions = array<i32: 1>} : vector<2x64xi32>
    %c32_i32 = arith.constant 32 : i32
    %30 = vector.broadcast %c32_i32 : i32 to vector<2x64xi32>
    %31 = arith.cmpi sge, %29, %30 : vector<2x64xi32>
    %c48_i32 = arith.constant 48 : i32
    %32 = vector.broadcast %c48_i32 : i32 to vector<2x64xi32>
    %33 = arith.cmpi slt, %29, %32 : vector<2x64xi32>
    %34 = arith.andi %31, %33 : vector<2x64xi1>
    %c0_3 = arith.constant 0 : index
    %c0_4 = arith.constant 0 : index
    %c0_5 = arith.constant 0 : index
    %35 = vector.load %arg2[%c0_3, %c0_4, %c0_5] : memref<2x32x128xf32, #tpu.memory_space<vmem>>, vector<1x32x128xf32>
    %36 = vector.shape_cast %35 : vector<1x32x128xf32> to vector<32x128xf32>
    %cst_6 = arith.constant dense<0.000000e+00> : vector<16x128xf32>
    %37 = tpu.matmul %28, %36, %cst_6 {dimension_numbers = #tpu.dot_dimension_numbers<[1], [0], [0], [1], [0, 0, 1, 1], [], []>} : vector<16x32xf32>, vector<32x128xf32>, vector<16x128xf32> -> vector<16x128xf32>
    %c0_7 = arith.constant 0 : index
    %c0_8 = arith.constant 0 : index
    %c0_9 = arith.constant 0 : index
    %38 = vector.load %arg4[%c0_7, %c0_8, %c0_9] : memref<2x1x128xf32, #tpu.memory_space<vmem>>, vector<1x1x128xf32>
    %39 = vector.shape_cast %38 : vector<1x1x128xf32> to vector<1x128xf32>
    %40 = vector.broadcast %39 : vector<1x128xf32> to vector<16x128xf32>
    %41 = arith.addf %37, %40 : vector<16x128xf32>
    %c0_10 = arith.constant 0 : index
    %c0_11 = arith.constant 0 : index
    %c0_12 = arith.constant 0 : index
    %42 = vector.load %arg3[%c0_10, %c0_11, %c0_12] : memref<4x16x64xf32, #tpu.memory_space<vmem>>, vector<1x16x64xf32>
    %43 = vector.shape_cast %42 : vector<1x16x64xf32> to vector<16x64xf32>
    %44 = vector.extract_strided_slice %41 {offsets = [0, 0], sizes = [16, 64], strides = [1, 1]} : vector<16x128xf32> to vector<16x64xf32>
    %cst_13 = arith.constant 0.000000e+00 : f32
    %45 = vector.broadcast %cst_13 : f32 to vector<2x16xf32>
    %cst_14 = arith.constant 0.000000e+00 : f32
    %46 = vector.broadcast %cst_14 : f32 to vector<2x16xf32>
    %47 = vector.extract_strided_slice %44 {offsets = [0, 0], sizes = [2, 64], strides = [1, 1]} : vector<16x64xf32> to vector<2x64xf32>
    %cst_15 = arith.constant dense<0.000000e+00> : vector<2x64xf32>
    %48 = tpu.matmul %45, %43, %cst_15 {dimension_numbers = #tpu.dot_dimension_numbers<[1], [0], [0], [1], [0, 0, 1, 1], [], []>} : vector<2x16xf32>, vector<16x64xf32>, vector<2x64xf32> -> vector<2x64xf32>
    %49 = arith.addf %47, %48 : vector<2x64xf32>
    %50 = math.tanh %49 : vector<2x64xf32>
    %51 = arith.negf %49 : vector<2x64xf32>
    %52 = math.exp %51 : vector<2x64xf32>
    %cst_16 = arith.constant 1.000000e+00 : f32
    %53 = vector.broadcast %cst_16 : f32 to vector<2x64xf32>
    %54 = arith.addf %53, %52 : vector<2x64xf32>
    %55 = arith.divf %53, %54 : vector<2x64xf32>
    %56 = arith.select %34, %50, %55 : vector<2x64xi1>, vector<2x64xf32>
    %57 = vector.extract_strided_slice %56 {offsets = [0, 0], sizes = [2, 16], strides = [1, 1]} : vector<2x64xf32> to vector<2x16xf32>
    %58 = vector.extract_strided_slice %56 {offsets = [0, 16], sizes = [2, 16], strides = [1, 1]} : vector<2x64xf32> to vector<2x16xf32>
    %59 = vector.extract_strided_slice %56 {offsets = [0, 32], sizes = [2, 16], strides = [1, 1]} : vector<2x64xf32> to vector<2x16xf32>
    %60 = vector.extract_strided_slice %56 {offsets = [0, 48], sizes = [2, 16], strides = [1, 1]} : vector<2x64xf32> to vector<2x16xf32>
    %61 = arith.mulf %58, %46 : vector<2x16xf32>
    %62 = arith.mulf %57, %59 : vector<2x16xf32>
    %63 = arith.addf %61, %62 : vector<2x16xf32>
    %64 = math.tanh %63 : vector<2x16xf32>
    %65 = arith.mulf %60, %64 : vector<2x16xf32>
    %66 = vector.extract_strided_slice %44 {offsets = [2, 0], sizes = [2, 64], strides = [1, 1]} : vector<16x64xf32> to vector<2x64xf32>
    %cst_17 = arith.constant dense<0.000000e+00> : vector<2x64xf32>
    %67 = tpu.matmul %65, %43, %cst_17 {dimension_numbers = #tpu.dot_dimension_numbers<[1], [0], [0], [1], [0, 0, 1, 1], [], []>} : vector<2x16xf32>, vector<16x64xf32>, vector<2x64xf32> -> vector<2x64xf32>
    %68 = arith.addf %66, %67 : vector<2x64xf32>
    %69 = math.tanh %68 : vector<2x64xf32>
    %70 = arith.negf %68 : vector<2x64xf32>
    %71 = math.exp %70 : vector<2x64xf32>
    %cst_18 = arith.constant 1.000000e+00 : f32
    %72 = vector.broadcast %cst_18 : f32 to vector<2x64xf32>
    %73 = arith.addf %72, %71 : vector<2x64xf32>
    %74 = arith.divf %72, %73 : vector<2x64xf32>
    %75 = arith.select %34, %69, %74 : vector<2x64xi1>, vector<2x64xf32>
    %76 = vector.extract_strided_slice %75 {offsets = [0, 0], sizes = [2, 16], strides = [1, 1]} : vector<2x64xf32> to vector<2x16xf32>
    %77 = vector.extract_strided_slice %75 {offsets = [0, 16], sizes = [2, 16], strides = [1, 1]} : vector<2x64xf32> to vector<2x16xf32>
    %78 = vector.extract_strided_slice %75 {offsets = [0, 32], sizes = [2, 16], strides = [1, 1]} : vector<2x64xf32> to vector<2x16xf32>
    %79 = vector.extract_strided_slice %75 {offsets = [0, 48], sizes = [2, 16], strides = [1, 1]} : vector<2x64xf32> to vector<2x16xf32>
    %80 = arith.mulf %77, %63 : vector<2x16xf32>
    %81 = arith.mulf %76, %78 : vector<2x16xf32>
    %82 = arith.addf %80, %81 : vector<2x16xf32>
    %83 = math.tanh %82 : vector<2x16xf32>
    %84 = arith.mulf %79, %83 : vector<2x16xf32>
    %85 = vector.extract_strided_slice %44 {offsets = [4, 0], sizes = [2, 64], strides = [1, 1]} : vector<16x64xf32> to vector<2x64xf32>
    %cst_19 = arith.constant dense<0.000000e+00> : vector<2x64xf32>
    %86 = tpu.matmul %84, %43, %cst_19 {dimension_numbers = #tpu.dot_dimension_numbers<[1], [0], [0], [1], [0, 0, 1, 1], [], []>} : vector<2x16xf32>, vector<16x64xf32>, vector<2x64xf32> -> vector<2x64xf32>
    %87 = arith.addf %85, %86 : vector<2x64xf32>
    %88 = math.tanh %87 : vector<2x64xf32>
    %89 = arith.negf %87 : vector<2x64xf32>
    %90 = math.exp %89 : vector<2x64xf32>
    %cst_20 = arith.constant 1.000000e+00 : f32
    %91 = vector.broadcast %cst_20 : f32 to vector<2x64xf32>
    %92 = arith.addf %91, %90 : vector<2x64xf32>
    %93 = arith.divf %91, %92 : vector<2x64xf32>
    %94 = arith.select %34, %88, %93 : vector<2x64xi1>, vector<2x64xf32>
    %95 = vector.extract_strided_slice %94 {offsets = [0, 0], sizes = [2, 16], strides = [1, 1]} : vector<2x64xf32> to vector<2x16xf32>
    %96 = vector.extract_strided_slice %94 {offsets = [0, 16], sizes = [2, 16], strides = [1, 1]} : vector<2x64xf32> to vector<2x16xf32>
    %97 = vector.extract_strided_slice %94 {offsets = [0, 32], sizes = [2, 16], strides = [1, 1]} : vector<2x64xf32> to vector<2x16xf32>
    %98 = vector.extract_strided_slice %94 {offsets = [0, 48], sizes = [2, 16], strides = [1, 1]} : vector<2x64xf32> to vector<2x16xf32>
    %99 = arith.mulf %96, %82 : vector<2x16xf32>
    %100 = arith.mulf %95, %97 : vector<2x16xf32>
    %101 = arith.addf %99, %100 : vector<2x16xf32>
    %102 = math.tanh %101 : vector<2x16xf32>
    %103 = arith.mulf %98, %102 : vector<2x16xf32>
    %104 = vector.extract_strided_slice %44 {offsets = [6, 0], sizes = [2, 64], strides = [1, 1]} : vector<16x64xf32> to vector<2x64xf32>
    %cst_21 = arith.constant dense<0.000000e+00> : vector<2x64xf32>
    %105 = tpu.matmul %103, %43, %cst_21 {dimension_numbers = #tpu.dot_dimension_numbers<[1], [0], [0], [1], [0, 0, 1, 1], [], []>} : vector<2x16xf32>, vector<16x64xf32>, vector<2x64xf32> -> vector<2x64xf32>
    %106 = arith.addf %104, %105 : vector<2x64xf32>
    %107 = math.tanh %106 : vector<2x64xf32>
    %108 = arith.negf %106 : vector<2x64xf32>
    %109 = math.exp %108 : vector<2x64xf32>
    %cst_22 = arith.constant 1.000000e+00 : f32
    %110 = vector.broadcast %cst_22 : f32 to vector<2x64xf32>
    %111 = arith.addf %110, %109 : vector<2x64xf32>
    %112 = arith.divf %110, %111 : vector<2x64xf32>
    %113 = arith.select %34, %107, %112 : vector<2x64xi1>, vector<2x64xf32>
    %114 = vector.extract_strided_slice %113 {offsets = [0, 0], sizes = [2, 16], strides = [1, 1]} : vector<2x64xf32> to vector<2x16xf32>
    %115 = vector.extract_strided_slice %113 {offsets = [0, 16], sizes = [2, 16], strides = [1, 1]} : vector<2x64xf32> to vector<2x16xf32>
    %116 = vector.extract_strided_slice %113 {offsets = [0, 32], sizes = [2, 16], strides = [1, 1]} : vector<2x64xf32> to vector<2x16xf32>
    %117 = vector.extract_strided_slice %113 {offsets = [0, 48], sizes = [2, 16], strides = [1, 1]} : vector<2x64xf32> to vector<2x16xf32>
    %118 = arith.mulf %115, %101 : vector<2x16xf32>
    %119 = arith.mulf %114, %116 : vector<2x16xf32>
    %120 = arith.addf %118, %119 : vector<2x16xf32>
    %121 = math.tanh %120 : vector<2x16xf32>
    %122 = arith.mulf %117, %121 : vector<2x16xf32>
    %123 = vector.extract_strided_slice %44 {offsets = [8, 0], sizes = [2, 64], strides = [1, 1]} : vector<16x64xf32> to vector<2x64xf32>
    %cst_23 = arith.constant dense<0.000000e+00> : vector<2x64xf32>
    %124 = tpu.matmul %122, %43, %cst_23 {dimension_numbers = #tpu.dot_dimension_numbers<[1], [0], [0], [1], [0, 0, 1, 1], [], []>} : vector<2x16xf32>, vector<16x64xf32>, vector<2x64xf32> -> vector<2x64xf32>
    %125 = arith.addf %123, %124 : vector<2x64xf32>
    %126 = math.tanh %125 : vector<2x64xf32>
    %127 = arith.negf %125 : vector<2x64xf32>
    %128 = math.exp %127 : vector<2x64xf32>
    %cst_24 = arith.constant 1.000000e+00 : f32
    %129 = vector.broadcast %cst_24 : f32 to vector<2x64xf32>
    %130 = arith.addf %129, %128 : vector<2x64xf32>
    %131 = arith.divf %129, %130 : vector<2x64xf32>
    %132 = arith.select %34, %126, %131 : vector<2x64xi1>, vector<2x64xf32>
    %133 = vector.extract_strided_slice %132 {offsets = [0, 0], sizes = [2, 16], strides = [1, 1]} : vector<2x64xf32> to vector<2x16xf32>
    %134 = vector.extract_strided_slice %132 {offsets = [0, 16], sizes = [2, 16], strides = [1, 1]} : vector<2x64xf32> to vector<2x16xf32>
    %135 = vector.extract_strided_slice %132 {offsets = [0, 32], sizes = [2, 16], strides = [1, 1]} : vector<2x64xf32> to vector<2x16xf32>
    %136 = vector.extract_strided_slice %132 {offsets = [0, 48], sizes = [2, 16], strides = [1, 1]} : vector<2x64xf32> to vector<2x16xf32>
    %137 = arith.mulf %134, %120 : vector<2x16xf32>
    %138 = arith.mulf %133, %135 : vector<2x16xf32>
    %139 = arith.addf %137, %138 : vector<2x16xf32>
    %140 = math.tanh %139 : vector<2x16xf32>
    %141 = arith.mulf %136, %140 : vector<2x16xf32>
    %142 = vector.extract_strided_slice %44 {offsets = [10, 0], sizes = [2, 64], strides = [1, 1]} : vector<16x64xf32> to vector<2x64xf32>
    %cst_25 = arith.constant dense<0.000000e+00> : vector<2x64xf32>
    %143 = tpu.matmul %141, %43, %cst_25 {dimension_numbers = #tpu.dot_dimension_numbers<[1], [0], [0], [1], [0, 0, 1, 1], [], []>} : vector<2x16xf32>, vector<16x64xf32>, vector<2x64xf32> -> vector<2x64xf32>
    %144 = arith.addf %142, %143 : vector<2x64xf32>
    %145 = math.tanh %144 : vector<2x64xf32>
    %146 = arith.negf %144 : vector<2x64xf32>
    %147 = math.exp %146 : vector<2x64xf32>
    %cst_26 = arith.constant 1.000000e+00 : f32
    %148 = vector.broadcast %cst_26 : f32 to vector<2x64xf32>
    %149 = arith.addf %148, %147 : vector<2x64xf32>
    %150 = arith.divf %148, %149 : vector<2x64xf32>
    %151 = arith.select %34, %145, %150 : vector<2x64xi1>, vector<2x64xf32>
    %152 = vector.extract_strided_slice %151 {offsets = [0, 0], sizes = [2, 16], strides = [1, 1]} : vector<2x64xf32> to vector<2x16xf32>
    %153 = vector.extract_strided_slice %151 {offsets = [0, 16], sizes = [2, 16], strides = [1, 1]} : vector<2x64xf32> to vector<2x16xf32>
    %154 = vector.extract_strided_slice %151 {offsets = [0, 32], sizes = [2, 16], strides = [1, 1]} : vector<2x64xf32> to vector<2x16xf32>
    %155 = vector.extract_strided_slice %151 {offsets = [0, 48], sizes = [2, 16], strides = [1, 1]} : vector<2x64xf32> to vector<2x16xf32>
    %156 = arith.mulf %153, %139 : vector<2x16xf32>
    %157 = arith.mulf %152, %154 : vector<2x16xf32>
    %158 = arith.addf %156, %157 : vector<2x16xf32>
    %159 = math.tanh %158 : vector<2x16xf32>
    %160 = arith.mulf %155, %159 : vector<2x16xf32>
    %161 = vector.extract_strided_slice %44 {offsets = [12, 0], sizes = [2, 64], strides = [1, 1]} : vector<16x64xf32> to vector<2x64xf32>
    %cst_27 = arith.constant dense<0.000000e+00> : vector<2x64xf32>
    %162 = tpu.matmul %160, %43, %cst_27 {dimension_numbers = #tpu.dot_dimension_numbers<[1], [0], [0], [1], [0, 0, 1, 1], [], []>} : vector<2x16xf32>, vector<16x64xf32>, vector<2x64xf32> -> vector<2x64xf32>
    %163 = arith.addf %161, %162 : vector<2x64xf32>
    %164 = math.tanh %163 : vector<2x64xf32>
    %165 = arith.negf %163 : vector<2x64xf32>
    %166 = math.exp %165 : vector<2x64xf32>
    %cst_28 = arith.constant 1.000000e+00 : f32
    %167 = vector.broadcast %cst_28 : f32 to vector<2x64xf32>
    %168 = arith.addf %167, %166 : vector<2x64xf32>
    %169 = arith.divf %167, %168 : vector<2x64xf32>
    %170 = arith.select %34, %164, %169 : vector<2x64xi1>, vector<2x64xf32>
    %171 = vector.extract_strided_slice %170 {offsets = [0, 0], sizes = [2, 16], strides = [1, 1]} : vector<2x64xf32> to vector<2x16xf32>
    %172 = vector.extract_strided_slice %170 {offsets = [0, 16], sizes = [2, 16], strides = [1, 1]} : vector<2x64xf32> to vector<2x16xf32>
    %173 = vector.extract_strided_slice %170 {offsets = [0, 32], sizes = [2, 16], strides = [1, 1]} : vector<2x64xf32> to vector<2x16xf32>
    %174 = vector.extract_strided_slice %170 {offsets = [0, 48], sizes = [2, 16], strides = [1, 1]} : vector<2x64xf32> to vector<2x16xf32>
    %175 = arith.mulf %172, %158 : vector<2x16xf32>
    %176 = arith.mulf %171, %173 : vector<2x16xf32>
    %177 = arith.addf %175, %176 : vector<2x16xf32>
    %178 = math.tanh %177 : vector<2x16xf32>
    %179 = arith.mulf %174, %178 : vector<2x16xf32>
    %180 = vector.extract_strided_slice %44 {offsets = [14, 0], sizes = [2, 64], strides = [1, 1]} : vector<16x64xf32> to vector<2x64xf32>
    %cst_29 = arith.constant dense<0.000000e+00> : vector<2x64xf32>
    %181 = tpu.matmul %179, %43, %cst_29 {dimension_numbers = #tpu.dot_dimension_numbers<[1], [0], [0], [1], [0, 0, 1, 1], [], []>} : vector<2x16xf32>, vector<16x64xf32>, vector<2x64xf32> -> vector<2x64xf32>
    %182 = arith.addf %180, %181 : vector<2x64xf32>
    %183 = math.tanh %182 : vector<2x64xf32>
    %184 = arith.negf %182 : vector<2x64xf32>
    %185 = math.exp %184 : vector<2x64xf32>
    %cst_30 = arith.constant 1.000000e+00 : f32
    %186 = vector.broadcast %cst_30 : f32 to vector<2x64xf32>
    %187 = arith.addf %186, %185 : vector<2x64xf32>
    %188 = arith.divf %186, %187 : vector<2x64xf32>
    %189 = arith.select %34, %183, %188 : vector<2x64xi1>, vector<2x64xf32>
    %190 = vector.extract_strided_slice %189 {offsets = [0, 0], sizes = [2, 16], strides = [1, 1]} : vector<2x64xf32> to vector<2x16xf32>
    %191 = vector.extract_strided_slice %189 {offsets = [0, 16], sizes = [2, 16], strides = [1, 1]} : vector<2x64xf32> to vector<2x16xf32>
    %192 = vector.extract_strided_slice %189 {offsets = [0, 32], sizes = [2, 16], strides = [1, 1]} : vector<2x64xf32> to vector<2x16xf32>
    %193 = vector.extract_strided_slice %189 {offsets = [0, 48], sizes = [2, 16], strides = [1, 1]} : vector<2x64xf32> to vector<2x16xf32>
    %194 = arith.mulf %191, %177 : vector<2x16xf32>
    %195 = arith.mulf %190, %192 : vector<2x16xf32>
    %196 = arith.addf %194, %195 : vector<2x16xf32>
    %197 = math.tanh %196 : vector<2x16xf32>
    %198 = arith.mulf %193, %197 : vector<2x16xf32>
    %c1 = arith.constant 1 : index
    %c0_31 = arith.constant 0 : index
    %c0_32 = arith.constant 0 : index
    %199 = vector.load %arg3[%c1, %c0_31, %c0_32] : memref<4x16x64xf32, #tpu.memory_space<vmem>>, vector<1x16x64xf32>
    %200 = vector.shape_cast %199 : vector<1x16x64xf32> to vector<16x64xf32>
    %201 = vector.extract_strided_slice %41 {offsets = [0, 64], sizes = [16, 64], strides = [1, 1]} : vector<16x128xf32> to vector<16x64xf32>
    %cst_33 = arith.constant 0.000000e+00 : f32
    %202 = vector.broadcast %cst_33 : f32 to vector<2x16xf32>
    %cst_34 = arith.constant 0.000000e+00 : f32
    %203 = vector.broadcast %cst_34 : f32 to vector<2x16xf32>
    %204 = vector.extract_strided_slice %201 {offsets = [14, 0], sizes = [2, 64], strides = [1, 1]} : vector<16x64xf32> to vector<2x64xf32>
    %cst_35 = arith.constant dense<0.000000e+00> : vector<2x64xf32>
    %205 = tpu.matmul %202, %200, %cst_35 {dimension_numbers = #tpu.dot_dimension_numbers<[1], [0], [0], [1], [0, 0, 1, 1], [], []>} : vector<2x16xf32>, vector<16x64xf32>, vector<2x64xf32> -> vector<2x64xf32>
    %206 = arith.addf %204, %205 : vector<2x64xf32>
    %207 = math.tanh %206 : vector<2x64xf32>
    %208 = arith.negf %206 : vector<2x64xf32>
    %209 = math.exp %208 : vector<2x64xf32>
    %cst_36 = arith.constant 1.000000e+00 : f32
    %210 = vector.broadcast %cst_36 : f32 to vector<2x64xf32>
    %211 = arith.addf %210, %209 : vector<2x64xf32>
    %212 = arith.divf %210, %211 : vector<2x64xf32>
    %213 = arith.select %34, %207, %212 : vector<2x64xi1>, vector<2x64xf32>
    %214 = vector.extract_strided_slice %213 {offsets = [0, 0], sizes = [2, 16], strides = [1, 1]} : vector<2x64xf32> to vector<2x16xf32>
    %215 = vector.extract_strided_slice %213 {offsets = [0, 16], sizes = [2, 16], strides = [1, 1]} : vector<2x64xf32> to vector<2x16xf32>
    %216 = vector.extract_strided_slice %213 {offsets = [0, 32], sizes = [2, 16], strides = [1, 1]} : vector<2x64xf32> to vector<2x16xf32>
    %217 = vector.extract_strided_slice %213 {offsets = [0, 48], sizes = [2, 16], strides = [1, 1]} : vector<2x64xf32> to vector<2x16xf32>
    %218 = arith.mulf %215, %203 : vector<2x16xf32>
    %219 = arith.mulf %214, %216 : vector<2x16xf32>
    %220 = arith.addf %218, %219 : vector<2x16xf32>
    %221 = math.tanh %220 : vector<2x16xf32>
    %222 = arith.mulf %217, %221 : vector<2x16xf32>
    %223 = vector.extract_strided_slice %201 {offsets = [12, 0], sizes = [2, 64], strides = [1, 1]} : vector<16x64xf32> to vector<2x64xf32>
    %cst_37 = arith.constant dense<0.000000e+00> : vector<2x64xf32>
    %224 = tpu.matmul %222, %200, %cst_37 {dimension_numbers = #tpu.dot_dimension_numbers<[1], [0], [0], [1], [0, 0, 1, 1], [], []>} : vector<2x16xf32>, vector<16x64xf32>, vector<2x64xf32> -> vector<2x64xf32>
    %225 = arith.addf %223, %224 : vector<2x64xf32>
    %226 = math.tanh %225 : vector<2x64xf32>
    %227 = arith.negf %225 : vector<2x64xf32>
    %228 = math.exp %227 : vector<2x64xf32>
    %cst_38 = arith.constant 1.000000e+00 : f32
    %229 = vector.broadcast %cst_38 : f32 to vector<2x64xf32>
    %230 = arith.addf %229, %228 : vector<2x64xf32>
    %231 = arith.divf %229, %230 : vector<2x64xf32>
    %232 = arith.select %34, %226, %231 : vector<2x64xi1>, vector<2x64xf32>
    %233 = vector.extract_strided_slice %232 {offsets = [0, 0], sizes = [2, 16], strides = [1, 1]} : vector<2x64xf32> to vector<2x16xf32>
    %234 = vector.extract_strided_slice %232 {offsets = [0, 16], sizes = [2, 16], strides = [1, 1]} : vector<2x64xf32> to vector<2x16xf32>
    %235 = vector.extract_strided_slice %232 {offsets = [0, 32], sizes = [2, 16], strides = [1, 1]} : vector<2x64xf32> to vector<2x16xf32>
    %236 = vector.extract_strided_slice %232 {offsets = [0, 48], sizes = [2, 16], strides = [1, 1]} : vector<2x64xf32> to vector<2x16xf32>
    %237 = arith.mulf %234, %220 : vector<2x16xf32>
    %238 = arith.mulf %233, %235 : vector<2x16xf32>
    %239 = arith.addf %237, %238 : vector<2x16xf32>
    %240 = math.tanh %239 : vector<2x16xf32>
    %241 = arith.mulf %236, %240 : vector<2x16xf32>
    %242 = vector.extract_strided_slice %201 {offsets = [10, 0], sizes = [2, 64], strides = [1, 1]} : vector<16x64xf32> to vector<2x64xf32>
    %cst_39 = arith.constant dense<0.000000e+00> : vector<2x64xf32>
    %243 = tpu.matmul %241, %200, %cst_39 {dimension_numbers = #tpu.dot_dimension_numbers<[1], [0], [0], [1], [0, 0, 1, 1], [], []>} : vector<2x16xf32>, vector<16x64xf32>, vector<2x64xf32> -> vector<2x64xf32>
    %244 = arith.addf %242, %243 : vector<2x64xf32>
    %245 = math.tanh %244 : vector<2x64xf32>
    %246 = arith.negf %244 : vector<2x64xf32>
    %247 = math.exp %246 : vector<2x64xf32>
    %cst_40 = arith.constant 1.000000e+00 : f32
    %248 = vector.broadcast %cst_40 : f32 to vector<2x64xf32>
    %249 = arith.addf %248, %247 : vector<2x64xf32>
    %250 = arith.divf %248, %249 : vector<2x64xf32>
    %251 = arith.select %34, %245, %250 : vector<2x64xi1>, vector<2x64xf32>
    %252 = vector.extract_strided_slice %251 {offsets = [0, 0], sizes = [2, 16], strides = [1, 1]} : vector<2x64xf32> to vector<2x16xf32>
    %253 = vector.extract_strided_slice %251 {offsets = [0, 16], sizes = [2, 16], strides = [1, 1]} : vector<2x64xf32> to vector<2x16xf32>
    %254 = vector.extract_strided_slice %251 {offsets = [0, 32], sizes = [2, 16], strides = [1, 1]} : vector<2x64xf32> to vector<2x16xf32>
    %255 = vector.extract_strided_slice %251 {offsets = [0, 48], sizes = [2, 16], strides = [1, 1]} : vector<2x64xf32> to vector<2x16xf32>
    %256 = arith.mulf %253, %239 : vector<2x16xf32>
    %257 = arith.mulf %252, %254 : vector<2x16xf32>
    %258 = arith.addf %256, %257 : vector<2x16xf32>
    %259 = math.tanh %258 : vector<2x16xf32>
    %260 = arith.mulf %255, %259 : vector<2x16xf32>
    %261 = vector.extract_strided_slice %201 {offsets = [8, 0], sizes = [2, 64], strides = [1, 1]} : vector<16x64xf32> to vector<2x64xf32>
    %cst_41 = arith.constant dense<0.000000e+00> : vector<2x64xf32>
    %262 = tpu.matmul %260, %200, %cst_41 {dimension_numbers = #tpu.dot_dimension_numbers<[1], [0], [0], [1], [0, 0, 1, 1], [], []>} : vector<2x16xf32>, vector<16x64xf32>, vector<2x64xf32> -> vector<2x64xf32>
    %263 = arith.addf %261, %262 : vector<2x64xf32>
    %264 = math.tanh %263 : vector<2x64xf32>
    %265 = arith.negf %263 : vector<2x64xf32>
    %266 = math.exp %265 : vector<2x64xf32>
    %cst_42 = arith.constant 1.000000e+00 : f32
    %267 = vector.broadcast %cst_42 : f32 to vector<2x64xf32>
    %268 = arith.addf %267, %266 : vector<2x64xf32>
    %269 = arith.divf %267, %268 : vector<2x64xf32>
    %270 = arith.select %34, %264, %269 : vector<2x64xi1>, vector<2x64xf32>
    %271 = vector.extract_strided_slice %270 {offsets = [0, 0], sizes = [2, 16], strides = [1, 1]} : vector<2x64xf32> to vector<2x16xf32>
    %272 = vector.extract_strided_slice %270 {offsets = [0, 16], sizes = [2, 16], strides = [1, 1]} : vector<2x64xf32> to vector<2x16xf32>
    %273 = vector.extract_strided_slice %270 {offsets = [0, 32], sizes = [2, 16], strides = [1, 1]} : vector<2x64xf32> to vector<2x16xf32>
    %274 = vector.extract_strided_slice %270 {offsets = [0, 48], sizes = [2, 16], strides = [1, 1]} : vector<2x64xf32> to vector<2x16xf32>
    %275 = arith.mulf %272, %258 : vector<2x16xf32>
    %276 = arith.mulf %271, %273 : vector<2x16xf32>
    %277 = arith.addf %275, %276 : vector<2x16xf32>
    %278 = math.tanh %277 : vector<2x16xf32>
    %279 = arith.mulf %274, %278 : vector<2x16xf32>
    %280 = vector.extract_strided_slice %201 {offsets = [6, 0], sizes = [2, 64], strides = [1, 1]} : vector<16x64xf32> to vector<2x64xf32>
    %cst_43 = arith.constant dense<0.000000e+00> : vector<2x64xf32>
    %281 = tpu.matmul %279, %200, %cst_43 {dimension_numbers = #tpu.dot_dimension_numbers<[1], [0], [0], [1], [0, 0, 1, 1], [], []>} : vector<2x16xf32>, vector<16x64xf32>, vector<2x64xf32> -> vector<2x64xf32>
    %282 = arith.addf %280, %281 : vector<2x64xf32>
    %283 = math.tanh %282 : vector<2x64xf32>
    %284 = arith.negf %282 : vector<2x64xf32>
    %285 = math.exp %284 : vector<2x64xf32>
    %cst_44 = arith.constant 1.000000e+00 : f32
    %286 = vector.broadcast %cst_44 : f32 to vector<2x64xf32>
    %287 = arith.addf %286, %285 : vector<2x64xf32>
    %288 = arith.divf %286, %287 : vector<2x64xf32>
    %289 = arith.select %34, %283, %288 : vector<2x64xi1>, vector<2x64xf32>
    %290 = vector.extract_strided_slice %289 {offsets = [0, 0], sizes = [2, 16], strides = [1, 1]} : vector<2x64xf32> to vector<2x16xf32>
    %291 = vector.extract_strided_slice %289 {offsets = [0, 16], sizes = [2, 16], strides = [1, 1]} : vector<2x64xf32> to vector<2x16xf32>
    %292 = vector.extract_strided_slice %289 {offsets = [0, 32], sizes = [2, 16], strides = [1, 1]} : vector<2x64xf32> to vector<2x16xf32>
    %293 = vector.extract_strided_slice %289 {offsets = [0, 48], sizes = [2, 16], strides = [1, 1]} : vector<2x64xf32> to vector<2x16xf32>
    %294 = arith.mulf %291, %277 : vector<2x16xf32>
    %295 = arith.mulf %290, %292 : vector<2x16xf32>
    %296 = arith.addf %294, %295 : vector<2x16xf32>
    %297 = math.tanh %296 : vector<2x16xf32>
    %298 = arith.mulf %293, %297 : vector<2x16xf32>
    %299 = vector.extract_strided_slice %201 {offsets = [4, 0], sizes = [2, 64], strides = [1, 1]} : vector<16x64xf32> to vector<2x64xf32>
    %cst_45 = arith.constant dense<0.000000e+00> : vector<2x64xf32>
    %300 = tpu.matmul %298, %200, %cst_45 {dimension_numbers = #tpu.dot_dimension_numbers<[1], [0], [0], [1], [0, 0, 1, 1], [], []>} : vector<2x16xf32>, vector<16x64xf32>, vector<2x64xf32> -> vector<2x64xf32>
    %301 = arith.addf %299, %300 : vector<2x64xf32>
    %302 = math.tanh %301 : vector<2x64xf32>
    %303 = arith.negf %301 : vector<2x64xf32>
    %304 = math.exp %303 : vector<2x64xf32>
    %cst_46 = arith.constant 1.000000e+00 : f32
    %305 = vector.broadcast %cst_46 : f32 to vector<2x64xf32>
    %306 = arith.addf %305, %304 : vector<2x64xf32>
    %307 = arith.divf %305, %306 : vector<2x64xf32>
    %308 = arith.select %34, %302, %307 : vector<2x64xi1>, vector<2x64xf32>
    %309 = vector.extract_strided_slice %308 {offsets = [0, 0], sizes = [2, 16], strides = [1, 1]} : vector<2x64xf32> to vector<2x16xf32>
    %310 = vector.extract_strided_slice %308 {offsets = [0, 16], sizes = [2, 16], strides = [1, 1]} : vector<2x64xf32> to vector<2x16xf32>
    %311 = vector.extract_strided_slice %308 {offsets = [0, 32], sizes = [2, 16], strides = [1, 1]} : vector<2x64xf32> to vector<2x16xf32>
    %312 = vector.extract_strided_slice %308 {offsets = [0, 48], sizes = [2, 16], strides = [1, 1]} : vector<2x64xf32> to vector<2x16xf32>
    %313 = arith.mulf %310, %296 : vector<2x16xf32>
    %314 = arith.mulf %309, %311 : vector<2x16xf32>
    %315 = arith.addf %313, %314 : vector<2x16xf32>
    %316 = math.tanh %315 : vector<2x16xf32>
    %317 = arith.mulf %312, %316 : vector<2x16xf32>
    %318 = vector.extract_strided_slice %201 {offsets = [2, 0], sizes = [2, 64], strides = [1, 1]} : vector<16x64xf32> to vector<2x64xf32>
    %cst_47 = arith.constant dense<0.000000e+00> : vector<2x64xf32>
    %319 = tpu.matmul %317, %200, %cst_47 {dimension_numbers = #tpu.dot_dimension_numbers<[1], [0], [0], [1], [0, 0, 1, 1], [], []>} : vector<2x16xf32>, vector<16x64xf32>, vector<2x64xf32> -> vector<2x64xf32>
    %320 = arith.addf %318, %319 : vector<2x64xf32>
    %321 = math.tanh %320 : vector<2x64xf32>
    %322 = arith.negf %320 : vector<2x64xf32>
    %323 = math.exp %322 : vector<2x64xf32>
    %cst_48 = arith.constant 1.000000e+00 : f32
    %324 = vector.broadcast %cst_48 : f32 to vector<2x64xf32>
    %325 = arith.addf %324, %323 : vector<2x64xf32>
    %326 = arith.divf %324, %325 : vector<2x64xf32>
    %327 = arith.select %34, %321, %326 : vector<2x64xi1>, vector<2x64xf32>
    %328 = vector.extract_strided_slice %327 {offsets = [0, 0], sizes = [2, 16], strides = [1, 1]} : vector<2x64xf32> to vector<2x16xf32>
    %329 = vector.extract_strided_slice %327 {offsets = [0, 16], sizes = [2, 16], strides = [1, 1]} : vector<2x64xf32> to vector<2x16xf32>
    %330 = vector.extract_strided_slice %327 {offsets = [0, 32], sizes = [2, 16], strides = [1, 1]} : vector<2x64xf32> to vector<2x16xf32>
    %331 = vector.extract_strided_slice %327 {offsets = [0, 48], sizes = [2, 16], strides = [1, 1]} : vector<2x64xf32> to vector<2x16xf32>
    %332 = arith.mulf %329, %315 : vector<2x16xf32>
    %333 = arith.mulf %328, %330 : vector<2x16xf32>
    %334 = arith.addf %332, %333 : vector<2x16xf32>
    %335 = math.tanh %334 : vector<2x16xf32>
    %336 = arith.mulf %331, %335 : vector<2x16xf32>
    %337 = vector.extract_strided_slice %201 {offsets = [0, 0], sizes = [2, 64], strides = [1, 1]} : vector<16x64xf32> to vector<2x64xf32>
    %cst_49 = arith.constant dense<0.000000e+00> : vector<2x64xf32>
    %338 = tpu.matmul %336, %200, %cst_49 {dimension_numbers = #tpu.dot_dimension_numbers<[1], [0], [0], [1], [0, 0, 1, 1], [], []>} : vector<2x16xf32>, vector<16x64xf32>, vector<2x64xf32> -> vector<2x64xf32>
    %339 = arith.addf %337, %338 : vector<2x64xf32>
    %340 = math.tanh %339 : vector<2x64xf32>
    %341 = arith.negf %339 : vector<2x64xf32>
    %342 = math.exp %341 : vector<2x64xf32>
    %cst_50 = arith.constant 1.000000e+00 : f32
    %343 = vector.broadcast %cst_50 : f32 to vector<2x64xf32>
    %344 = arith.addf %343, %342 : vector<2x64xf32>
    %345 = arith.divf %343, %344 : vector<2x64xf32>
    %346 = arith.select %34, %340, %345 : vector<2x64xi1>, vector<2x64xf32>
    %347 = vector.extract_strided_slice %346 {offsets = [0, 0], sizes = [2, 16], strides = [1, 1]} : vector<2x64xf32> to vector<2x16xf32>
    %348 = vector.extract_strided_slice %346 {offsets = [0, 16], sizes = [2, 16], strides = [1, 1]} : vector<2x64xf32> to vector<2x16xf32>
    %349 = vector.extract_strided_slice %346 {offsets = [0, 32], sizes = [2, 16], strides = [1, 1]} : vector<2x64xf32> to vector<2x16xf32>
    %350 = vector.extract_strided_slice %346 {offsets = [0, 48], sizes = [2, 16], strides = [1, 1]} : vector<2x64xf32> to vector<2x16xf32>
    %351 = arith.mulf %348, %334 : vector<2x16xf32>
    %352 = arith.mulf %347, %349 : vector<2x16xf32>
    %353 = arith.addf %351, %352 : vector<2x16xf32>
    %354 = math.tanh %353 : vector<2x16xf32>
    %355 = arith.mulf %350, %354 : vector<2x16xf32>
    %356 = tpu.concatenate %65, %355 in 1 : vector<2x16xf32>, vector<2x16xf32> -> vector<2x32xf32>
    %357 = tpu.concatenate %84, %336 in 1 : vector<2x16xf32>, vector<2x16xf32> -> vector<2x32xf32>
    %358 = tpu.concatenate %103, %317 in 1 : vector<2x16xf32>, vector<2x16xf32> -> vector<2x32xf32>
    %359 = tpu.concatenate %122, %298 in 1 : vector<2x16xf32>, vector<2x16xf32> -> vector<2x32xf32>
    %360 = tpu.concatenate %141, %279 in 1 : vector<2x16xf32>, vector<2x16xf32> -> vector<2x32xf32>
    %361 = tpu.concatenate %160, %260 in 1 : vector<2x16xf32>, vector<2x16xf32> -> vector<2x32xf32>
    %362 = tpu.concatenate %179, %241 in 1 : vector<2x16xf32>, vector<2x16xf32> -> vector<2x32xf32>
    %363 = tpu.concatenate %198, %222 in 1 : vector<2x16xf32>, vector<2x16xf32> -> vector<2x32xf32>
    %364 = tpu.concatenate %356, %357, %358, %359, %360, %361, %362, %363 in 0 : vector<2x32xf32>, vector<2x32xf32>, vector<2x32xf32>, vector<2x32xf32>, vector<2x32xf32>, vector<2x32xf32>, vector<2x32xf32>, vector<2x32xf32> -> vector<16x32xf32>
    %c1_51 = arith.constant 1 : index
    %c0_52 = arith.constant 0 : index
    %c0_53 = arith.constant 0 : index
    %365 = vector.load %arg2[%c1_51, %c0_52, %c0_53] : memref<2x32x128xf32, #tpu.memory_space<vmem>>, vector<1x32x128xf32>
    %366 = vector.shape_cast %365 : vector<1x32x128xf32> to vector<32x128xf32>
    %cst_54 = arith.constant dense<0.000000e+00> : vector<16x128xf32>
    %367 = tpu.matmul %364, %366, %cst_54 {dimension_numbers = #tpu.dot_dimension_numbers<[1], [0], [0], [1], [0, 0, 1, 1], [], []>} : vector<16x32xf32>, vector<32x128xf32>, vector<16x128xf32> -> vector<16x128xf32>
    %c1_55 = arith.constant 1 : index
    %c0_56 = arith.constant 0 : index
    %c0_57 = arith.constant 0 : index
    %368 = vector.load %arg4[%c1_55, %c0_56, %c0_57] : memref<2x1x128xf32, #tpu.memory_space<vmem>>, vector<1x1x128xf32>
    %369 = vector.shape_cast %368 : vector<1x1x128xf32> to vector<1x128xf32>
    %370 = vector.broadcast %369 : vector<1x128xf32> to vector<16x128xf32>
    %371 = arith.addf %367, %370 : vector<16x128xf32>
    %c2 = arith.constant 2 : index
    %c0_58 = arith.constant 0 : index
    %c0_59 = arith.constant 0 : index
    %372 = vector.load %arg3[%c2, %c0_58, %c0_59] : memref<4x16x64xf32, #tpu.memory_space<vmem>>, vector<1x16x64xf32>
    %373 = vector.shape_cast %372 : vector<1x16x64xf32> to vector<16x64xf32>
    %374 = vector.extract_strided_slice %371 {offsets = [0, 0], sizes = [16, 64], strides = [1, 1]} : vector<16x128xf32> to vector<16x64xf32>
    %cst_60 = arith.constant 0.000000e+00 : f32
    %375 = vector.broadcast %cst_60 : f32 to vector<2x16xf32>
    %cst_61 = arith.constant 0.000000e+00 : f32
    %376 = vector.broadcast %cst_61 : f32 to vector<2x16xf32>
    %377 = vector.extract_strided_slice %374 {offsets = [0, 0], sizes = [2, 64], strides = [1, 1]} : vector<16x64xf32> to vector<2x64xf32>
    %cst_62 = arith.constant dense<0.000000e+00> : vector<2x64xf32>
    %378 = tpu.matmul %375, %373, %cst_62 {dimension_numbers = #tpu.dot_dimension_numbers<[1], [0], [0], [1], [0, 0, 1, 1], [], []>} : vector<2x16xf32>, vector<16x64xf32>, vector<2x64xf32> -> vector<2x64xf32>
    %379 = arith.addf %377, %378 : vector<2x64xf32>
    %380 = math.tanh %379 : vector<2x64xf32>
    %381 = arith.negf %379 : vector<2x64xf32>
    %382 = math.exp %381 : vector<2x64xf32>
    %cst_63 = arith.constant 1.000000e+00 : f32
    %383 = vector.broadcast %cst_63 : f32 to vector<2x64xf32>
    %384 = arith.addf %383, %382 : vector<2x64xf32>
    %385 = arith.divf %383, %384 : vector<2x64xf32>
    %386 = arith.select %34, %380, %385 : vector<2x64xi1>, vector<2x64xf32>
    %387 = vector.extract_strided_slice %386 {offsets = [0, 0], sizes = [2, 16], strides = [1, 1]} : vector<2x64xf32> to vector<2x16xf32>
    %388 = vector.extract_strided_slice %386 {offsets = [0, 16], sizes = [2, 16], strides = [1, 1]} : vector<2x64xf32> to vector<2x16xf32>
    %389 = vector.extract_strided_slice %386 {offsets = [0, 32], sizes = [2, 16], strides = [1, 1]} : vector<2x64xf32> to vector<2x16xf32>
    %390 = vector.extract_strided_slice %386 {offsets = [0, 48], sizes = [2, 16], strides = [1, 1]} : vector<2x64xf32> to vector<2x16xf32>
    %391 = arith.mulf %388, %376 : vector<2x16xf32>
    %392 = arith.mulf %387, %389 : vector<2x16xf32>
    %393 = arith.addf %391, %392 : vector<2x16xf32>
    %394 = math.tanh %393 : vector<2x16xf32>
    %395 = arith.mulf %390, %394 : vector<2x16xf32>
    %396 = vector.extract_strided_slice %374 {offsets = [2, 0], sizes = [2, 64], strides = [1, 1]} : vector<16x64xf32> to vector<2x64xf32>
    %cst_64 = arith.constant dense<0.000000e+00> : vector<2x64xf32>
    %397 = tpu.matmul %395, %373, %cst_64 {dimension_numbers = #tpu.dot_dimension_numbers<[1], [0], [0], [1], [0, 0, 1, 1], [], []>} : vector<2x16xf32>, vector<16x64xf32>, vector<2x64xf32> -> vector<2x64xf32>
    %398 = arith.addf %396, %397 : vector<2x64xf32>
    %399 = math.tanh %398 : vector<2x64xf32>
    %400 = arith.negf %398 : vector<2x64xf32>
    %401 = math.exp %400 : vector<2x64xf32>
    %cst_65 = arith.constant 1.000000e+00 : f32
    %402 = vector.broadcast %cst_65 : f32 to vector<2x64xf32>
    %403 = arith.addf %402, %401 : vector<2x64xf32>
    %404 = arith.divf %402, %403 : vector<2x64xf32>
    %405 = arith.select %34, %399, %404 : vector<2x64xi1>, vector<2x64xf32>
    %406 = vector.extract_strided_slice %405 {offsets = [0, 0], sizes = [2, 16], strides = [1, 1]} : vector<2x64xf32> to vector<2x16xf32>
    %407 = vector.extract_strided_slice %405 {offsets = [0, 16], sizes = [2, 16], strides = [1, 1]} : vector<2x64xf32> to vector<2x16xf32>
    %408 = vector.extract_strided_slice %405 {offsets = [0, 32], sizes = [2, 16], strides = [1, 1]} : vector<2x64xf32> to vector<2x16xf32>
    %409 = vector.extract_strided_slice %405 {offsets = [0, 48], sizes = [2, 16], strides = [1, 1]} : vector<2x64xf32> to vector<2x16xf32>
    %410 = arith.mulf %407, %393 : vector<2x16xf32>
    %411 = arith.mulf %406, %408 : vector<2x16xf32>
    %412 = arith.addf %410, %411 : vector<2x16xf32>
    %413 = math.tanh %412 : vector<2x16xf32>
    %414 = arith.mulf %409, %413 : vector<2x16xf32>
    %415 = vector.extract_strided_slice %374 {offsets = [4, 0], sizes = [2, 64], strides = [1, 1]} : vector<16x64xf32> to vector<2x64xf32>
    %cst_66 = arith.constant dense<0.000000e+00> : vector<2x64xf32>
    %416 = tpu.matmul %414, %373, %cst_66 {dimension_numbers = #tpu.dot_dimension_numbers<[1], [0], [0], [1], [0, 0, 1, 1], [], []>} : vector<2x16xf32>, vector<16x64xf32>, vector<2x64xf32> -> vector<2x64xf32>
    %417 = arith.addf %415, %416 : vector<2x64xf32>
    %418 = math.tanh %417 : vector<2x64xf32>
    %419 = arith.negf %417 : vector<2x64xf32>
    %420 = math.exp %419 : vector<2x64xf32>
    %cst_67 = arith.constant 1.000000e+00 : f32
    %421 = vector.broadcast %cst_67 : f32 to vector<2x64xf32>
    %422 = arith.addf %421, %420 : vector<2x64xf32>
    %423 = arith.divf %421, %422 : vector<2x64xf32>
    %424 = arith.select %34, %418, %423 : vector<2x64xi1>, vector<2x64xf32>
    %425 = vector.extract_strided_slice %424 {offsets = [0, 0], sizes = [2, 16], strides = [1, 1]} : vector<2x64xf32> to vector<2x16xf32>
    %426 = vector.extract_strided_slice %424 {offsets = [0, 16], sizes = [2, 16], strides = [1, 1]} : vector<2x64xf32> to vector<2x16xf32>
    %427 = vector.extract_strided_slice %424 {offsets = [0, 32], sizes = [2, 16], strides = [1, 1]} : vector<2x64xf32> to vector<2x16xf32>
    %428 = vector.extract_strided_slice %424 {offsets = [0, 48], sizes = [2, 16], strides = [1, 1]} : vector<2x64xf32> to vector<2x16xf32>
    %429 = arith.mulf %426, %412 : vector<2x16xf32>
    %430 = arith.mulf %425, %427 : vector<2x16xf32>
    %431 = arith.addf %429, %430 : vector<2x16xf32>
    %432 = math.tanh %431 : vector<2x16xf32>
    %433 = arith.mulf %428, %432 : vector<2x16xf32>
    %434 = vector.extract_strided_slice %374 {offsets = [6, 0], sizes = [2, 64], strides = [1, 1]} : vector<16x64xf32> to vector<2x64xf32>
    %cst_68 = arith.constant dense<0.000000e+00> : vector<2x64xf32>
    %435 = tpu.matmul %433, %373, %cst_68 {dimension_numbers = #tpu.dot_dimension_numbers<[1], [0], [0], [1], [0, 0, 1, 1], [], []>} : vector<2x16xf32>, vector<16x64xf32>, vector<2x64xf32> -> vector<2x64xf32>
    %436 = arith.addf %434, %435 : vector<2x64xf32>
    %437 = math.tanh %436 : vector<2x64xf32>
    %438 = arith.negf %436 : vector<2x64xf32>
    %439 = math.exp %438 : vector<2x64xf32>
    %cst_69 = arith.constant 1.000000e+00 : f32
    %440 = vector.broadcast %cst_69 : f32 to vector<2x64xf32>
    %441 = arith.addf %440, %439 : vector<2x64xf32>
    %442 = arith.divf %440, %441 : vector<2x64xf32>
    %443 = arith.select %34, %437, %442 : vector<2x64xi1>, vector<2x64xf32>
    %444 = vector.extract_strided_slice %443 {offsets = [0, 0], sizes = [2, 16], strides = [1, 1]} : vector<2x64xf32> to vector<2x16xf32>
    %445 = vector.extract_strided_slice %443 {offsets = [0, 16], sizes = [2, 16], strides = [1, 1]} : vector<2x64xf32> to vector<2x16xf32>
    %446 = vector.extract_strided_slice %443 {offsets = [0, 32], sizes = [2, 16], strides = [1, 1]} : vector<2x64xf32> to vector<2x16xf32>
    %447 = vector.extract_strided_slice %443 {offsets = [0, 48], sizes = [2, 16], strides = [1, 1]} : vector<2x64xf32> to vector<2x16xf32>
    %448 = arith.mulf %445, %431 : vector<2x16xf32>
    %449 = arith.mulf %444, %446 : vector<2x16xf32>
    %450 = arith.addf %448, %449 : vector<2x16xf32>
    %451 = math.tanh %450 : vector<2x16xf32>
    %452 = arith.mulf %447, %451 : vector<2x16xf32>
    %453 = vector.extract_strided_slice %374 {offsets = [8, 0], sizes = [2, 64], strides = [1, 1]} : vector<16x64xf32> to vector<2x64xf32>
    %cst_70 = arith.constant dense<0.000000e+00> : vector<2x64xf32>
    %454 = tpu.matmul %452, %373, %cst_70 {dimension_numbers = #tpu.dot_dimension_numbers<[1], [0], [0], [1], [0, 0, 1, 1], [], []>} : vector<2x16xf32>, vector<16x64xf32>, vector<2x64xf32> -> vector<2x64xf32>
    %455 = arith.addf %453, %454 : vector<2x64xf32>
    %456 = math.tanh %455 : vector<2x64xf32>
    %457 = arith.negf %455 : vector<2x64xf32>
    %458 = math.exp %457 : vector<2x64xf32>
    %cst_71 = arith.constant 1.000000e+00 : f32
    %459 = vector.broadcast %cst_71 : f32 to vector<2x64xf32>
    %460 = arith.addf %459, %458 : vector<2x64xf32>
    %461 = arith.divf %459, %460 : vector<2x64xf32>
    %462 = arith.select %34, %456, %461 : vector<2x64xi1>, vector<2x64xf32>
    %463 = vector.extract_strided_slice %462 {offsets = [0, 0], sizes = [2, 16], strides = [1, 1]} : vector<2x64xf32> to vector<2x16xf32>
    %464 = vector.extract_strided_slice %462 {offsets = [0, 16], sizes = [2, 16], strides = [1, 1]} : vector<2x64xf32> to vector<2x16xf32>
    %465 = vector.extract_strided_slice %462 {offsets = [0, 32], sizes = [2, 16], strides = [1, 1]} : vector<2x64xf32> to vector<2x16xf32>
    %466 = vector.extract_strided_slice %462 {offsets = [0, 48], sizes = [2, 16], strides = [1, 1]} : vector<2x64xf32> to vector<2x16xf32>
    %467 = arith.mulf %464, %450 : vector<2x16xf32>
    %468 = arith.mulf %463, %465 : vector<2x16xf32>
    %469 = arith.addf %467, %468 : vector<2x16xf32>
    %470 = math.tanh %469 : vector<2x16xf32>
    %471 = arith.mulf %466, %470 : vector<2x16xf32>
    %472 = vector.extract_strided_slice %374 {offsets = [10, 0], sizes = [2, 64], strides = [1, 1]} : vector<16x64xf32> to vector<2x64xf32>
    %cst_72 = arith.constant dense<0.000000e+00> : vector<2x64xf32>
    %473 = tpu.matmul %471, %373, %cst_72 {dimension_numbers = #tpu.dot_dimension_numbers<[1], [0], [0], [1], [0, 0, 1, 1], [], []>} : vector<2x16xf32>, vector<16x64xf32>, vector<2x64xf32> -> vector<2x64xf32>
    %474 = arith.addf %472, %473 : vector<2x64xf32>
    %475 = math.tanh %474 : vector<2x64xf32>
    %476 = arith.negf %474 : vector<2x64xf32>
    %477 = math.exp %476 : vector<2x64xf32>
    %cst_73 = arith.constant 1.000000e+00 : f32
    %478 = vector.broadcast %cst_73 : f32 to vector<2x64xf32>
    %479 = arith.addf %478, %477 : vector<2x64xf32>
    %480 = arith.divf %478, %479 : vector<2x64xf32>
    %481 = arith.select %34, %475, %480 : vector<2x64xi1>, vector<2x64xf32>
    %482 = vector.extract_strided_slice %481 {offsets = [0, 0], sizes = [2, 16], strides = [1, 1]} : vector<2x64xf32> to vector<2x16xf32>
    %483 = vector.extract_strided_slice %481 {offsets = [0, 16], sizes = [2, 16], strides = [1, 1]} : vector<2x64xf32> to vector<2x16xf32>
    %484 = vector.extract_strided_slice %481 {offsets = [0, 32], sizes = [2, 16], strides = [1, 1]} : vector<2x64xf32> to vector<2x16xf32>
    %485 = vector.extract_strided_slice %481 {offsets = [0, 48], sizes = [2, 16], strides = [1, 1]} : vector<2x64xf32> to vector<2x16xf32>
    %486 = arith.mulf %483, %469 : vector<2x16xf32>
    %487 = arith.mulf %482, %484 : vector<2x16xf32>
    %488 = arith.addf %486, %487 : vector<2x16xf32>
    %489 = math.tanh %488 : vector<2x16xf32>
    %490 = arith.mulf %485, %489 : vector<2x16xf32>
    %491 = vector.extract_strided_slice %374 {offsets = [12, 0], sizes = [2, 64], strides = [1, 1]} : vector<16x64xf32> to vector<2x64xf32>
    %cst_74 = arith.constant dense<0.000000e+00> : vector<2x64xf32>
    %492 = tpu.matmul %490, %373, %cst_74 {dimension_numbers = #tpu.dot_dimension_numbers<[1], [0], [0], [1], [0, 0, 1, 1], [], []>} : vector<2x16xf32>, vector<16x64xf32>, vector<2x64xf32> -> vector<2x64xf32>
    %493 = arith.addf %491, %492 : vector<2x64xf32>
    %494 = math.tanh %493 : vector<2x64xf32>
    %495 = arith.negf %493 : vector<2x64xf32>
    %496 = math.exp %495 : vector<2x64xf32>
    %cst_75 = arith.constant 1.000000e+00 : f32
    %497 = vector.broadcast %cst_75 : f32 to vector<2x64xf32>
    %498 = arith.addf %497, %496 : vector<2x64xf32>
    %499 = arith.divf %497, %498 : vector<2x64xf32>
    %500 = arith.select %34, %494, %499 : vector<2x64xi1>, vector<2x64xf32>
    %501 = vector.extract_strided_slice %500 {offsets = [0, 0], sizes = [2, 16], strides = [1, 1]} : vector<2x64xf32> to vector<2x16xf32>
    %502 = vector.extract_strided_slice %500 {offsets = [0, 16], sizes = [2, 16], strides = [1, 1]} : vector<2x64xf32> to vector<2x16xf32>
    %503 = vector.extract_strided_slice %500 {offsets = [0, 32], sizes = [2, 16], strides = [1, 1]} : vector<2x64xf32> to vector<2x16xf32>
    %504 = vector.extract_strided_slice %500 {offsets = [0, 48], sizes = [2, 16], strides = [1, 1]} : vector<2x64xf32> to vector<2x16xf32>
    %505 = arith.mulf %502, %488 : vector<2x16xf32>
    %506 = arith.mulf %501, %503 : vector<2x16xf32>
    %507 = arith.addf %505, %506 : vector<2x16xf32>
    %508 = math.tanh %507 : vector<2x16xf32>
    %509 = arith.mulf %504, %508 : vector<2x16xf32>
    %510 = vector.extract_strided_slice %374 {offsets = [14, 0], sizes = [2, 64], strides = [1, 1]} : vector<16x64xf32> to vector<2x64xf32>
    %cst_76 = arith.constant dense<0.000000e+00> : vector<2x64xf32>
    %511 = tpu.matmul %509, %373, %cst_76 {dimension_numbers = #tpu.dot_dimension_numbers<[1], [0], [0], [1], [0, 0, 1, 1], [], []>} : vector<2x16xf32>, vector<16x64xf32>, vector<2x64xf32> -> vector<2x64xf32>
    %512 = arith.addf %510, %511 : vector<2x64xf32>
    %513 = math.tanh %512 : vector<2x64xf32>
    %514 = arith.negf %512 : vector<2x64xf32>
    %515 = math.exp %514 : vector<2x64xf32>
    %cst_77 = arith.constant 1.000000e+00 : f32
    %516 = vector.broadcast %cst_77 : f32 to vector<2x64xf32>
    %517 = arith.addf %516, %515 : vector<2x64xf32>
    %518 = arith.divf %516, %517 : vector<2x64xf32>
    %519 = arith.select %34, %513, %518 : vector<2x64xi1>, vector<2x64xf32>
    %520 = vector.extract_strided_slice %519 {offsets = [0, 0], sizes = [2, 16], strides = [1, 1]} : vector<2x64xf32> to vector<2x16xf32>
    %521 = vector.extract_strided_slice %519 {offsets = [0, 16], sizes = [2, 16], strides = [1, 1]} : vector<2x64xf32> to vector<2x16xf32>
    %522 = vector.extract_strided_slice %519 {offsets = [0, 32], sizes = [2, 16], strides = [1, 1]} : vector<2x64xf32> to vector<2x16xf32>
    %523 = vector.extract_strided_slice %519 {offsets = [0, 48], sizes = [2, 16], strides = [1, 1]} : vector<2x64xf32> to vector<2x16xf32>
    %524 = arith.mulf %521, %507 : vector<2x16xf32>
    %525 = arith.mulf %520, %522 : vector<2x16xf32>
    %526 = arith.addf %524, %525 : vector<2x16xf32>
    %527 = math.tanh %526 : vector<2x16xf32>
    %528 = arith.mulf %523, %527 : vector<2x16xf32>
    %c3 = arith.constant 3 : index
    %c0_78 = arith.constant 0 : index
    %c0_79 = arith.constant 0 : index
    %529 = vector.load %arg3[%c3, %c0_78, %c0_79] : memref<4x16x64xf32, #tpu.memory_space<vmem>>, vector<1x16x64xf32>
    %530 = vector.shape_cast %529 : vector<1x16x64xf32> to vector<16x64xf32>
    %531 = vector.extract_strided_slice %371 {offsets = [0, 64], sizes = [16, 64], strides = [1, 1]} : vector<16x128xf32> to vector<16x64xf32>
    %cst_80 = arith.constant 0.000000e+00 : f32
    %532 = vector.broadcast %cst_80 : f32 to vector<2x16xf32>
    %cst_81 = arith.constant 0.000000e+00 : f32
    %533 = vector.broadcast %cst_81 : f32 to vector<2x16xf32>
    %534 = vector.extract_strided_slice %531 {offsets = [14, 0], sizes = [2, 64], strides = [1, 1]} : vector<16x64xf32> to vector<2x64xf32>
    %cst_82 = arith.constant dense<0.000000e+00> : vector<2x64xf32>
    %535 = tpu.matmul %532, %530, %cst_82 {dimension_numbers = #tpu.dot_dimension_numbers<[1], [0], [0], [1], [0, 0, 1, 1], [], []>} : vector<2x16xf32>, vector<16x64xf32>, vector<2x64xf32> -> vector<2x64xf32>
    %536 = arith.addf %534, %535 : vector<2x64xf32>
    %537 = math.tanh %536 : vector<2x64xf32>
    %538 = arith.negf %536 : vector<2x64xf32>
    %539 = math.exp %538 : vector<2x64xf32>
    %cst_83 = arith.constant 1.000000e+00 : f32
    %540 = vector.broadcast %cst_83 : f32 to vector<2x64xf32>
    %541 = arith.addf %540, %539 : vector<2x64xf32>
    %542 = arith.divf %540, %541 : vector<2x64xf32>
    %543 = arith.select %34, %537, %542 : vector<2x64xi1>, vector<2x64xf32>
    %544 = vector.extract_strided_slice %543 {offsets = [0, 0], sizes = [2, 16], strides = [1, 1]} : vector<2x64xf32> to vector<2x16xf32>
    %545 = vector.extract_strided_slice %543 {offsets = [0, 16], sizes = [2, 16], strides = [1, 1]} : vector<2x64xf32> to vector<2x16xf32>
    %546 = vector.extract_strided_slice %543 {offsets = [0, 32], sizes = [2, 16], strides = [1, 1]} : vector<2x64xf32> to vector<2x16xf32>
    %547 = vector.extract_strided_slice %543 {offsets = [0, 48], sizes = [2, 16], strides = [1, 1]} : vector<2x64xf32> to vector<2x16xf32>
    %548 = arith.mulf %545, %533 : vector<2x16xf32>
    %549 = arith.mulf %544, %546 : vector<2x16xf32>
    %550 = arith.addf %548, %549 : vector<2x16xf32>
    %551 = math.tanh %550 : vector<2x16xf32>
    %552 = arith.mulf %547, %551 : vector<2x16xf32>
    %553 = vector.extract_strided_slice %531 {offsets = [12, 0], sizes = [2, 64], strides = [1, 1]} : vector<16x64xf32> to vector<2x64xf32>
    %cst_84 = arith.constant dense<0.000000e+00> : vector<2x64xf32>
    %554 = tpu.matmul %552, %530, %cst_84 {dimension_numbers = #tpu.dot_dimension_numbers<[1], [0], [0], [1], [0, 0, 1, 1], [], []>} : vector<2x16xf32>, vector<16x64xf32>, vector<2x64xf32> -> vector<2x64xf32>
    %555 = arith.addf %553, %554 : vector<2x64xf32>
    %556 = math.tanh %555 : vector<2x64xf32>
    %557 = arith.negf %555 : vector<2x64xf32>
    %558 = math.exp %557 : vector<2x64xf32>
    %cst_85 = arith.constant 1.000000e+00 : f32
    %559 = vector.broadcast %cst_85 : f32 to vector<2x64xf32>
    %560 = arith.addf %559, %558 : vector<2x64xf32>
    %561 = arith.divf %559, %560 : vector<2x64xf32>
    %562 = arith.select %34, %556, %561 : vector<2x64xi1>, vector<2x64xf32>
    %563 = vector.extract_strided_slice %562 {offsets = [0, 0], sizes = [2, 16], strides = [1, 1]} : vector<2x64xf32> to vector<2x16xf32>
    %564 = vector.extract_strided_slice %562 {offsets = [0, 16], sizes = [2, 16], strides = [1, 1]} : vector<2x64xf32> to vector<2x16xf32>
    %565 = vector.extract_strided_slice %562 {offsets = [0, 32], sizes = [2, 16], strides = [1, 1]} : vector<2x64xf32> to vector<2x16xf32>
    %566 = vector.extract_strided_slice %562 {offsets = [0, 48], sizes = [2, 16], strides = [1, 1]} : vector<2x64xf32> to vector<2x16xf32>
    %567 = arith.mulf %564, %550 : vector<2x16xf32>
    %568 = arith.mulf %563, %565 : vector<2x16xf32>
    %569 = arith.addf %567, %568 : vector<2x16xf32>
    %570 = math.tanh %569 : vector<2x16xf32>
    %571 = arith.mulf %566, %570 : vector<2x16xf32>
    %572 = vector.extract_strided_slice %531 {offsets = [10, 0], sizes = [2, 64], strides = [1, 1]} : vector<16x64xf32> to vector<2x64xf32>
    %cst_86 = arith.constant dense<0.000000e+00> : vector<2x64xf32>
    %573 = tpu.matmul %571, %530, %cst_86 {dimension_numbers = #tpu.dot_dimension_numbers<[1], [0], [0], [1], [0, 0, 1, 1], [], []>} : vector<2x16xf32>, vector<16x64xf32>, vector<2x64xf32> -> vector<2x64xf32>
    %574 = arith.addf %572, %573 : vector<2x64xf32>
    %575 = math.tanh %574 : vector<2x64xf32>
    %576 = arith.negf %574 : vector<2x64xf32>
    %577 = math.exp %576 : vector<2x64xf32>
    %cst_87 = arith.constant 1.000000e+00 : f32
    %578 = vector.broadcast %cst_87 : f32 to vector<2x64xf32>
    %579 = arith.addf %578, %577 : vector<2x64xf32>
    %580 = arith.divf %578, %579 : vector<2x64xf32>
    %581 = arith.select %34, %575, %580 : vector<2x64xi1>, vector<2x64xf32>
    %582 = vector.extract_strided_slice %581 {offsets = [0, 0], sizes = [2, 16], strides = [1, 1]} : vector<2x64xf32> to vector<2x16xf32>
    %583 = vector.extract_strided_slice %581 {offsets = [0, 16], sizes = [2, 16], strides = [1, 1]} : vector<2x64xf32> to vector<2x16xf32>
    %584 = vector.extract_strided_slice %581 {offsets = [0, 32], sizes = [2, 16], strides = [1, 1]} : vector<2x64xf32> to vector<2x16xf32>
    %585 = vector.extract_strided_slice %581 {offsets = [0, 48], sizes = [2, 16], strides = [1, 1]} : vector<2x64xf32> to vector<2x16xf32>
    %586 = arith.mulf %583, %569 : vector<2x16xf32>
    %587 = arith.mulf %582, %584 : vector<2x16xf32>
    %588 = arith.addf %586, %587 : vector<2x16xf32>
    %589 = math.tanh %588 : vector<2x16xf32>
    %590 = arith.mulf %585, %589 : vector<2x16xf32>
    %591 = vector.extract_strided_slice %531 {offsets = [8, 0], sizes = [2, 64], strides = [1, 1]} : vector<16x64xf32> to vector<2x64xf32>
    %cst_88 = arith.constant dense<0.000000e+00> : vector<2x64xf32>
    %592 = tpu.matmul %590, %530, %cst_88 {dimension_numbers = #tpu.dot_dimension_numbers<[1], [0], [0], [1], [0, 0, 1, 1], [], []>} : vector<2x16xf32>, vector<16x64xf32>, vector<2x64xf32> -> vector<2x64xf32>
    %593 = arith.addf %591, %592 : vector<2x64xf32>
    %594 = math.tanh %593 : vector<2x64xf32>
    %595 = arith.negf %593 : vector<2x64xf32>
    %596 = math.exp %595 : vector<2x64xf32>
    %cst_89 = arith.constant 1.000000e+00 : f32
    %597 = vector.broadcast %cst_89 : f32 to vector<2x64xf32>
    %598 = arith.addf %597, %596 : vector<2x64xf32>
    %599 = arith.divf %597, %598 : vector<2x64xf32>
    %600 = arith.select %34, %594, %599 : vector<2x64xi1>, vector<2x64xf32>
    %601 = vector.extract_strided_slice %600 {offsets = [0, 0], sizes = [2, 16], strides = [1, 1]} : vector<2x64xf32> to vector<2x16xf32>
    %602 = vector.extract_strided_slice %600 {offsets = [0, 16], sizes = [2, 16], strides = [1, 1]} : vector<2x64xf32> to vector<2x16xf32>
    %603 = vector.extract_strided_slice %600 {offsets = [0, 32], sizes = [2, 16], strides = [1, 1]} : vector<2x64xf32> to vector<2x16xf32>
    %604 = vector.extract_strided_slice %600 {offsets = [0, 48], sizes = [2, 16], strides = [1, 1]} : vector<2x64xf32> to vector<2x16xf32>
    %605 = arith.mulf %602, %588 : vector<2x16xf32>
    %606 = arith.mulf %601, %603 : vector<2x16xf32>
    %607 = arith.addf %605, %606 : vector<2x16xf32>
    %608 = math.tanh %607 : vector<2x16xf32>
    %609 = arith.mulf %604, %608 : vector<2x16xf32>
    %610 = vector.extract_strided_slice %531 {offsets = [6, 0], sizes = [2, 64], strides = [1, 1]} : vector<16x64xf32> to vector<2x64xf32>
    %cst_90 = arith.constant dense<0.000000e+00> : vector<2x64xf32>
    %611 = tpu.matmul %609, %530, %cst_90 {dimension_numbers = #tpu.dot_dimension_numbers<[1], [0], [0], [1], [0, 0, 1, 1], [], []>} : vector<2x16xf32>, vector<16x64xf32>, vector<2x64xf32> -> vector<2x64xf32>
    %612 = arith.addf %610, %611 : vector<2x64xf32>
    %613 = math.tanh %612 : vector<2x64xf32>
    %614 = arith.negf %612 : vector<2x64xf32>
    %615 = math.exp %614 : vector<2x64xf32>
    %cst_91 = arith.constant 1.000000e+00 : f32
    %616 = vector.broadcast %cst_91 : f32 to vector<2x64xf32>
    %617 = arith.addf %616, %615 : vector<2x64xf32>
    %618 = arith.divf %616, %617 : vector<2x64xf32>
    %619 = arith.select %34, %613, %618 : vector<2x64xi1>, vector<2x64xf32>
    %620 = vector.extract_strided_slice %619 {offsets = [0, 0], sizes = [2, 16], strides = [1, 1]} : vector<2x64xf32> to vector<2x16xf32>
    %621 = vector.extract_strided_slice %619 {offsets = [0, 16], sizes = [2, 16], strides = [1, 1]} : vector<2x64xf32> to vector<2x16xf32>
    %622 = vector.extract_strided_slice %619 {offsets = [0, 32], sizes = [2, 16], strides = [1, 1]} : vector<2x64xf32> to vector<2x16xf32>
    %623 = vector.extract_strided_slice %619 {offsets = [0, 48], sizes = [2, 16], strides = [1, 1]} : vector<2x64xf32> to vector<2x16xf32>
    %624 = arith.mulf %621, %607 : vector<2x16xf32>
    %625 = arith.mulf %620, %622 : vector<2x16xf32>
    %626 = arith.addf %624, %625 : vector<2x16xf32>
    %627 = math.tanh %626 : vector<2x16xf32>
    %628 = arith.mulf %623, %627 : vector<2x16xf32>
    %629 = vector.extract_strided_slice %531 {offsets = [4, 0], sizes = [2, 64], strides = [1, 1]} : vector<16x64xf32> to vector<2x64xf32>
    %cst_92 = arith.constant dense<0.000000e+00> : vector<2x64xf32>
    %630 = tpu.matmul %628, %530, %cst_92 {dimension_numbers = #tpu.dot_dimension_numbers<[1], [0], [0], [1], [0, 0, 1, 1], [], []>} : vector<2x16xf32>, vector<16x64xf32>, vector<2x64xf32> -> vector<2x64xf32>
    %631 = arith.addf %629, %630 : vector<2x64xf32>
    %632 = math.tanh %631 : vector<2x64xf32>
    %633 = arith.negf %631 : vector<2x64xf32>
    %634 = math.exp %633 : vector<2x64xf32>
    %cst_93 = arith.constant 1.000000e+00 : f32
    %635 = vector.broadcast %cst_93 : f32 to vector<2x64xf32>
    %636 = arith.addf %635, %634 : vector<2x64xf32>
    %637 = arith.divf %635, %636 : vector<2x64xf32>
    %638 = arith.select %34, %632, %637 : vector<2x64xi1>, vector<2x64xf32>
    %639 = vector.extract_strided_slice %638 {offsets = [0, 0], sizes = [2, 16], strides = [1, 1]} : vector<2x64xf32> to vector<2x16xf32>
    %640 = vector.extract_strided_slice %638 {offsets = [0, 16], sizes = [2, 16], strides = [1, 1]} : vector<2x64xf32> to vector<2x16xf32>
    %641 = vector.extract_strided_slice %638 {offsets = [0, 32], sizes = [2, 16], strides = [1, 1]} : vector<2x64xf32> to vector<2x16xf32>
    %642 = vector.extract_strided_slice %638 {offsets = [0, 48], sizes = [2, 16], strides = [1, 1]} : vector<2x64xf32> to vector<2x16xf32>
    %643 = arith.mulf %640, %626 : vector<2x16xf32>
    %644 = arith.mulf %639, %641 : vector<2x16xf32>
    %645 = arith.addf %643, %644 : vector<2x16xf32>
    %646 = math.tanh %645 : vector<2x16xf32>
    %647 = arith.mulf %642, %646 : vector<2x16xf32>
    %648 = vector.extract_strided_slice %531 {offsets = [2, 0], sizes = [2, 64], strides = [1, 1]} : vector<16x64xf32> to vector<2x64xf32>
    %cst_94 = arith.constant dense<0.000000e+00> : vector<2x64xf32>
    %649 = tpu.matmul %647, %530, %cst_94 {dimension_numbers = #tpu.dot_dimension_numbers<[1], [0], [0], [1], [0, 0, 1, 1], [], []>} : vector<2x16xf32>, vector<16x64xf32>, vector<2x64xf32> -> vector<2x64xf32>
    %650 = arith.addf %648, %649 : vector<2x64xf32>
    %651 = math.tanh %650 : vector<2x64xf32>
    %652 = arith.negf %650 : vector<2x64xf32>
    %653 = math.exp %652 : vector<2x64xf32>
    %cst_95 = arith.constant 1.000000e+00 : f32
    %654 = vector.broadcast %cst_95 : f32 to vector<2x64xf32>
    %655 = arith.addf %654, %653 : vector<2x64xf32>
    %656 = arith.divf %654, %655 : vector<2x64xf32>
    %657 = arith.select %34, %651, %656 : vector<2x64xi1>, vector<2x64xf32>
    %658 = vector.extract_strided_slice %657 {offsets = [0, 0], sizes = [2, 16], strides = [1, 1]} : vector<2x64xf32> to vector<2x16xf32>
    %659 = vector.extract_strided_slice %657 {offsets = [0, 16], sizes = [2, 16], strides = [1, 1]} : vector<2x64xf32> to vector<2x16xf32>
    %660 = vector.extract_strided_slice %657 {offsets = [0, 32], sizes = [2, 16], strides = [1, 1]} : vector<2x64xf32> to vector<2x16xf32>
    %661 = vector.extract_strided_slice %657 {offsets = [0, 48], sizes = [2, 16], strides = [1, 1]} : vector<2x64xf32> to vector<2x16xf32>
    %662 = arith.mulf %659, %645 : vector<2x16xf32>
    %663 = arith.mulf %658, %660 : vector<2x16xf32>
    %664 = arith.addf %662, %663 : vector<2x16xf32>
    %665 = math.tanh %664 : vector<2x16xf32>
    %666 = arith.mulf %661, %665 : vector<2x16xf32>
    %667 = vector.extract_strided_slice %531 {offsets = [0, 0], sizes = [2, 64], strides = [1, 1]} : vector<16x64xf32> to vector<2x64xf32>
    %cst_96 = arith.constant dense<0.000000e+00> : vector<2x64xf32>
    %668 = tpu.matmul %666, %530, %cst_96 {dimension_numbers = #tpu.dot_dimension_numbers<[1], [0], [0], [1], [0, 0, 1, 1], [], []>} : vector<2x16xf32>, vector<16x64xf32>, vector<2x64xf32> -> vector<2x64xf32>
    %669 = arith.addf %667, %668 : vector<2x64xf32>
    %670 = math.tanh %669 : vector<2x64xf32>
    %671 = arith.negf %669 : vector<2x64xf32>
    %672 = math.exp %671 : vector<2x64xf32>
    %cst_97 = arith.constant 1.000000e+00 : f32
    %673 = vector.broadcast %cst_97 : f32 to vector<2x64xf32>
    %674 = arith.addf %673, %672 : vector<2x64xf32>
    %675 = arith.divf %673, %674 : vector<2x64xf32>
    %676 = arith.select %34, %670, %675 : vector<2x64xi1>, vector<2x64xf32>
    %677 = vector.extract_strided_slice %676 {offsets = [0, 0], sizes = [2, 16], strides = [1, 1]} : vector<2x64xf32> to vector<2x16xf32>
    %678 = vector.extract_strided_slice %676 {offsets = [0, 16], sizes = [2, 16], strides = [1, 1]} : vector<2x64xf32> to vector<2x16xf32>
    %679 = vector.extract_strided_slice %676 {offsets = [0, 32], sizes = [2, 16], strides = [1, 1]} : vector<2x64xf32> to vector<2x16xf32>
    %680 = vector.extract_strided_slice %676 {offsets = [0, 48], sizes = [2, 16], strides = [1, 1]} : vector<2x64xf32> to vector<2x16xf32>
    %681 = arith.mulf %678, %664 : vector<2x16xf32>
    %682 = arith.mulf %677, %679 : vector<2x16xf32>
    %683 = arith.addf %681, %682 : vector<2x16xf32>
    %684 = math.tanh %683 : vector<2x16xf32>
    %685 = arith.mulf %680, %684 : vector<2x16xf32>
    %686 = tpu.concatenate %395, %685 in 1 : vector<2x16xf32>, vector<2x16xf32> -> vector<2x32xf32>
    %687 = tpu.concatenate %414, %666 in 1 : vector<2x16xf32>, vector<2x16xf32> -> vector<2x32xf32>
    %688 = tpu.concatenate %433, %647 in 1 : vector<2x16xf32>, vector<2x16xf32> -> vector<2x32xf32>
    %689 = tpu.concatenate %452, %628 in 1 : vector<2x16xf32>, vector<2x16xf32> -> vector<2x32xf32>
    %690 = tpu.concatenate %471, %609 in 1 : vector<2x16xf32>, vector<2x16xf32> -> vector<2x32xf32>
    %691 = tpu.concatenate %490, %590 in 1 : vector<2x16xf32>, vector<2x16xf32> -> vector<2x32xf32>
    %692 = tpu.concatenate %509, %571 in 1 : vector<2x16xf32>, vector<2x16xf32> -> vector<2x32xf32>
    %693 = tpu.concatenate %528, %552 in 1 : vector<2x16xf32>, vector<2x16xf32> -> vector<2x32xf32>
    %694 = tpu.concatenate %686, %687, %688, %689, %690, %691, %692, %693 in 0 : vector<2x32xf32>, vector<2x32xf32>, vector<2x32xf32>, vector<2x32xf32>, vector<2x32xf32>, vector<2x32xf32>, vector<2x32xf32>, vector<2x32xf32> -> vector<16x32xf32>
    %c0_98 = arith.constant 0 : index
    %c0_99 = arith.constant 0 : index
    %695 = vector.load %arg5[%c0_98, %c0_99] : memref<32x128xf32, #tpu.memory_space<vmem>>, vector<32x128xf32>
    %cst_100 = arith.constant dense<0.000000e+00> : vector<16x128xf32>
    %696 = tpu.matmul %694, %695, %cst_100 {dimension_numbers = #tpu.dot_dimension_numbers<[1], [0], [0], [1], [0, 0, 1, 1], [], []>} : vector<16x32xf32>, vector<32x128xf32>, vector<16x128xf32> -> vector<16x128xf32>
    %c0_101 = arith.constant 0 : index
    %c0_102 = arith.constant 0 : index
    %697 = vector.load %arg6[%c0_101, %c0_102] : memref<1x128xf32, #tpu.memory_space<vmem>>, vector<1x128xf32>
    %698 = vector.broadcast %697 : vector<1x128xf32> to vector<16x128xf32>
    %699 = arith.addf %696, %698 : vector<16x128xf32>
    %700 = tpu.iota {dimensions = array<i32: 1>} : vector<16x128xi32>
    %c0_i32_103 = arith.constant 0 : i32
    %701 = vector.broadcast %c0_i32_103 : i32 to vector<16x128xi32>
    %702 = arith.cmpi sge, %700, %701 : vector<16x128xi32>
    %c12_i32 = arith.constant 12 : i32
    %703 = vector.broadcast %c12_i32 : i32 to vector<16x128xi32>
    %704 = arith.cmpi slt, %700, %703 : vector<16x128xi32>
    %705 = arith.andi %702, %704 : vector<16x128xi1>
    %c12_i32_104 = arith.constant 12 : i32
    %706 = vector.broadcast %c12_i32_104 : i32 to vector<16x128xi32>
    %707 = arith.cmpi sge, %700, %706 : vector<16x128xi32>
    %c33_i32 = arith.constant 33 : i32
    %708 = vector.broadcast %c33_i32 : i32 to vector<16x128xi32>
    %709 = arith.cmpi slt, %700, %708 : vector<16x128xi32>
    %710 = arith.andi %707, %709 : vector<16x128xi1>
    %c33_i32_105 = arith.constant 33 : i32
    %711 = vector.broadcast %c33_i32_105 : i32 to vector<16x128xi32>
    %712 = arith.cmpi sge, %700, %711 : vector<16x128xi32>
    %c43_i32 = arith.constant 43 : i32
    %713 = vector.broadcast %c43_i32 : i32 to vector<16x128xi32>
    %714 = arith.cmpi slt, %700, %713 : vector<16x128xi32>
    %715 = arith.andi %712, %714 : vector<16x128xi1>
    %716 = arith.extui %705 : vector<16x128xi1> to vector<16x128xi32>
    %717 = arith.sitofp %716 : vector<16x128xi32> to vector<16x128xf32>
    %718 = arith.extui %710 : vector<16x128xi1> to vector<16x128xi32>
    %719 = arith.sitofp %718 : vector<16x128xi32> to vector<16x128xf32>
    %720 = arith.extui %715 : vector<16x128xi1> to vector<16x128xi32>
    %721 = arith.sitofp %720 : vector<16x128xi32> to vector<16x128xf32>
    %c43_i32_106 = arith.constant 43 : i32
    %722 = vector.broadcast %c43_i32_106 : i32 to vector<16x128xi32>
    %723 = arith.cmpi slt, %700, %722 : vector<16x128xi32>
    %724 = arith.extui %723 : vector<16x128xi1> to vector<16x128xi32>
    %725 = arith.sitofp %724 : vector<16x128xi32> to vector<16x128xf32>
    %cst_107 = arith.constant 1.000000e+00 : f32
    %726 = vector.broadcast %cst_107 : f32 to vector<16x128xf32>
    %727 = arith.subf %726, %725 : vector<16x128xf32>
    %cst_108 = arith.constant 0.000000e+00 : f32
    %728 = vector.broadcast %cst_108 : f32 to vector<16x128xf32>
    %cst_109 = arith.constant -1.000000e+30 : f32
    %729 = vector.broadcast %cst_109 : f32 to vector<16x128xf32>
    %730 = arith.select %705, %699, %729 : vector<16x128xi1>, vector<16x128xf32>
    %cst_110 = arith.constant dense<0xFF800000> : vector<16xf32>
    %731 = vector.multi_reduction <maximumf>, %730, %cst_110 [1] : vector<16x128xf32> to vector<16xf32>
    %732 = vector.shape_cast %731 : vector<16xf32> to vector<16x1xf32>
    %733 = vector.broadcast %732 : vector<16x1xf32> to vector<16x128xf32>
    %734 = arith.mulf %717, %733 : vector<16x128xf32>
    %735 = arith.addf %728, %734 : vector<16x128xf32>
    %cst_111 = arith.constant -1.000000e+30 : f32
    %736 = vector.broadcast %cst_111 : f32 to vector<16x128xf32>
    %737 = arith.select %710, %699, %736 : vector<16x128xi1>, vector<16x128xf32>
    %cst_112 = arith.constant dense<0xFF800000> : vector<16xf32>
    %738 = vector.multi_reduction <maximumf>, %737, %cst_112 [1] : vector<16x128xf32> to vector<16xf32>
    %739 = vector.shape_cast %738 : vector<16xf32> to vector<16x1xf32>
    %740 = vector.broadcast %739 : vector<16x1xf32> to vector<16x128xf32>
    %741 = arith.mulf %719, %740 : vector<16x128xf32>
    %742 = arith.addf %735, %741 : vector<16x128xf32>
    %cst_113 = arith.constant -1.000000e+30 : f32
    %743 = vector.broadcast %cst_113 : f32 to vector<16x128xf32>
    %744 = arith.select %715, %699, %743 : vector<16x128xi1>, vector<16x128xf32>
    %cst_114 = arith.constant dense<0xFF800000> : vector<16xf32>
    %745 = vector.multi_reduction <maximumf>, %744, %cst_114 [1] : vector<16x128xf32> to vector<16xf32>
    %746 = vector.shape_cast %745 : vector<16xf32> to vector<16x1xf32>
    %747 = vector.broadcast %746 : vector<16x1xf32> to vector<16x128xf32>
    %748 = arith.mulf %721, %747 : vector<16x128xf32>
    %749 = arith.addf %742, %748 : vector<16x128xf32>
    %750 = arith.subf %699, %749 : vector<16x128xf32>
    %751 = math.exp %750 : vector<16x128xf32>
    %752 = arith.mulf %751, %725 : vector<16x128xf32>
    %753 = arith.mulf %752, %717 : vector<16x128xf32>
    %cst_115 = arith.constant dense<0.000000e+00> : vector<16xf32>
    %754 = vector.multi_reduction <add>, %753, %cst_115 [1] : vector<16x128xf32> to vector<16xf32>
    %755 = vector.shape_cast %754 : vector<16xf32> to vector<16x1xf32>
    %756 = vector.broadcast %755 : vector<16x1xf32> to vector<16x128xf32>
    %757 = arith.mulf %717, %756 : vector<16x128xf32>
    %758 = arith.addf %727, %757 : vector<16x128xf32>
    %759 = arith.mulf %752, %719 : vector<16x128xf32>
    %cst_116 = arith.constant dense<0.000000e+00> : vector<16xf32>
    %760 = vector.multi_reduction <add>, %759, %cst_116 [1] : vector<16x128xf32> to vector<16xf32>
    %761 = vector.shape_cast %760 : vector<16xf32> to vector<16x1xf32>
    %762 = vector.broadcast %761 : vector<16x1xf32> to vector<16x128xf32>
    %763 = arith.mulf %719, %762 : vector<16x128xf32>
    %764 = arith.addf %758, %763 : vector<16x128xf32>
    %765 = arith.mulf %752, %721 : vector<16x128xf32>
    %cst_117 = arith.constant dense<0.000000e+00> : vector<16xf32>
    %766 = vector.multi_reduction <add>, %765, %cst_117 [1] : vector<16x128xf32> to vector<16xf32>
    %767 = vector.shape_cast %766 : vector<16xf32> to vector<16x1xf32>
    %768 = vector.broadcast %767 : vector<16x1xf32> to vector<16x128xf32>
    %769 = arith.mulf %721, %768 : vector<16x128xf32>
    %770 = arith.addf %764, %769 : vector<16x128xf32>
    %771 = tpu.reciprocal %770 {approx = true} : vector<16x128xf32> -> vector<16x128xf32>
    %772 = arith.mulf %752, %771 : vector<16x128xf32>
    %cst_118 = arith.constant 0.000000e+00 : f32
    %773 = vector.broadcast %cst_118 : f32 to vector<16x64xf32>
    %cst_119 = arith.constant 0.000000e+00 : f32
    %774 = vector.broadcast %cst_119 : f32 to vector<16x32xf32>
    %775 = tpu.concatenate %773, %694, %774 in 1 : vector<16x64xf32>, vector<16x32xf32>, vector<16x32xf32> -> vector<16x128xf32>
    %776 = arith.addf %772, %775 : vector<16x128xf32>
    %c0_120 = arith.constant 0 : index
    %c0_121 = arith.constant 0 : index
    %777 = vector.load %arg7[%c0_120, %c0_121] : memref<16x128xf32, #tpu.memory_space<vmem>>, vector<16x128xf32>
    tpu.vector_store %arg7[%c0_120, %c0_121], %776 {strides = array<i32>} : memref<16x128xf32, #tpu.memory_space<vmem>>, vector<16x128xf32>,
    return
  }
}

</mosaic_0001>

<llo_original>
// kernel: concept_identifier_forward.1
$region0: #{concept_identifier_forward.1}
  #allocation0 [shape = 'u32[]', space=smem, size = 0x4, offset = 0x4, fixed_abs, tag = 'smem constant byte address 0x4 - core index']
  #allocation1 [shape = 'u32[72,128]{1,0:T(1,128)}', space=vmem, size = 0x9000, scoped, tag = 'internal scratch']
  %s0 = inlined_call_operand.vmem [shape: s32[16,4], index: 0, kind: input, shape index: {}]
  %s1 = inlined_call_operand.vmem [shape: f32[117,32], index: 1, kind: input, shape index: {}]
  %s2 = inlined_call_operand.vmem [shape: f32[2,32,128], index: 2, kind: input, shape index: {}]
  %s3 = inlined_call_operand.vmem [shape: f32[4,16,64], index: 3, kind: input, shape index: {}]
  %s4 = inlined_call_operand.vmem [shape: f32[2,1,128], index: 4, kind: input, shape index: {}]
  %s5 = inlined_call_operand.vmem [shape: f32[32,128], index: 5, kind: input, shape index: {}]
  %s6 = inlined_call_operand.vmem [shape: f32[1,128], index: 6, kind: input, shape index: {}]
  %s7 = inlined_call_operand.vmem [shape: f32[16,128], index: 7, kind: output, shape index: {}]
  %s8 = sld [smem:[#allocation0]]
  $region38: #{concept_identifier_forward.1} parent=0
    _
  %s10 = ssub.s32 1, %s8
  %s11 = scalar_select 0, %s10, %s8
  // Predicated region
  $region2: #{concept_identifier_forward.1} parent=0 // pred_check
    _
  $region3: #{concept_identifier_forward.1} parent=0 // pred_check_branch
    %13 = sbr.rel (0) target = $region5
  $region4: #{concept_identifier_forward.1} parent=0 // pred_region
    _
  $region5: #{concept_identifier_forward.1} parent=0 // pred_fallthru
    _
  // Predicated region
  $region6: #{concept_identifier_forward.1} parent=0 // pred_check
    _
  $region7: #{concept_identifier_forward.1} parent=0 // pred_check_branch
    %15 = sbr.rel (0) target = $region9
  $region8: #{concept_identifier_forward.1} parent=0 // pred_region
    _
  $region9: #{concept_identifier_forward.1} parent=0 // pred_fallthru
    _
  // Predicated region
  $region10: #{concept_identifier_forward.1} parent=0 // pred_check
    _
  $region11: #{concept_identifier_forward.1} parent=0 // pred_check_branch
    %17 = sbr.rel (0) target = $region13
  $region12: #{concept_identifier_forward.1} parent=0 // pred_region
    _
  $region13: #{concept_identifier_forward.1} parent=0 // pred_fallthru
    _
  // Predicated region
  $region14: #{concept_identifier_forward.1} parent=0 // pred_check
    _
  $region15: #{concept_identifier_forward.1} parent=0 // pred_check_branch
    %19 = sbr.rel (0) target = $region17
  $region16: #{concept_identifier_forward.1} parent=0 // pred_region
    _
  $region17: #{concept_identifier_forward.1} parent=0 // pred_fallthru
    _
  // Predicated region
  $region18: #{concept_identifier_forward.1} parent=0 // pred_check
    _
  $region19: #{concept_identifier_forward.1} parent=0 // pred_check_branch
    %21 = sbr.rel (0) target = $region21
  $region20: #{concept_identifier_forward.1} parent=0 // pred_region
    _
  $region21: #{concept_identifier_forward.1} parent=0 // pred_fallthru
    _
  // Predicated region
  $region22: #{concept_identifier_forward.1} parent=0 // pred_check
    _
  $region23: #{concept_identifier_forward.1} parent=0 // pred_check_branch
    %23 = sbr.rel (0) target = $region25
  $region24: #{concept_identifier_forward.1} parent=0 // pred_region
    _
  $region25: #{concept_identifier_forward.1} parent=0 // pred_fallthru
    _
  // Predicated region
  $region26: #{concept_identifier_forward.1} parent=0 // pred_check
    _
  $region27: #{concept_identifier_forward.1} parent=0 // pred_check_branch
    %25 = sbr.rel (0) target = $region29
  $region28: #{concept_identifier_forward.1} parent=0 // pred_region
    _
  $region29: #{concept_identifier_forward.1} parent=0 // pred_fallthru
    _
  %v26 = vld [vmem:[%s0] sm:$0xff]
  %v27 = vld [vmem:[%s0 + $0x8] sm:$0xff]
  %v28 = vlaneseq
  %v29 = vand.u32 %v28, 127
  %30 = vset.pattern.permute.xlu0 0
  %31 = vperm.xlu0 %30, %v26
  %v32 = vpop.permute.xlu0 %31
  %33 = vset.pattern.permute.xlu0 0
  %34 = vperm.xlu0 %33, %v27
  %v35 = vpop.permute.xlu0 %34
  %vm36 = vcmp.eq.s32.totalorder %v29, %v32
  %vm37 = vcmp.eq.s32.totalorder %v29, %v35
  %v38 = vadd.s32 %v26, 50
  %v39 = vadd.s32 %v27, 50
  %40 = vset.pattern.permute.xlu0 1
  %41 = vperm.xlu0 %40, %v38
  %v42 = vpop.permute.xlu0 %41
  %43 = vset.pattern.permute.xlu0 1
  %44 = vperm.xlu0 %43, %v39
  %v45 = vpop.permute.xlu0 %44
  %vm46 = vcmp.eq.s32.totalorder %v29, %v42
  %vm47 = vcmp.eq.s32.totalorder %v29, %v45
  %vm48 = vmor %vm36, %vm46
  %vm49 = vmor %vm37, %vm47
  %v50 = vadd.s32 %v26, 90
  %v51 = vadd.s32 %v27, 90
  %52 = vset.pattern.permute.xlu0 2
  %53 = vperm.xlu0 %52, %v50
  %v54 = vpop.permute.xlu0 %53
  %55 = vset.pattern.permute.xlu0 2
  %56 = vperm.xlu0 %55, %v51
  %v57 = vpop.permute.xlu0 %56
  %vm58 = vcmp.eq.s32.totalorder %v29, %v54
  %vm59 = vcmp.eq.s32.totalorder %v29, %v57
  %vm60 = vmor %vm48, %vm58
  %vm61 = vmor %vm49, %vm59
  %v62 = vadd.s32 %v26, 108
  %v63 = vadd.s32 %v27, 108
  %64 = vset.pattern.permute.xlu0 3
  %65 = vperm.xlu0 %64, %v62
  %v66 = vpop.permute.xlu0 %65
  %67 = vset.pattern.permute.xlu0 3
  %68 = vperm.xlu0 %67, %v63
  %v69 = vpop.permute.xlu0 %68
  %vm70 = vcmp.eq.s32.totalorder %v29, %v66
  %vm71 = vcmp.eq.s32.totalorder %v29, %v69
  %vm72 = vmor %vm60, %vm70
  %vm73 = vmor %vm61, %vm71
  %v74 = vsel %vm72, 1, 0
  %v75 = vsel %vm73, 1, 0
  %v76 = vcvt.s32.f32 %v74
  %v77 = vcvt.s32.f32 %v75
  %v78 = vld [vmem:[%s1] sm:$0xff]
  %v79 = vld [vmem:[%s1 + $0x8] sm:$0xff]
  %v80 = vld [vmem:[%s1 + $0x10] sm:$0xff]
  %v81 = vld [vmem:[%s1 + $0x18] sm:$0xff]
  %v82 = vld [vmem:[%s1 + $0x20] sm:$0xff]
  %v83 = vld [vmem:[%s1 + $0x28] sm:$0xff]
  %v84 = vld [vmem:[%s1 + $0x30] sm:$0xff]
  %v85 = vld [vmem:[%s1 + $0x38] sm:$0xff]
  %v86 = vld [vmem:[%s1 + $0x40] sm:$0xff]
  %v87 = vld [vmem:[%s1 + $0x48] sm:$0xff]
  %v88 = vld [vmem:[%s1 + $0x50] sm:$0xff]
  %v89 = vld [vmem:[%s1 + $0x58] sm:$0xff]
  %v90 = vld [vmem:[%s1 + $0x60] sm:$0xff]
  %v91 = vld [vmem:[%s1 + $0x68] sm:$0xff]
  %v92 = vld [vmem:[%s1 + $0x70] sm:$0x1f]
  %vm93 = vcmask 957440
  %v95 = vsel %vm93, %v76, 0
  %v98 = vsel %vm93, %v77, 0
  %vm100 = vcmask 1044480
  %v102 = vsel %vm100, %v92, 0
  %104 = vmatpush.msra.mxu0 0.0
  %105 = vmatpush.msra.mxu0 %v102
  %106 = vmatpush.msra.mxu0 %v91
  %107 = vmatpush.msra.mxu0 %v90
  %108 = vmatpush.msra.mxu0 %v89
  %109 = vmatpush.msra.mxu0 %v88
  %110 = vmatpush.msra.mxu0 %v87
  %111 = vmatpush.msra.mxu0 %v86
  %112 = vmatpush.msra.mxu0 %v85
  %113 = vmatpush.msra.mxu0 %v84
  %114 = vmatpush.msra.mxu0 %v83
  %115 = vmatpush.msra.mxu0 %v82
  %116 = vmatpush.msra.mxu0 %v81
  %117 = vmatpush.msra.mxu0 %v80
  %118 = vmatpush.msra.mxu0 %v79
  %119 = vmatpush.msra.mxu0 %v78
  %120 = vmatmul.f32.gmra.mxu0 %v95
  %v121 = vpop.f32.mrf.mxu0
  %v122 = vadd.f32 0.0, %v121
  %123 = vmatmul.f32.gmra.mxu0 %v98
  %v124 = vpop.f32.mrf.mxu0
  %v125 = vadd.f32 0.0, %v124
  %126 = vdwg.mxu0
  %vm127 = vcmp.ge.s32.totalorder %v29, 32
  %vm128 = vcmp.lt.s32.totalorder %v29, 48
  %vm129 = vmand %vm127, %vm128
  %v130 = vld [vmem:[%s2] sm:$0xff]
  %v131 = vld [vmem:[%s2 + $0x8] sm:$0xff]
  %v132 = vld [vmem:[%s2 + $0x10] sm:$0xff]
  %v133 = vld [vmem:[%s2 + $0x18] sm:$0xff]
  %v134 = vld [vmem:[%s4] sm:$0x1]
  %v136 = vperm.slane %v134, 0
  %vm138 = vcmask 261120
  %v140 = vsel %vm138, %v122, 0
  %v143 = vsel %vm138, %v125, 0
  %145 = vmatpush.msra.mxu0 0.0
  %146 = vmatpush.msra.mxu0 0.0
  %147 = vmatpush.msra.mxu0 0.0
  %148 = vmatpush.msra.mxu0 0.0
  %149 = vmatpush.msra.mxu0 0.0
  %150 = vmatpush.msra.mxu0 0.0
  %151 = vmatpush.msra.mxu0 0.0
  %152 = vmatpush.msra.mxu0 0.0
  %153 = vmatpush.msra.mxu0 0.0
  %154 = vmatpush.msra.mxu0 0.0
  %155 = vmatpush.msra.mxu0 0.0
  %156 = vmatpush.msra.mxu0 0.0
  %157 = vmatpush.msra.mxu0 %v133
  %158 = vmatpush.msra.mxu0 %v132
  %159 = vmatpush.msra.mxu0 %v131
  %160 = vmatpush.msra.mxu0 %v130
  %161 = vmatmul.f32.gmra.mxu0 %v140
  %v162 = vpop.f32.mrf.mxu0
  %v163 = vadd.f32 %v136, %v162
  %164 = vmatmul.f32.gmra.mxu0 %v143
  %v165 = vpop.f32.mrf.mxu0
  %v166 = vadd.f32 %v136, %v165
  %167 = vdwg.mxu0
  %v168 = vld [vmem:[%s3] sm:$0xff]
  %v169 = vld [vmem:[%s3 + $0x8] sm:$0xff]
  %vm170 = vcmask 130048
  %v172 = vsel %vm170, 0.0, 0
  %174 = vmatpush.msra.mxu0 0.0
  %175 = vmatpush.msra.mxu0 0.0
  %176 = vmatpush.msra.mxu0 0.0
  %177 = vmatpush.msra.mxu0 0.0
  %178 = vmatpush.msra.mxu0 0.0
  %179 = vmatpush.msra.mxu0 0.0
  %180 = vmatpush.msra.mxu0 0.0
  %181 = vmatpush.msra.mxu0 0.0
  %182 = vmatpush.msra.mxu0 0.0
  %183 = vmatpush.msra.mxu0 0.0
  %184 = vmatpush.msra.mxu0 0.0
  %185 = vmatpush.msra.mxu0 0.0
  %186 = vmatpush.msra.mxu0 0.0
  %187 = vmatpush.msra.mxu0 0.0
  %188 = vmatpush.msra.mxu0 %v169
  %189 = vmatpush.msra.mxu0 %v168
  %190 = vmatmul.f32.gmra.mxu0 %v172
  %v191 = vpop.f32.mrf.mxu0
  %v192 = vadd.f32 0.0, %v191
  %193 = vdwg.mxu0
  %v194 = vadd.f32 %v163, %v192
  %v195 = vtanh.pop %v194
  %v196 = vxor.u32 %v194, 2147483648
  %v197 = vmul.f32 %v196, 1.442695
  %v198 = vpow.pop %v197
  %v199 = vadd.f32 %v198, 1.0
  %v200 = vrcp.pop %v199
  %v201 = vmul.f32 %v199, %v200
  %v202 = vsub.f32 1.0, %v201
  %v203 = vmul.f32 %v200, %v202
  %v204 = vadd.f32 %v200, %v203
  %vm205 = vweird.f32 %v199
  %vm206 = vweird.f32 %v200
  %vm207 = vmor %vm205, %vm206
  %v208 = vsel %vm207, %v200, %v204
  %v209 = vand.u32 2147483647, %v199
  %vm210 = vcmp.eq.f32.partialorder %v209, 8.507059e+37
  %v211 = vand.u32 %v199, 2147483648
  %v212 = vor.u32 1.1754944e-38, %v211
  %v213 = vsel %vm210, %v212, %v208
  %v214 = vmul.f32 1.0, %v213
  %v215 = vsel %vm129, %v195, %v214
  %v216 = vmul.f32 %v215, 0.0
  %218 = vrot.lane.b32.xlu0 %v215, 96
  %v219 = vpop.permute.xlu0 %218
  %v221 = vmul.f32 %v215, %v219
  %223 = vrot.lane.b32.xlu0 %v221, 16
  %v224 = vpop.permute.xlu0 %223
  %v226 = vadd.f32 %v216, %v224
  %v227 = vtanh.pop %v226
  %229 = vrot.lane.b32.xlu0 %v227, 32
  %v230 = vpop.permute.xlu0 %229
  %v232 = vmul.f32 %v215, %v230
  %234 = vrot.lane.b32.xlu0 %v232, 80
  %v235 = vpop.permute.xlu0 %234
  %v236 = vsel %vm170, %v235, 0
  %238 = vmatpush.msra.mxu0 0.0
  %239 = vmatpush.msra.mxu0 0.0
  %240 = vmatpush.msra.mxu0 0.0
  %241 = vmatpush.msra.mxu0 0.0
  %242 = vmatpush.msra.mxu0 0.0
  %243 = vmatpush.msra.mxu0 0.0
  %244 = vmatpush.msra.mxu0 0.0
  %245 = vmatpush.msra.mxu0 0.0
  %246 = vmatpush.msra.mxu0 0.0
  %247 = vmatpush.msra.mxu0 0.0
  %248 = vmatpush.msra.mxu0 0.0
  %249 = vmatpush.msra.mxu0 0.0
  %250 = vmatpush.msra.mxu0 0.0
  %251 = vmatpush.msra.mxu0 0.0
  %252 = vmatpush.msra.mxu0 %v169
  %253 = vmatpush.msra.mxu0 %v168
  %254 = vmatmul.f32.gmra.mxu0 %v236
  %v255 = vpop.f32.mrf.mxu0
  %v256 = vadd.f32 0.0, %v255
  %257 = vdwg.mxu0
  %v259 = vrot.slane %v256, 6
  %v261 = vadd.f32 %v163, %v259
  %v262 = vtanh.pop %v261
  %v263 = vxor.u32 %v261, 2147483648
  %v264 = vmul.f32 %v263, 1.442695
  %v265 = vpow.pop %v264
  %v266 = vadd.f32 %v265, 1.0
  %v267 = vrcp.pop %v266
  %v268 = vmul.f32 %v266, %v267
  %v269 = vsub.f32 1.0, %v268
  %v270 = vmul.f32 %v267, %v269
  %v271 = vadd.f32 %v267, %v270
  %vm272 = vweird.f32 %v266
  %vm273 = vweird.f32 %v267
  %vm274 = vmor %vm272, %vm273
  %v275 = vsel %vm274, %v267, %v271
  %v276 = vand.u32 2147483647, %v266
  %vm277 = vcmp.eq.f32.partialorder %v276, 8.507059e+37
  %v278 = vand.u32 %v266, 2147483648
  %v279 = vor.u32 1.1754944e-38, %v278
  %v280 = vsel %vm277, %v279, %v275
  %v281 = vmul.f32 1.0, %v280
  %v282 = vsel %vm129, %v262, %v281
  %v284 = vrot.slane %v226, 6
  %v286 = vmul.f32 %v282, %v284
  %288 = vrot.lane.b32.xlu0 %v282, 96
  %v289 = vpop.permute.xlu0 %288
  %v291 = vmul.f32 %v282, %v289
  %293 = vrot.lane.b32.xlu0 %v291, 16
  %v294 = vpop.permute.xlu0 %293
  %v296 = vadd.f32 %v286, %v294
  %v297 = vtanh.pop %v296
  %299 = vrot.lane.b32.xlu0 %v297, 32
  %v300 = vpop.permute.xlu0 %299
  %v302 = vmul.f32 %v282, %v300
  %v304 = vrot.slane %v302, 2
  %305 = vrot.lane.b32.xlu0 %v304, 80
  %v306 = vpop.permute.xlu0 %305
  %v307 = vsel %vm170, %v306, 0
  %309 = vmatpush.msra.mxu0 0.0
  %310 = vmatpush.msra.mxu0 0.0
  %311 = vmatpush.msra.mxu0 0.0
  %312 = vmatpush.msra.mxu0 0.0
  %313 = vmatpush.msra.mxu0 0.0
  %314 = vmatpush.msra.mxu0 0.0
  %315 = vmatpush.msra.mxu0 0.0
  %316 = vmatpush.msra.mxu0 0.0
  %317 = vmatpush.msra.mxu0 0.0
  %318 = vmatpush.msra.mxu0 0.0
  %319 = vmatpush.msra.mxu0 0.0
  %320 = vmatpush.msra.mxu0 0.0
  %321 = vmatpush.msra.mxu0 0.0
  %322 = vmatpush.msra.mxu0 0.0
  %323 = vmatpush.msra.mxu0 %v169
  %324 = vmatpush.msra.mxu0 %v168
  %325 = vmatmul.f32.gmra.mxu0 %v307
  %v326 = vpop.f32.mrf.mxu0
  %v327 = vadd.f32 0.0, %v326
  %328 = vdwg.mxu0
  %v330 = vrot.slane %v327, 4
  %v332 = vadd.f32 %v163, %v330
  %v333 = vtanh.pop %v332
  %v334 = vxor.u32 %v332, 2147483648
  %v335 = vmul.f32 %v334, 1.442695
  %v336 = vpow.pop %v335
  %v337 = vadd.f32 %v336, 1.0
  %v338 = vrcp.pop %v337
  %v339 = vmul.f32 %v337, %v338
  %v340 = vsub.f32 1.0, %v339
  %v341 = vmul.f32 %v338, %v340
  %v342 = vadd.f32 %v338, %v341
  %vm343 = vweird.f32 %v337
  %vm344 = vweird.f32 %v338
  %vm345 = vmor %vm343, %vm344
  %v346 = vsel %vm345, %v338, %v342
  %v347 = vand.u32 2147483647, %v337
  %vm348 = vcmp.eq.f32.partialorder %v347, 8.507059e+37
  %v349 = vand.u32 %v337, 2147483648
  %v350 = vor.u32 1.1754944e-38, %v349
  %v351 = vsel %vm348, %v350, %v346
  %v352 = vmul.f32 1.0, %v351
  %v353 = vsel %vm129, %v333, %v352
  %v355 = vrot.slane %v296, 6
  %v357 = vmul.f32 %v353, %v355
  %359 = vrot.lane.b32.xlu0 %v353, 96
  %v360 = vpop.permute.xlu0 %359
  %v362 = vmul.f32 %v353, %v360
  %364 = vrot.lane.b32.xlu0 %v362, 16
  %v365 = vpop.permute.xlu0 %364
  %v367 = vadd.f32 %v357, %v365
  %v368 = vtanh.pop %v367
  %370 = vrot.lane.b32.xlu0 %v368, 32
  %v371 = vpop.permute.xlu0 %370
  %v373 = vmul.f32 %v353, %v371
  %v375 = vrot.slane %v373, 4
  %376 = vrot.lane.b32.xlu0 %v375, 80
  %v377 = vpop.permute.xlu0 %376
  %v378 = vsel %vm170, %v377, 0
  %380 = vmatpush.msra.mxu0 0.0
  %381 = vmatpush.msra.mxu0 0.0
  %382 = vmatpush.msra.mxu0 0.0
  %383 = vmatpush.msra.mxu0 0.0
  %384 = vmatpush.msra.mxu0 0.0
  %385 = vmatpush.msra.mxu0 0.0
  %386 = vmatpush.msra.mxu0 0.0
  %387 = vmatpush.msra.mxu0 0.0
  %388 = vmatpush.msra.mxu0 0.0
  %389 = vmatpush.msra.mxu0 0.0
  %390 = vmatpush.msra.mxu0 0.0
  %391 = vmatpush.msra.mxu0 0.0
  %392 = vmatpush.msra.mxu0 0.0
  %393 = vmatpush.msra.mxu0 0.0
  %394 = vmatpush.msra.mxu0 %v169
  %395 = vmatpush.msra.mxu0 %v168
  %396 = vmatmul.f32.gmra.mxu0 %v378
  %v397 = vpop.f32.mrf.mxu0
  %v398 = vadd.f32 0.0, %v397
  %399 = vdwg.mxu0
  %v401 = vrot.slane %v398, 2
  %v403 = vadd.f32 %v163, %v401
  %v404 = vtanh.pop %v403
  %v405 = vxor.u32 %v403, 2147483648
  %v406 = vmul.f32 %v405, 1.442695
  %v407 = vpow.pop %v406
  %v408 = vadd.f32 %v407, 1.0
  %v409 = vrcp.pop %v408
  %v410 = vmul.f32 %v408, %v409
  %v411 = vsub.f32 1.0, %v410
  %v412 = vmul.f32 %v409, %v411
  %v413 = vadd.f32 %v409, %v412
  %vm414 = vweird.f32 %v408
  %vm415 = vweird.f32 %v409
  %vm416 = vmor %vm414, %vm415
  %v417 = vsel %vm416, %v409, %v413
  %v418 = vand.u32 2147483647, %v408
  %vm419 = vcmp.eq.f32.partialorder %v418, 8.507059e+37
  %v420 = vand.u32 %v408, 2147483648
  %v421 = vor.u32 1.1754944e-38, %v420
  %v422 = vsel %vm419, %v421, %v417
  %v423 = vmul.f32 1.0, %v422
  %v424 = vsel %vm129, %v404, %v423
  %v426 = vrot.slane %v367, 6
  %v428 = vmul.f32 %v424, %v426
  %430 = vrot.lane.b32.xlu0 %v424, 96
  %v431 = vpop.permute.xlu0 %430
  %v433 = vmul.f32 %v424, %v431
  %435 = vrot.lane.b32.xlu0 %v433, 16
  %v436 = vpop.permute.xlu0 %435
  %v438 = vadd.f32 %v428, %v436
  %v439 = vtanh.pop %v438
  %441 = vrot.lane.b32.xlu0 %v439, 32
  %v442 = vpop.permute.xlu0 %441
  %v444 = vmul.f32 %v424, %v442
  %v446 = vrot.slane %v444, 6
  %447 = vrot.lane.b32.xlu0 %v446, 80
  %v448 = vpop.permute.xlu0 %447
  %v449 = vsel %vm170, %v448, 0
  %451 = vmatpush.msra.mxu0 0.0
  %452 = vmatpush.msra.mxu0 0.0
  %453 = vmatpush.msra.mxu0 0.0
  %454 = vmatpush.msra.mxu0 0.0
  %455 = vmatpush.msra.mxu0 0.0
  %456 = vmatpush.msra.mxu0 0.0
  %457 = vmatpush.msra.mxu0 0.0
  %458 = vmatpush.msra.mxu0 0.0
  %459 = vmatpush.msra.mxu0 0.0
  %460 = vmatpush.msra.mxu0 0.0
  %461 = vmatpush.msra.mxu0 0.0
  %462 = vmatpush.msra.mxu0 0.0
  %463 = vmatpush.msra.mxu0 0.0
  %464 = vmatpush.msra.mxu0 0.0
  %465 = vmatpush.msra.mxu0 %v169
  %466 = vmatpush.msra.mxu0 %v168
  %467 = vmatmul.f32.gmra.mxu0 %v449
  %v468 = vpop.f32.mrf.mxu0
  %v469 = vadd.f32 0.0, %v468
  %470 = vdwg.mxu0
  %v471 = vadd.f32 %v166, %v469
  %v472 = vtanh.pop %v471
  %v473 = vxor.u32 %v471, 2147483648
  %v474 = vmul.f32 %v473, 1.442695
  %v475 = vpow.pop %v474
  %v476 = vadd.f32 %v475, 1.0
  %v477 = vrcp.pop %v476
  %v478 = vmul.f32 %v476, %v477
  %v479 = vsub.f32 1.0, %v478
  %v480 = vmul.f32 %v477, %v479
  %v481 = vadd.f32 %v477, %v480
  %vm482 = vweird.f32 %v476
  %vm483 = vweird.f32 %v477
  %vm484 = vmor %vm482, %vm483
  %v485 = vsel %vm484, %v477, %v481
  %v486 = vand.u32 2147483647, %v476
  %vm487 = vcmp.eq.f32.partialorder %v486, 8.507059e+37
  %v488 = vand.u32 %v476, 2147483648
  %v489 = vor.u32 1.1754944e-38, %v488
  %v490 = vsel %vm487, %v489, %v485
  %v491 = vmul.f32 1.0, %v490
  %v492 = vsel %vm129, %v472, %v491
  %v494 = vrot.slane %v438, 6
  %v496 = vmul.f32 %v492, %v494
  %498 = vrot.lane.b32.xlu0 %v492, 96
  %v499 = vpop.permute.xlu0 %498
  %v501 = vmul.f32 %v492, %v499
  %503 = vrot.lane.b32.xlu0 %v501, 16
  %v504 = vpop.permute.xlu0 %503
  %v506 = vadd.f32 %v496, %v504
  %v507 = vtanh.pop %v506
  %509 = vrot.lane.b32.xlu0 %v507, 32
  %v510 = vpop.permute.xlu0 %509
  %v512 = vmul.f32 %v492, %v510
  %514 = vrot.lane.b32.xlu0 %v512, 80
  %v515 = vpop.permute.xlu0 %514
  %v516 = vsel %vm170, %v515, 0
  %518 = vmatpush.msra.mxu0 0.0
  %519 = vmatpush.msra.mxu0 0.0
  %520 = vmatpush.msra.mxu0 0.0
  %521 = vmatpush.msra.mxu0 0.0
  %522 = vmatpush.msra.mxu0 0.0
  %523 = vmatpush.msra.mxu0 0.0
  %524 = vmatpush.msra.mxu0 0.0
  %525 = vmatpush.msra.mxu0 0.0
  %526 = vmatpush.msra.mxu0 0.0
  %527 = vmatpush.msra.mxu0 0.0
  %528 = vmatpush.msra.mxu0 0.0
  %529 = vmatpush.msra.mxu0 0.0
  %530 = vmatpush.msra.mxu0 0.0
  %531 = vmatpush.msra.mxu0 0.0
  %532 = vmatpush.msra.mxu0 %v169
  %533 = vmatpush.msra.mxu0 %v168
  %534 = vmatmul.f32.gmra.mxu0 %v516
  %v535 = vpop.f32.mrf.mxu0
  %v536 = vadd.f32 0.0, %v535
  %537 = vdwg.mxu0
  %v539 = vrot.slane %v536, 6
  %v541 = vadd.f32 %v166, %v539
  %v542 = vtanh.pop %v541
  %v543 = vxor.u32 %v541, 2147483648
  %v544 = vmul.f32 %v543, 1.442695
  %v545 = vpow.pop %v544
  %v546 = vadd.f32 %v545, 1.0
  %v547 = vrcp.pop %v546
  %v548 = vmul.f32 %v546, %v547
  %v549 = vsub.f32 1.0, %v548
  %v550 = vmul.f32 %v547, %v549
  %v551 = vadd.f32 %v547, %v550
  %vm552 = vweird.f32 %v546
  %vm553 = vweird.f32 %v547
  %vm554 = vmor %vm552, %vm553
  %v555 = vsel %vm554, %v547, %v551
  %v556 = vand.u32 2147483647, %v546
  %vm557 = vcmp.eq.f32.partialorder %v556, 8.507059e+37
  %v558 = vand.u32 %v546, 2147483648
  %v559 = vor.u32 1.1754944e-38, %v558
  %v560 = vsel %vm557, %v559, %v555
  %v561 = vmul.f32 1.0, %v560
  %v562 = vsel %vm129, %v542, %v561
  %v564 = vrot.slane %v506, 6
  %v566 = vmul.f32 %v562, %v564
  %568 = vrot.lane.b32.xlu0 %v562, 96
  %v569 = vpop.permute.xlu0 %568
  %v571 = vmul.f32 %v562, %v569
  %573 = vrot.lane.b32.xlu0 %v571, 16
  %v574 = vpop.permute.xlu0 %573
  %v576 = vadd.f32 %v566, %v574
  %v577 = vtanh.pop %v576
  %579 = vrot.lane.b32.xlu0 %v577, 32
  %v580 = vpop.permute.xlu0 %579
  %v582 = vmul.f32 %v562, %v580
  %v584 = vrot.slane %v582, 2
  %585 = vrot.lane.b32.xlu0 %v584, 80
  %v586 = vpop.permute.xlu0 %585
  %v587 = vsel %vm170, %v586, 0
  %589 = vmatpush.msra.mxu0 0.0
  %590 = vmatpush.msra.mxu0 0.0
  %591 = vmatpush.msra.mxu0 0.0
  %592 = vmatpush.msra.mxu0 0.0
  %593 = vmatpush.msra.mxu0 0.0
  %594 = vmatpush.msra.mxu0 0.0
  %595 = vmatpush.msra.mxu0 0.0
  %596 = vmatpush.msra.mxu0 0.0
  %597 = vmatpush.msra.mxu0 0.0
  %598 = vmatpush.msra.mxu0 0.0
  %599 = vmatpush.msra.mxu0 0.0
  %600 = vmatpush.msra.mxu0 0.0
  %601 = vmatpush.msra.mxu0 0.0
  %602 = vmatpush.msra.mxu0 0.0
  %603 = vmatpush.msra.mxu0 %v169
  %604 = vmatpush.msra.mxu0 %v168
  %605 = vmatmul.f32.gmra.mxu0 %v587
  %v606 = vpop.f32.mrf.mxu0
  %v607 = vadd.f32 0.0, %v606
  %608 = vdwg.mxu0
  %v610 = vrot.slane %v607, 4
  %v612 = vadd.f32 %v166, %v610
  %v613 = vtanh.pop %v612
  %v614 = vxor.u32 %v612, 2147483648
  %v615 = vmul.f32 %v614, 1.442695
  %v616 = vpow.pop %v615
  %v617 = vadd.f32 %v616, 1.0
  %v618 = vrcp.pop %v617
  %v619 = vmul.f32 %v617, %v618
  %v620 = vsub.f32 1.0, %v619
  %v621 = vmul.f32 %v618, %v620
  %v622 = vadd.f32 %v618, %v621
  %vm623 = vweird.f32 %v617
  %vm624 = vweird.f32 %v618
  %vm625 = vmor %vm623, %vm624
  %v626 = vsel %vm625, %v618, %v622
  %v627 = vand.u32 2147483647, %v617
  %vm628 = vcmp.eq.f32.partialorder %v627, 8.507059e+37
  %v629 = vand.u32 %v617, 2147483648
  %v630 = vor.u32 1.1754944e-38, %v629
  %v631 = vsel %vm628, %v630, %v626
  %v632 = vmul.f32 1.0, %v631
  %v633 = vsel %vm129, %v613, %v632
  %v635 = vrot.slane %v576, 6
  %v637 = vmul.f32 %v633, %v635
  %639 = vrot.lane.b32.xlu0 %v633, 96
  %v640 = vpop.permute.xlu0 %639
  %v642 = vmul.f32 %v633, %v640
  %644 = vrot.lane.b32.xlu0 %v642, 16
  %v645 = vpop.permute.xlu0 %644
  %v647 = vadd.f32 %v637, %v645
  %v648 = vtanh.pop %v647
  %650 = vrot.lane.b32.xlu0 %v648, 32
  %v651 = vpop.permute.xlu0 %650
  %v653 = vmul.f32 %v633, %v651
  %v655 = vrot.slane %v653, 4
  %656 = vrot.lane.b32.xlu0 %v655, 80
  %v657 = vpop.permute.xlu0 %656
  %v658 = vsel %vm170, %v657, 0
  %660 = vmatpush.msra.mxu0 0.0
  %661 = vmatpush.msra.mxu0 0.0
  %662 = vmatpush.msra.mxu0 0.0
  %663 = vmatpush.msra.mxu0 0.0
  %664 = vmatpush.msra.mxu0 0.0
  %665 = vmatpush.msra.mxu0 0.0
  %666 = vmatpush.msra.mxu0 0.0
  %667 = vmatpush.msra.mxu0 0.0
  %668 = vmatpush.msra.mxu0 0.0
  %669 = vmatpush.msra.mxu0 0.0
  %670 = vmatpush.msra.mxu0 0.0
  %671 = vmatpush.msra.mxu0 0.0
  %672 = vmatpush.msra.mxu0 0.0
  %673 = vmatpush.msra.mxu0 0.0
  %674 = vmatpush.msra.mxu0 %v169
  %675 = vmatpush.msra.mxu0 %v168
  %676 = vmatmul.f32.gmra.mxu0 %v658
  %v677 = vpop.f32.mrf.mxu0
  %v678 = vadd.f32 0.0, %v677
  %679 = vdwg.mxu0
  %v681 = vrot.slane %v678, 2
  %v683 = vadd.f32 %v166, %v681
  %v684 = vtanh.pop %v683
  %v685 = vxor.u32 %v683, 2147483648
  %v686 = vmul.f32 %v685, 1.442695
  %v687 = vpow.pop %v686
  %v688 = vadd.f32 %v687, 1.0
  %v689 = vrcp.pop %v688
  %v690 = vmul.f32 %v688, %v689
  %v691 = vsub.f32 1.0, %v690
  %v692 = vmul.f32 %v689, %v691
  %v693 = vadd.f32 %v689, %v692
  %vm694 = vweird.f32 %v688
  %vm695 = vweird.f32 %v689
  %vm696 = vmor %vm694, %vm695
  %v697 = vsel %vm696, %v689, %v693
  %v698 = vand.u32 2147483647, %v688
  %vm699 = vcmp.eq.f32.partialorder %v698, 8.507059e+37
  %v700 = vand.u32 %v688, 2147483648
  %v701 = vor.u32 1.1754944e-38, %v700
  %v702 = vsel %vm699, %v701, %v697
  %v703 = vmul.f32 1.0, %v702
  %v704 = vsel %vm129, %v684, %v703
  %v706 = vrot.slane %v647, 6
  %v708 = vmul.f32 %v704, %v706
  %710 = vrot.lane.b32.xlu0 %v704, 96
  %v711 = vpop.permute.xlu0 %710
  %v713 = vmul.f32 %v704, %v711
  %715 = vrot.lane.b32.xlu0 %v713, 16
  %v716 = vpop.permute.xlu0 %715
  %v718 = vadd.f32 %v708, %v716
  %v719 = vtanh.pop %v718
  %721 = vrot.lane.b32.xlu0 %v719, 32
  %v722 = vpop.permute.xlu0 %721
  %v724 = vmul.f32 %v704, %v722
  %s725 = scalar_lea.vmem %s3, 16
  %v726 = vld [vmem:[%s725] sm:$0xff]
  %v727 = vld [vmem:[%s725 + $0x8] sm:$0xff]
  %728 = vmatpush.msra.mxu0 0.0
  %729 = vmatpush.msra.mxu0 0.0
  %730 = vmatpush.msra.mxu0 0.0
  %731 = vmatpush.msra.mxu0 0.0
  %732 = vmatpush.msra.mxu0 0.0
  %733 = vmatpush.msra.mxu0 0.0
  %734 = vmatpush.msra.mxu0 0.0
  %735 = vmatpush.msra.mxu0 0.0
  %736 = vmatpush.msra.mxu0 0.0
  %737 = vmatpush.msra.mxu0 0.0
  %738 = vmatpush.msra.mxu0 0.0
  %739 = vmatpush.msra.mxu0 0.0
  %740 = vmatpush.msra.mxu0 0.0
  %741 = vmatpush.msra.mxu0 0.0
  %742 = vmatpush.msra.mxu0 %v727
  %743 = vmatpush.msra.mxu0 %v726
  %744 = vmatmul.f32.gmra.mxu0 %v172
  %v745 = vpop.f32.mrf.mxu0
  %v746 = vadd.f32 0.0, %v745
  %747 = vdwg.mxu0
  %v749 = vrot.slane %v746, 2
  %750 = vrot.lane.b32.xlu0 %v749, 64
  %v751 = vpop.permute.xlu0 %750
  %v753 = vadd.f32 %v166, %v751
  %v754 = vtanh.pop %v753
  %v755 = vxor.u32 %v753, 2147483648
  %v756 = vmul.f32 %v755, 1.442695
  %v757 = vpow.pop %v756
  %v758 = vadd.f32 %v757, 1.0
  %v759 = vrcp.pop %v758
  %v760 = vmul.f32 %v758, %v759
  %v761 = vsub.f32 1.0, %v760
  %v762 = vmul.f32 %v759, %v761
  %v763 = vadd.f32 %v759, %v762
  %vm764 = vweird.f32 %v758
  %vm765 = vweird.f32 %v759
  %vm766 = vmor %vm764, %vm765
  %v767 = vsel %vm766, %v759, %v763
  %v768 = vand.u32 2147483647, %v758
  %vm769 = vcmp.eq.f32.partialorder %v768, 8.507059e+37
  %v770 = vand.u32 %v758, 2147483648
  %v771 = vor.u32 1.1754944e-38, %v770
  %v772 = vsel %vm769, %v771, %v767
  %v773 = vmul.f32 1.0, %v772
  %v775 = vrot.slane %v754, 6
  %776 = vrot.lane.b32.xlu0 %v775, 64
  %v777 = vpop.permute.xlu0 %776
  %v780 = vrot.slane %v773, 6
  %781 = vrot.lane.b32.xlu0 %v780, 64
  %v782 = vpop.permute.xlu0 %781
  %v784 = vsel %vm129, %v777, %v782
  %v785 = vmul.f32 %v784, 0.0
  %787 = vrot.lane.b32.xlu0 %v784, 96
  %v788 = vpop.permute.xlu0 %787
  %v790 = vmul.f32 %v784, %v788
  %792 = vrot.lane.b32.xlu0 %v790, 16
  %v793 = vpop.permute.xlu0 %792
  %v795 = vadd.f32 %v785, %v793
  %v796 = vtanh.pop %v795
  %798 = vrot.lane.b32.xlu0 %v796, 32
  %v799 = vpop.permute.xlu0 %798
  %v801 = vmul.f32 %v784, %v799
  %803 = vrot.lane.b32.xlu0 %v801, 80
  %v804 = vpop.permute.xlu0 %803
  %v805 = vsel %vm170, %v804, 0
  %807 = vmatpush.msra.mxu0 0.0
  %808 = vmatpush.msra.mxu0 0.0
  %809 = vmatpush.msra.mxu0 0.0
  %810 = vmatpush.msra.mxu0 0.0
  %811 = vmatpush.msra.mxu0 0.0
  %812 = vmatpush.msra.mxu0 0.0
  %813 = vmatpush.msra.mxu0 0.0
  %814 = vmatpush.msra.mxu0 0.0
  %815 = vmatpush.msra.mxu0 0.0
  %816 = vmatpush.msra.mxu0 0.0
  %817 = vmatpush.msra.mxu0 0.0
  %818 = vmatpush.msra.mxu0 0.0
  %819 = vmatpush.msra.mxu0 0.0
  %820 = vmatpush.msra.mxu0 0.0
  %821 = vmatpush.msra.mxu0 %v727
  %822 = vmatpush.msra.mxu0 %v726
  %823 = vmatmul.f32.gmra.mxu0 %v805
  %v824 = vpop.f32.mrf.mxu0
  %v825 = vadd.f32 0.0, %v824
  %826 = vdwg.mxu0
  %v828 = vrot.slane %v825, 4
  %829 = vrot.lane.b32.xlu0 %v828, 64
  %v830 = vpop.permute.xlu0 %829
  %v832 = vadd.f32 %v166, %v830
  %v833 = vtanh.pop %v832
  %v834 = vxor.u32 %v832, 2147483648
  %v835 = vmul.f32 %v834, 1.442695
  %v836 = vpow.pop %v835
  %v837 = vadd.f32 %v836, 1.0
  %v838 = vrcp.pop %v837
  %v839 = vmul.f32 %v837, %v838
  %v840 = vsub.f32 1.0, %v839
  %v841 = vmul.f32 %v838, %v840
  %v842 = vadd.f32 %v838, %v841
  %vm843 = vweird.f32 %v837
  %vm844 = vweird.f32 %v838
  %vm845 = vmor %vm843, %vm844
  %v846 = vsel %vm845, %v838, %v842
  %v847 = vand.u32 2147483647, %v837
  %vm848 = vcmp.eq.f32.partialorder %v847, 8.507059e+37
  %v849 = vand.u32 %v837, 2147483648
  %v850 = vor.u32 1.1754944e-38, %v849
  %v851 = vsel %vm848, %v850, %v846
  %v852 = vmul.f32 1.0, %v851
  %v854 = vrot.slane %v833, 4
  %855 = vrot.lane.b32.xlu0 %v854, 64
  %v856 = vpop.permute.xlu0 %855
  %v859 = vrot.slane %v852, 4
  %860 = vrot.lane.b32.xlu0 %v859, 64
  %v861 = vpop.permute.xlu0 %860
  %v863 = vsel %vm129, %v856, %v861
  %v864 = vmul.f32 %v863, %v795
  %866 = vrot.lane.b32.xlu0 %v863, 96
  %v867 = vpop.permute.xlu0 %866
  %v869 = vmul.f32 %v863, %v867
  %871 = vrot.lane.b32.xlu0 %v869, 16
  %v872 = vpop.permute.xlu0 %871
  %v874 = vadd.f32 %v864, %v872
  %v875 = vtanh.pop %v874
  %877 = vrot.lane.b32.xlu0 %v875, 32
  %v878 = vpop.permute.xlu0 %877
  %v880 = vmul.f32 %v863, %v878
  %882 = vrot.lane.b32.xlu0 %v880, 80
  %v883 = vpop.permute.xlu0 %882
  %v884 = vsel %vm170, %v883, 0
  %886 = vmatpush.msra.mxu0 0.0
  %887 = vmatpush.msra.mxu0 0.0
  %888 = vmatpush.msra.mxu0 0.0
  %889 = vmatpush.msra.mxu0 0.0
  %890 = vmatpush.msra.mxu0 0.0
  %891 = vmatpush.msra.mxu0 0.0
  %892 = vmatpush.msra.mxu0 0.0
  %893 = vmatpush.msra.mxu0 0.0
  %894 = vmatpush.msra.mxu0 0.0
  %895 = vmatpush.msra.mxu0 0.0
  %896 = vmatpush.msra.mxu0 0.0
  %897 = vmatpush.msra.mxu0 0.0
  %898 = vmatpush.msra.mxu0 0.0
  %899 = vmatpush.msra.mxu0 0.0
  %900 = vmatpush.msra.mxu0 %v727
  %901 = vmatpush.msra.mxu0 %v726
  %902 = vmatmul.f32.gmra.mxu0 %v884
  %v903 = vpop.f32.mrf.mxu0
  %v904 = vadd.f32 0.0, %v903
  %905 = vdwg.mxu0
  %v907 = vrot.slane %v904, 6
  %908 = vrot.lane.b32.xlu0 %v907, 64
  %v909 = vpop.permute.xlu0 %908
  %v911 = vadd.f32 %v166, %v909
  %v912 = vtanh.pop %v911
  %v913 = vxor.u32 %v911, 2147483648
  %v914 = vmul.f32 %v913, 1.442695
  %v915 = vpow.pop %v914
  %v916 = vadd.f32 %v915, 1.0
  %v917 = vrcp.pop %v916
  %v918 = vmul.f32 %v916, %v917
  %v919 = vsub.f32 1.0, %v918
  %v920 = vmul.f32 %v917, %v919
  %v921 = vadd.f32 %v917, %v920
  %vm922 = vweird.f32 %v916
  %vm923 = vweird.f32 %v917
  %vm924 = vmor %vm922, %vm923
  %v925 = vsel %vm924, %v917, %v921
  %v926 = vand.u32 2147483647, %v916
  %vm927 = vcmp.eq.f32.partialorder %v926, 8.507059e+37
  %v928 = vand.u32 %v916, 2147483648
  %v929 = vor.u32 1.1754944e-38, %v928
  %v930 = vsel %vm927, %v929, %v925
  %v931 = vmul.f32 1.0, %v930
  %v933 = vrot.slane %v912, 2
  %934 = vrot.lane.b32.xlu0 %v933, 64
  %v935 = vpop.permute.xlu0 %934
  %v938 = vrot.slane %v931, 2
  %939 = vrot.lane.b32.xlu0 %v938, 64
  %v940 = vpop.permute.xlu0 %939
  %v942 = vsel %vm129, %v935, %v940
  %v943 = vmul.f32 %v942, %v874
  %945 = vrot.lane.b32.xlu0 %v942, 96
  %v946 = vpop.permute.xlu0 %945
  %v948 = vmul.f32 %v942, %v946
  %950 = vrot.lane.b32.xlu0 %v948, 16
  %v951 = vpop.permute.xlu0 %950
  %v953 = vadd.f32 %v943, %v951
  %v954 = vtanh.pop %v953
  %956 = vrot.lane.b32.xlu0 %v954, 32
  %v957 = vpop.permute.xlu0 %956
  %v959 = vmul.f32 %v942, %v957
  %961 = vrot.lane.b32.xlu0 %v959, 80
  %v962 = vpop.permute.xlu0 %961
  %v963 = vsel %vm170, %v962, 0
  %965 = vmatpush.msra.mxu0 0.0
  %966 = vmatpush.msra.mxu0 0.0
  %967 = vmatpush.msra.mxu0 0.0
  %968 = vmatpush.msra.mxu0 0.0
  %969 = vmatpush.msra.mxu0 0.0
  %970 = vmatpush.msra.mxu0 0.0
  %971 = vmatpush.msra.mxu0 0.0
  %972 = vmatpush.msra.mxu0 0.0
  %973 = vmatpush.msra.mxu0 0.0
  %974 = vmatpush.msra.mxu0 0.0
  %975 = vmatpush.msra.mxu0 0.0
  %976 = vmatpush.msra.mxu0 0.0
  %977 = vmatpush.msra.mxu0 0.0
  %978 = vmatpush.msra.mxu0 0.0
  %979 = vmatpush.msra.mxu0 %v727
  %980 = vmatpush.msra.mxu0 %v726
  %981 = vmatmul.f32.gmra.mxu0 %v963
  %v982 = vpop.f32.mrf.mxu0
  %v983 = vadd.f32 0.0, %v982
  %984 = vdwg.mxu0
  %986 = vrot.lane.b32.xlu0 %v983, 64
  %v987 = vpop.permute.xlu0 %986
  %v989 = vadd.f32 %v166, %v987
  %v990 = vtanh.pop %v989
  %v991 = vxor.u32 %v989, 2147483648
  %v992 = vmul.f32 %v991, 1.442695
  %v993 = vpow.pop %v992
  %v994 = vadd.f32 %v993, 1.0
  %v995 = vrcp.pop %v994
  %v996 = vmul.f32 %v994, %v995
  %v997 = vsub.f32 1.0, %v996
  %v998 = vmul.f32 %v995, %v997
  %v999 = vadd.f32 %v995, %v998
  %vm1000 = vweird.f32 %v994
  %vm1001 = vweird.f32 %v995
  %vm1002 = vmor %vm1000, %vm1001
  %v1003 = vsel %vm1002, %v995, %v999
  %v1004 = vand.u32 2147483647, %v994
  %vm1005 = vcmp.eq.f32.partialorder %v1004, 8.507059e+37
  %v1006 = vand.u32 %v994, 2147483648
  %v1007 = vor.u32 1.1754944e-38, %v1006
  %v1008 = vsel %vm1005, %v1007, %v1003
  %v1009 = vmul.f32 1.0, %v1008
  %1011 = vrot.lane.b32.xlu0 %v990, 64
  %v1012 = vpop.permute.xlu0 %1011
  %1015 = vrot.lane.b32.xlu0 %v1009, 64
  %v1016 = vpop.permute.xlu0 %1015
  %v1018 = vsel %vm129, %v1012, %v1016
  %v1019 = vmul.f32 %v1018, %v953
  %1021 = vrot.lane.b32.xlu0 %v1018, 96
  %v1022 = vpop.permute.xlu0 %1021
  %v1024 = vmul.f32 %v1018, %v1022
  %1026 = vrot.lane.b32.xlu0 %v1024, 16
  %v1027 = vpop.permute.xlu0 %1026
  %v1029 = vadd.f32 %v1019, %v1027
  %v1030 = vtanh.pop %v1029
  %1032 = vrot.lane.b32.xlu0 %v1030, 32
  %v1033 = vpop.permute.xlu0 %1032
  %v1035 = vmul.f32 %v1018, %v1033
  %1037 = vrot.lane.b32.xlu0 %v1035, 80
  %v1038 = vpop.permute.xlu0 %1037
  %v1039 = vsel %vm170, %v1038, 0
  %1041 = vmatpush.msra.mxu0 0.0
  %1042 = vmatpush.msra.mxu0 0.0
  %1043 = vmatpush.msra.mxu0 0.0
  %1044 = vmatpush.msra.mxu0 0.0
  %1045 = vmatpush.msra.mxu0 0.0
  %1046 = vmatpush.msra.mxu0 0.0
  %1047 = vmatpush.msra.mxu0 0.0
  %1048 = vmatpush.msra.mxu0 0.0
  %1049 = vmatpush.msra.mxu0 0.0
  %1050 = vmatpush.msra.mxu0 0.0
  %1051 = vmatpush.msra.mxu0 0.0
  %1052 = vmatpush.msra.mxu0 0.0
  %1053 = vmatpush.msra.mxu0 0.0
  %1054 = vmatpush.msra.mxu0 0.0
  %1055 = vmatpush.msra.mxu0 %v727
  %1056 = vmatpush.msra.mxu0 %v726
  %1057 = vmatmul.f32.gmra.mxu0 %v1039
  %v1058 = vpop.f32.mrf.mxu0
  %v1059 = vadd.f32 0.0, %v1058
  %1060 = vdwg.mxu0
  %v1062 = vrot.slane %v1059, 2
  %1063 = vrot.lane.b32.xlu0 %v1062, 64
  %v1064 = vpop.permute.xlu0 %1063
  %v1066 = vadd.f32 %v163, %v1064
  %v1067 = vtanh.pop %v1066
  %v1068 = vxor.u32 %v1066, 2147483648
  %v1069 = vmul.f32 %v1068, 1.442695
  %v1070 = vpow.pop %v1069
  %v1071 = vadd.f32 %v1070, 1.0
  %v1072 = vrcp.pop %v1071
  %v1073 = vmul.f32 %v1071, %v1072
  %v1074 = vsub.f32 1.0, %v1073
  %v1075 = vmul.f32 %v1072, %v1074
  %v1076 = vadd.f32 %v1072, %v1075
  %vm1077 = vweird.f32 %v1071
  %vm1078 = vweird.f32 %v1072
  %vm1079 = vmor %vm1077, %vm1078
  %v1080 = vsel %vm1079, %v1072, %v1076
  %v1081 = vand.u32 2147483647, %v1071
  %vm1082 = vcmp.eq.f32.partialorder %v1081, 8.507059e+37
  %v1083 = vand.u32 %v1071, 2147483648
  %v1084 = vor.u32 1.1754944e-38, %v1083
  %v1085 = vsel %vm1082, %v1084, %v1080
  %v1086 = vmul.f32 1.0, %v1085
  %v1088 = vrot.slane %v1067, 6
  %1089 = vrot.lane.b32.xlu0 %v1088, 64
  %v1090 = vpop.permute.xlu0 %1089
  %v1093 = vrot.slane %v1086, 6
  %1094 = vrot.lane.b32.xlu0 %v1093, 64
  %v1095 = vpop.permute.xlu0 %1094
  %v1097 = vsel %vm129, %v1090, %v1095
  %v1098 = vmul.f32 %v1097, %v1029
  %1100 = vrot.lane.b32.xlu0 %v1097, 96
  %v1101 = vpop.permute.xlu0 %1100
  %v1103 = vmul.f32 %v1097, %v1101
  %1105 = vrot.lane.b32.xlu0 %v1103, 16
  %v1106 = vpop.permute.xlu0 %1105
  %v1108 = vadd.f32 %v1098, %v1106
  %v1109 = vtanh.pop %v1108
  %1111 = vrot.lane.b32.xlu0 %v1109, 32
  %v1112 = vpop.permute.xlu0 %1111
  %v1114 = vmul.f32 %v1097, %v1112
  %1116 = vrot.lane.b32.xlu0 %v1114, 80
  %v1117 = vpop.permute.xlu0 %1116
  %v1118 = vsel %vm170, %v1117, 0
  %1120 = vmatpush.msra.mxu0 0.0
  %1121 = vmatpush.msra.mxu0 0.0
  %1122 = vmatpush.msra.mxu0 0.0
  %1123 = vmatpush.msra.mxu0 0.0
  %1124 = vmatpush.msra.mxu0 0.0
  %1125 = vmatpush.msra.mxu0 0.0
  %1126 = vmatpush.msra.mxu0 0.0
  %1127 = vmatpush.msra.mxu0 0.0
  %1128 = vmatpush.msra.mxu0 0.0
  %1129 = vmatpush.msra.mxu0 0.0
  %1130 = vmatpush.msra.mxu0 0.0
  %1131 = vmatpush.msra.mxu0 0.0
  %1132 = vmatpush.msra.mxu0 0.0
  %1133 = vmatpush.msra.mxu0 0.0
  %1134 = vmatpush.msra.mxu0 %v727
  %1135 = vmatpush.msra.mxu0 %v726
  %1136 = vmatmul.f32.gmra.mxu0 %v1118
  %v1137 = vpop.f32.mrf.mxu0
  %v1138 = vadd.f32 0.0, %v1137
  %1139 = vdwg.mxu0
  %v1141 = vrot.slane %v1138, 4
  %1142 = vrot.lane.b32.xlu0 %v1141, 64
  %v1143 = vpop.permute.xlu0 %1142
  %v1145 = vadd.f32 %v163, %v1143
  %v1146 = vtanh.pop %v1145
  %v1147 = vxor.u32 %v1145, 2147483648
  %v1148 = vmul.f32 %v1147, 1.442695
  %v1149 = vpow.pop %v1148
  %v1150 = vadd.f32 %v1149, 1.0
  %v1151 = vrcp.pop %v1150
  %v1152 = vmul.f32 %v1150, %v1151
  %v1153 = vsub.f32 1.0, %v1152
  %v1154 = vmul.f32 %v1151, %v1153
  %v1155 = vadd.f32 %v1151, %v1154
  %vm1156 = vweird.f32 %v1150
  %vm1157 = vweird.f32 %v1151
  %vm1158 = vmor %vm1156, %vm1157
  %v1159 = vsel %vm1158, %v1151, %v1155
  %v1160 = vand.u32 2147483647, %v1150
  %vm1161 = vcmp.eq.f32.partialorder %v1160, 8.507059e+37
  %v1162 = vand.u32 %v1150, 2147483648
  %v1163 = vor.u32 1.1754944e-38, %v1162
  %v1164 = vsel %vm1161, %v1163, %v1159
  %v1165 = vmul.f32 1.0, %v1164
  %v1167 = vrot.slane %v1146, 4
  %1168 = vrot.lane.b32.xlu0 %v1167, 64
  %v1169 = vpop.permute.xlu0 %1168
  %v1172 = vrot.slane %v1165, 4
  %1173 = vrot.lane.b32.xlu0 %v1172, 64
  %v1174 = vpop.permute.xlu0 %1173
  %v1176 = vsel %vm129, %v1169, %v1174
  %v1177 = vmul.f32 %v1176, %v1108
  %1179 = vrot.lane.b32.xlu0 %v1176, 96
  %v1180 = vpop.permute.xlu0 %1179
  %v1182 = vmul.f32 %v1176, %v1180
  %1184 = vrot.lane.b32.xlu0 %v1182, 16
  %v1185 = vpop.permute.xlu0 %1184
  %v1187 = vadd.f32 %v1177, %v1185
  %v1188 = vtanh.pop %v1187
  %1190 = vrot.lane.b32.xlu0 %v1188, 32
  %v1191 = vpop.permute.xlu0 %1190
  %v1193 = vmul.f32 %v1176, %v1191
  %1195 = vrot.lane.b32.xlu0 %v1193, 80
  %v1196 = vpop.permute.xlu0 %1195
  %v1197 = vsel %vm170, %v1196, 0
  %1199 = vmatpush.msra.mxu0 0.0
  %1200 = vmatpush.msra.mxu0 0.0
  %1201 = vmatpush.msra.mxu0 0.0
  %1202 = vmatpush.msra.mxu0 0.0
  %1203 = vmatpush.msra.mxu0 0.0
  %1204 = vmatpush.msra.mxu0 0.0
  %1205 = vmatpush.msra.mxu0 0.0
  %1206 = vmatpush.msra.mxu0 0.0
  %1207 = vmatpush.msra.mxu0 0.0
  %1208 = vmatpush.msra.mxu0 0.0
  %1209 = vmatpush.msra.mxu0 0.0
  %1210 = vmatpush.msra.mxu0 0.0
  %1211 = vmatpush.msra.mxu0 0.0
  %1212 = vmatpush.msra.mxu0 0.0
  %1213 = vmatpush.msra.mxu0 %v727
  %1214 = vmatpush.msra.mxu0 %v726
  %1215 = vmatmul.f32.gmra.mxu0 %v1197
  %v1216 = vpop.f32.mrf.mxu0
  %v1217 = vadd.f32 0.0, %v1216
  %1218 = vdwg.mxu0
  %v1220 = vrot.slane %v1217, 6
  %1221 = vrot.lane.b32.xlu0 %v1220, 64
  %v1222 = vpop.permute.xlu0 %1221
  %v1224 = vadd.f32 %v163, %v1222
  %v1225 = vtanh.pop %v1224
  %v1226 = vxor.u32 %v1224, 2147483648
  %v1227 = vmul.f32 %v1226, 1.442695
  %v1228 = vpow.pop %v1227
  %v1229 = vadd.f32 %v1228, 1.0
  %v1230 = vrcp.pop %v1229
  %v1231 = vmul.f32 %v1229, %v1230
  %v1232 = vsub.f32 1.0, %v1231
  %v1233 = vmul.f32 %v1230, %v1232
  %v1234 = vadd.f32 %v1230, %v1233
  %vm1235 = vweird.f32 %v1229
  %vm1236 = vweird.f32 %v1230
  %vm1237 = vmor %vm1235, %vm1236
  %v1238 = vsel %vm1237, %v1230, %v1234
  %v1239 = vand.u32 2147483647, %v1229
  %vm1240 = vcmp.eq.f32.partialorder %v1239, 8.507059e+37
  %v1241 = vand.u32 %v1229, 2147483648
  %v1242 = vor.u32 1.1754944e-38, %v1241
  %v1243 = vsel %vm1240, %v1242, %v1238
  %v1244 = vmul.f32 1.0, %v1243
  %v1246 = vrot.slane %v1225, 2
  %1247 = vrot.lane.b32.xlu0 %v1246, 64
  %v1248 = vpop.permute.xlu0 %1247
  %v1251 = vrot.slane %v1244, 2
  %1252 = vrot.lane.b32.xlu0 %v1251, 64
  %v1253 = vpop.permute.xlu0 %1252
  %v1255 = vsel %vm129, %v1248, %v1253
  %v1256 = vmul.f32 %v1255, %v1187
  %1258 = vrot.lane.b32.xlu0 %v1255, 96
  %v1259 = vpop.permute.xlu0 %1258
  %v1261 = vmul.f32 %v1255, %v1259
  %1263 = vrot.lane.b32.xlu0 %v1261, 16
  %v1264 = vpop.permute.xlu0 %1263
  %v1266 = vadd.f32 %v1256, %v1264
  %v1267 = vtanh.pop %v1266
  %1269 = vrot.lane.b32.xlu0 %v1267, 32
  %v1270 = vpop.permute.xlu0 %1269
  %v1272 = vmul.f32 %v1255, %v1270
  %1274 = vrot.lane.b32.xlu0 %v1272, 80
  %v1275 = vpop.permute.xlu0 %1274
  %v1276 = vsel %vm170, %v1275, 0
  %1278 = vmatpush.msra.mxu0 0.0
  %1279 = vmatpush.msra.mxu0 0.0
  %1280 = vmatpush.msra.mxu0 0.0
  %1281 = vmatpush.msra.mxu0 0.0
  %1282 = vmatpush.msra.mxu0 0.0
  %1283 = vmatpush.msra.mxu0 0.0
  %1284 = vmatpush.msra.mxu0 0.0
  %1285 = vmatpush.msra.mxu0 0.0
  %1286 = vmatpush.msra.mxu0 0.0
  %1287 = vmatpush.msra.mxu0 0.0
  %1288 = vmatpush.msra.mxu0 0.0
  %1289 = vmatpush.msra.mxu0 0.0
  %1290 = vmatpush.msra.mxu0 0.0
  %1291 = vmatpush.msra.mxu0 0.0
  %1292 = vmatpush.msra.mxu0 %v727
  %1293 = vmatpush.msra.mxu0 %v726
  %1294 = vmatmul.f32.gmra.mxu0 %v1276
  %v1295 = vpop.f32.mrf.mxu0
  %v1296 = vadd.f32 0.0, %v1295
  %1297 = vdwg.mxu0
  %1299 = vrot.lane.b32.xlu0 %v1296, 64
  %v1300 = vpop.permute.xlu0 %1299
  %v1302 = vadd.f32 %v163, %v1300
  %v1303 = vtanh.pop %v1302
  %v1304 = vxor.u32 %v1302, 2147483648
  %v1305 = vmul.f32 %v1304, 1.442695
  %v1306 = vpow.pop %v1305
  %v1307 = vadd.f32 %v1306, 1.0
  %v1308 = vrcp.pop %v1307
  %v1309 = vmul.f32 %v1307, %v1308
  %v1310 = vsub.f32 1.0, %v1309
  %v1311 = vmul.f32 %v1308, %v1310
  %v1312 = vadd.f32 %v1308, %v1311
  %vm1313 = vweird.f32 %v1307
  %vm1314 = vweird.f32 %v1308
  %vm1315 = vmor %vm1313, %vm1314
  %v1316 = vsel %vm1315, %v1308, %v1312
  %v1317 = vand.u32 2147483647, %v1307
  %vm1318 = vcmp.eq.f32.partialorder %v1317, 8.507059e+37
  %v1319 = vand.u32 %v1307, 2147483648
  %v1320 = vor.u32 1.1754944e-38, %v1319
  %v1321 = vsel %vm1318, %v1320, %v1316
  %v1322 = vmul.f32 1.0, %v1321
  %1324 = vrot.lane.b32.xlu0 %v1303, 64
  %v1325 = vpop.permute.xlu0 %1324
  %1328 = vrot.lane.b32.xlu0 %v1322, 64
  %v1329 = vpop.permute.xlu0 %1328
  %v1331 = vsel %vm129, %v1325, %v1329
  %v1332 = vmul.f32 %v1331, %v1266
  %1334 = vrot.lane.b32.xlu0 %v1331, 96
  %v1335 = vpop.permute.xlu0 %1334
  %v1337 = vmul.f32 %v1331, %v1335
  %1339 = vrot.lane.b32.xlu0 %v1337, 16
  %v1340 = vpop.permute.xlu0 %1339
  %v1342 = vadd.f32 %v1332, %v1340
  %v1343 = vtanh.pop %v1342
  %1345 = vrot.lane.b32.xlu0 %v1343, 32
  %v1346 = vpop.permute.xlu0 %1345
  %v1348 = vmul.f32 %v1331, %v1346
  %1351 = vrot.lane.b32.xlu0 %v1348, 96
  %v1352 = vpop.permute.xlu0 %1351
  %v1354 = vsel %vm170, %v235, %v1352
  %1355 = vrot.lane.b32.xlu0 %v302, 80
  %v1356 = vpop.permute.xlu0 %1355
  %v1358 = vrot.slane %v1272, 6
  %1359 = vrot.lane.b32.xlu0 %v1358, 96
  %v1360 = vpop.permute.xlu0 %1359
  %v1362 = vsel %vm170, %v1356, %v1360
  %1363 = vrot.lane.b32.xlu0 %v373, 80
  %v1364 = vpop.permute.xlu0 %1363
  %v1366 = vrot.slane %v1193, 4
  %1367 = vrot.lane.b32.xlu0 %v1366, 96
  %v1368 = vpop.permute.xlu0 %1367
  %v1370 = vsel %vm170, %v1364, %v1368
  %1371 = vrot.lane.b32.xlu0 %v444, 80
  %v1372 = vpop.permute.xlu0 %1371
  %v1374 = vrot.slane %v1114, 2
  %1375 = vrot.lane.b32.xlu0 %v1374, 96
  %v1376 = vpop.permute.xlu0 %1375
  %v1378 = vsel %vm170, %v1372, %v1376
  %1380 = vrot.lane.b32.xlu0 %v1035, 96
  %v1381 = vpop.permute.xlu0 %1380
  %v1383 = vsel %vm170, %v515, %v1381
  %1384 = vrot.lane.b32.xlu0 %v582, 80
  %v1385 = vpop.permute.xlu0 %1384
  %v1387 = vrot.slane %v959, 6
  %1388 = vrot.lane.b32.xlu0 %v1387, 96
  %v1389 = vpop.permute.xlu0 %1388
  %v1391 = vsel %vm170, %v1385, %v1389
  %1392 = vrot.lane.b32.xlu0 %v653, 80
  %v1393 = vpop.permute.xlu0 %1392
  %v1395 = vrot.slane %v880, 4
  %1396 = vrot.lane.b32.xlu0 %v1395, 96
  %v1397 = vpop.permute.xlu0 %1396
  %v1399 = vsel %vm170, %v1393, %v1397
  %1401 = vrot.lane.b32.xlu0 %v724, 80
  %v1402 = vpop.permute.xlu0 %1401
  %v1404 = vrot.slane %v801, 2
  %1405 = vrot.lane.b32.xlu0 %v1404, 96
  %v1406 = vpop.permute.xlu0 %1405
  %v1408 = vsel %vm170, %v1402, %v1406
  %vm1409 = vcmask 1041408
  %v1410 = vsel %vm1409, %v1354, %v1362
  %vm1411 = vcmask 1043456
  %v1412 = vsel %vm1411, %v1410, %v1370
  %vm1413 = vcmask 1045504
  %v1414 = vsel %vm1413, %v1412, %v1378
  %v1415 = vsel %vm1409, %v1383, %v1391
  %v1416 = vsel %vm1411, %v1415, %v1399
  %v1417 = vsel %vm1413, %v1416, %v1408
  %s1418 = scalar_lea.vmem %s2, 32
  %v1419 = vld [vmem:[%s1418] sm:$0xff]
  %v1420 = vld [vmem:[%s1418 + $0x8] sm:$0xff]
  %v1421 = vld [vmem:[%s1418 + $0x10] sm:$0xff]
  %v1422 = vld [vmem:[%s1418 + $0x18] sm:$0xff]
  %s1423 = scalar_lea.vmem %s4, 1
  %v1424 = vld [vmem:[%s1423] sm:$0x1]
  %v1426 = vperm.slane %v1424, 0
  %v1429 = vsel %vm138, %v1414, 0
  %v1432 = vsel %vm138, %v1417, 0
  %1434 = vmatpush.msra.mxu0 0.0
  %1435 = vmatpush.msra.mxu0 0.0
  %1436 = vmatpush.msra.mxu0 0.0
  %1437 = vmatpush.msra.mxu0 0.0
  %1438 = vmatpush.msra.mxu0 0.0
  %1439 = vmatpush.msra.mxu0 0.0
  %1440 = vmatpush.msra.mxu0 0.0
  %1441 = vmatpush.msra.mxu0 0.0
  %1442 = vmatpush.msra.mxu0 0.0
  %1443 = vmatpush.msra.mxu0 0.0
  %1444 = vmatpush.msra.mxu0 0.0
  %1445 = vmatpush.msra.mxu0 0.0
  %1446 = vmatpush.msra.mxu0 %v1422
  %1447 = vmatpush.msra.mxu0 %v1421
  %1448 = vmatpush.msra.mxu0 %v1420
  %1449 = vmatpush.msra.mxu0 %v1419
  %1450 = vmatmul.f32.gmra.mxu0 %v1429
  %v1451 = vpop.f32.mrf.mxu0
  %v1452 = vadd.f32 %v1426, %v1451
  %1453 = vmatmul.f32.gmra.mxu0 %v1432
  %v1454 = vpop.f32.mrf.mxu0
  %v1455 = vadd.f32 %v1426, %v1454
  %1456 = vdwg.mxu0
  %s1457 = scalar_lea.vmem %s3, 32
  %v1458 = vld [vmem:[%s1457] sm:$0xff]
  %v1459 = vld [vmem:[%s1457 + $0x8] sm:$0xff]
  %1460 = vmatpush.msra.mxu0 0.0
  %1461 = vmatpush.msra.mxu0 0.0
  %1462 = vmatpush.msra.mxu0 0.0
  %1463 = vmatpush.msra.mxu0 0.0
  %1464 = vmatpush.msra.mxu0 0.0
  %1465 = vmatpush.msra.mxu0 0.0
  %1466 = vmatpush.msra.mxu0 0.0
  %1467 = vmatpush.msra.mxu0 0.0
  %1468 = vmatpush.msra.mxu0 0.0
  %1469 = vmatpush.msra.mxu0 0.0
  %1470 = vmatpush.msra.mxu0 0.0
  %1471 = vmatpush.msra.mxu0 0.0
  %1472 = vmatpush.msra.mxu0 0.0
  %1473 = vmatpush.msra.mxu0 0.0
  %1474 = vmatpush.msra.mxu0 %v1459
  %1475 = vmatpush.msra.mxu0 %v1458
  %1476 = vmatmul.f32.gmra.mxu0 %v172
  %v1477 = vpop.f32.mrf.mxu0
  %v1478 = vadd.f32 0.0, %v1477
  %1479 = vdwg.mxu0
  %v1480 = vadd.f32 %v1452, %v1478
  %v1481 = vtanh.pop %v1480
  %v1482 = vxor.u32 %v1480, 2147483648
  %v1483 = vmul.f32 %v1482, 1.442695
  %v1484 = vpow.pop %v1483
  %v1485 = vadd.f32 %v1484, 1.0
  %v1486 = vrcp.pop %v1485
  %v1487 = vmul.f32 %v1485, %v1486
  %v1488 = vsub.f32 1.0, %v1487
  %v1489 = vmul.f32 %v1486, %v1488
  %v1490 = vadd.f32 %v1486, %v1489
  %vm1491 = vweird.f32 %v1485
  %vm1492 = vweird.f32 %v1486
  %vm1493 = vmor %vm1491, %vm1492
  %v1494 = vsel %vm1493, %v1486, %v1490
  %v1495 = vand.u32 2147483647, %v1485
  %vm1496 = vcmp.eq.f32.partialorder %v1495, 8.507059e+37
  %v1497 = vand.u32 %v1485, 2147483648
  %v1498 = vor.u32 1.1754944e-38, %v1497
  %v1499 = vsel %vm1496, %v1498, %v1494
  %v1500 = vmul.f32 1.0, %v1499
  %v1501 = vsel %vm129, %v1481, %v1500
  %v1502 = vmul.f32 %v1501, 0.0
  %1504 = vrot.lane.b32.xlu0 %v1501, 96
  %v1505 = vpop.permute.xlu0 %1504
  %v1507 = vmul.f32 %v1501, %v1505
  %1509 = vrot.lane.b32.xlu0 %v1507, 16
  %v1510 = vpop.permute.xlu0 %1509
  %v1512 = vadd.f32 %v1502, %v1510
  %v1513 = vtanh.pop %v1512
  %1515 = vrot.lane.b32.xlu0 %v1513, 32
  %v1516 = vpop.permute.xlu0 %1515
  %v1518 = vmul.f32 %v1501, %v1516
  %1520 = vrot.lane.b32.xlu0 %v1518, 80
  %v1521 = vpop.permute.xlu0 %1520
  %v1522 = vsel %vm170, %v1521, 0
  %1524 = vmatpush.msra.mxu0 0.0
  %1525 = vmatpush.msra.mxu0 0.0
  %1526 = vmatpush.msra.mxu0 0.0
  %1527 = vmatpush.msra.mxu0 0.0
  %1528 = vmatpush.msra.mxu0 0.0
  %1529 = vmatpush.msra.mxu0 0.0
  %1530 = vmatpush.msra.mxu0 0.0
  %1531 = vmatpush.msra.mxu0 0.0
  %1532 = vmatpush.msra.mxu0 0.0
  %1533 = vmatpush.msra.mxu0 0.0
  %1534 = vmatpush.msra.mxu0 0.0
  %1535 = vmatpush.msra.mxu0 0.0
  %1536 = vmatpush.msra.mxu0 0.0
  %1537 = vmatpush.msra.mxu0 0.0
  %1538 = vmatpush.msra.mxu0 %v1459
  %1539 = vmatpush.msra.mxu0 %v1458
  %1540 = vmatmul.f32.gmra.mxu0 %v1522
  %v1541 = vpop.f32.mrf.mxu0
  %v1542 = vadd.f32 0.0, %v1541
  %1543 = vdwg.mxu0
  %v1545 = vrot.slane %v1542, 6
  %v1547 = vadd.f32 %v1452, %v1545
  %v1548 = vtanh.pop %v1547
  %v1549 = vxor.u32 %v1547, 2147483648
  %v1550 = vmul.f32 %v1549, 1.442695
  %v1551 = vpow.pop %v1550
  %v1552 = vadd.f32 %v1551, 1.0
  %v1553 = vrcp.pop %v1552
  %v1554 = vmul.f32 %v1552, %v1553
  %v1555 = vsub.f32 1.0, %v1554
  %v1556 = vmul.f32 %v1553, %v1555
  %v1557 = vadd.f32 %v1553, %v1556
  %vm1558 = vweird.f32 %v1552
  %vm1559 = vweird.f32 %v1553
  %vm1560 = vmor %vm1558, %vm1559
  %v1561 = vsel %vm1560, %v1553, %v1557
  %v1562 = vand.u32 2147483647, %v1552
  %vm1563 = vcmp.eq.f32.partialorder %v1562, 8.507059e+37
  %v1564 = vand.u32 %v1552, 2147483648
  %v1565 = vor.u32 1.1754944e-38, %v1564
  %v1566 = vsel %vm1563, %v1565, %v1561
  %v1567 = vmul.f32 1.0, %v1566
  %v1568 = vsel %vm129, %v1548, %v1567
  %v1570 = vrot.slane %v1512, 6
  %v1572 = vmul.f32 %v1568, %v1570
  %1574 = vrot.lane.b32.xlu0 %v1568, 96
  %v1575 = vpop.permute.xlu0 %1574
  %v1577 = vmul.f32 %v1568, %v1575
  %1579 = vrot.lane.b32.xlu0 %v1577, 16
  %v1580 = vpop.permute.xlu0 %1579
  %v1582 = vadd.f32 %v1572, %v1580
  %v1583 = vtanh.pop %v1582
  %1585 = vrot.lane.b32.xlu0 %v1583, 32
  %v1586 = vpop.permute.xlu0 %1585
  %v1588 = vmul.f32 %v1568, %v1586
  %v1590 = vrot.slane %v1588, 2
  %1591 = vrot.lane.b32.xlu0 %v1590, 80
  %v1592 = vpop.permute.xlu0 %1591
  %v1593 = vsel %vm170, %v1592, 0
  %1595 = vmatpush.msra.mxu0 0.0
  %1596 = vmatpush.msra.mxu0 0.0
  %1597 = vmatpush.msra.mxu0 0.0
  %1598 = vmatpush.msra.mxu0 0.0
  %1599 = vmatpush.msra.mxu0 0.0
  %1600 = vmatpush.msra.mxu0 0.0
  %1601 = vmatpush.msra.mxu0 0.0
  %1602 = vmatpush.msra.mxu0 0.0
  %1603 = vmatpush.msra.mxu0 0.0
  %1604 = vmatpush.msra.mxu0 0.0
  %1605 = vmatpush.msra.mxu0 0.0
  %1606 = vmatpush.msra.mxu0 0.0
  %1607 = vmatpush.msra.mxu0 0.0
  %1608 = vmatpush.msra.mxu0 0.0
  %1609 = vmatpush.msra.mxu0 %v1459
  %1610 = vmatpush.msra.mxu0 %v1458
  %1611 = vmatmul.f32.gmra.mxu0 %v1593
  %v1612 = vpop.f32.mrf.mxu0
  %v1613 = vadd.f32 0.0, %v1612
  %1614 = vdwg.mxu0
  %v1616 = vrot.slane %v1613, 4
  %v1618 = vadd.f32 %v1452, %v1616
  %v1619 = vtanh.pop %v1618
  %v1620 = vxor.u32 %v1618, 2147483648
  %v1621 = vmul.f32 %v1620, 1.442695
  %v1622 = vpow.pop %v1621
  %v1623 = vadd.f32 %v1622, 1.0
  %v1624 = vrcp.pop %v1623
  %v1625 = vmul.f32 %v1623, %v1624
  %v1626 = vsub.f32 1.0, %v1625
  %v1627 = vmul.f32 %v1624, %v1626
  %v1628 = vadd.f32 %v1624, %v1627
  %vm1629 = vweird.f32 %v1623
  %vm1630 = vweird.f32 %v1624
  %vm1631 = vmor %vm1629, %vm1630
  %v1632 = vsel %vm1631, %v1624, %v1628
  %v1633 = vand.u32 2147483647, %v1623
  %vm1634 = vcmp.eq.f32.partialorder %v1633, 8.507059e+37
  %v1635 = vand.u32 %v1623, 2147483648
  %v1636 = vor.u32 1.1754944e-38, %v1635
  %v1637 = vsel %vm1634, %v1636, %v1632
  %v1638 = vmul.f32 1.0, %v1637
  %v1639 = vsel %vm129, %v1619, %v1638
  %v1641 = vrot.slane %v1582, 6
  %v1643 = vmul.f32 %v1639, %v1641
  %1645 = vrot.lane.b32.xlu0 %v1639, 96
  %v1646 = vpop.permute.xlu0 %1645
  %v1648 = vmul.f32 %v1639, %v1646
  %1650 = vrot.lane.b32.xlu0 %v1648, 16
  %v1651 = vpop.permute.xlu0 %1650
  %v1653 = vadd.f32 %v1643, %v1651
  %v1654 = vtanh.pop %v1653
  %1656 = vrot.lane.b32.xlu0 %v1654, 32
  %v1657 = vpop.permute.xlu0 %1656
  %v1659 = vmul.f32 %v1639, %v1657
  %v1661 = vrot.slane %v1659, 4
  %1662 = vrot.lane.b32.xlu0 %v1661, 80
  %v1663 = vpop.permute.xlu0 %1662
  %v1664 = vsel %vm170, %v1663, 0
  %1666 = vmatpush.msra.mxu0 0.0
  %1667 = vmatpush.msra.mxu0 0.0
  %1668 = vmatpush.msra.mxu0 0.0
  %1669 = vmatpush.msra.mxu0 0.0
  %1670 = vmatpush.msra.mxu0 0.0
  %1671 = vmatpush.msra.mxu0 0.0
  %1672 = vmatpush.msra.mxu0 0.0
  %1673 = vmatpush.msra.mxu0 0.0
  %1674 = vmatpush.msra.mxu0 0.0
  %1675 = vmatpush.msra.mxu0 0.0
  %1676 = vmatpush.msra.mxu0 0.0
  %1677 = vmatpush.msra.mxu0 0.0
  %1678 = vmatpush.msra.mxu0 0.0
  %1679 = vmatpush.msra.mxu0 0.0
  %1680 = vmatpush.msra.mxu0 %v1459
  %1681 = vmatpush.msra.mxu0 %v1458
  %1682 = vmatmul.f32.gmra.mxu0 %v1664
  %v1683 = vpop.f32.mrf.mxu0
  %v1684 = vadd.f32 0.0, %v1683
  %1685 = vdwg.mxu0
  %v1687 = vrot.slane %v1684, 2
  %v1689 = vadd.f32 %v1452, %v1687
  %v1690 = vtanh.pop %v1689
  %v1691 = vxor.u32 %v1689, 2147483648
  %v1692 = vmul.f32 %v1691, 1.442695
  %v1693 = vpow.pop %v1692
  %v1694 = vadd.f32 %v1693, 1.0
  %v1695 = vrcp.pop %v1694
  %v1696 = vmul.f32 %v1694, %v1695
  %v1697 = vsub.f32 1.0, %v1696
  %v1698 = vmul.f32 %v1695, %v1697
  %v1699 = vadd.f32 %v1695, %v1698
  %vm1700 = vweird.f32 %v1694
  %vm1701 = vweird.f32 %v1695
  %vm1702 = vmor %vm1700, %vm1701
  %v1703 = vsel %vm1702, %v1695, %v1699
  %v1704 = vand.u32 2147483647, %v1694
  %vm1705 = vcmp.eq.f32.partialorder %v1704, 8.507059e+37
  %v1706 = vand.u32 %v1694, 2147483648
  %v1707 = vor.u32 1.1754944e-38, %v1706
  %v1708 = vsel %vm1705, %v1707, %v1703
  %v1709 = vmul.f32 1.0, %v1708
  %v1710 = vsel %vm129, %v1690, %v1709
  %v1712 = vrot.slane %v1653, 6
  %v1714 = vmul.f32 %v1710, %v1712
  %1716 = vrot.lane.b32.xlu0 %v1710, 96
  %v1717 = vpop.permute.xlu0 %1716
  %v1719 = vmul.f32 %v1710, %v1717
  %1721 = vrot.lane.b32.xlu0 %v1719, 16
  %v1722 = vpop.permute.xlu0 %1721
  %v1724 = vadd.f32 %v1714, %v1722
  %v1725 = vtanh.pop %v1724
  %1727 = vrot.lane.b32.xlu0 %v1725, 32
  %v1728 = vpop.permute.xlu0 %1727
  %v1730 = vmul.f32 %v1710, %v1728
  %v1732 = vrot.slane %v1730, 6
  %1733 = vrot.lane.b32.xlu0 %v1732, 80
  %v1734 = vpop.permute.xlu0 %1733
  %v1735 = vsel %vm170, %v1734, 0
  %1737 = vmatpush.msra.mxu0 0.0
  %1738 = vmatpush.msra.mxu0 0.0
  %1739 = vmatpush.msra.mxu0 0.0
  %1740 = vmatpush.msra.mxu0 0.0
  %1741 = vmatpush.msra.mxu0 0.0
  %1742 = vmatpush.msra.mxu0 0.0
  %1743 = vmatpush.msra.mxu0 0.0
  %1744 = vmatpush.msra.mxu0 0.0
  %1745 = vmatpush.msra.mxu0 0.0
  %1746 = vmatpush.msra.mxu0 0.0
  %1747 = vmatpush.msra.mxu0 0.0
  %1748 = vmatpush.msra.mxu0 0.0
  %1749 = vmatpush.msra.mxu0 0.0
  %1750 = vmatpush.msra.mxu0 0.0
  %1751 = vmatpush.msra.mxu0 %v1459
  %1752 = vmatpush.msra.mxu0 %v1458
  %1753 = vmatmul.f32.gmra.mxu0 %v1735
  %v1754 = vpop.f32.mrf.mxu0
  %v1755 = vadd.f32 0.0, %v1754
  %1756 = vdwg.mxu0
  %v1757 = vadd.f32 %v1455, %v1755
  %v1758 = vtanh.pop %v1757
  %v1759 = vxor.u32 %v1757, 2147483648
  %v1760 = vmul.f32 %v1759, 1.442695
  %v1761 = vpow.pop %v1760
  %v1762 = vadd.f32 %v1761, 1.0
  %v1763 = vrcp.pop %v1762
  %v1764 = vmul.f32 %v1762, %v1763
  %v1765 = vsub.f32 1.0, %v1764
  %v1766 = vmul.f32 %v1763, %v1765
  %v1767 = vadd.f32 %v1763, %v1766
  %vm1768 = vweird.f32 %v1762
  %vm1769 = vweird.f32 %v1763
  %vm1770 = vmor %vm1768, %vm1769
  %v1771 = vsel %vm1770, %v1763, %v1767
  %v1772 = vand.u32 2147483647, %v1762
  %vm1773 = vcmp.eq.f32.partialorder %v1772, 8.507059e+37
  %v1774 = vand.u32 %v1762, 2147483648
  %v1775 = vor.u32 1.1754944e-38, %v1774
  %v1776 = vsel %vm1773, %v1775, %v1771
  %v1777 = vmul.f32 1.0, %v1776
  %v1778 = vsel %vm129, %v1758, %v1777
  %v1780 = vrot.slane %v1724, 6
  %v1782 = vmul.f32 %v1778, %v1780
  %1784 = vrot.lane.b32.xlu0 %v1778, 96
  %v1785 = vpop.permute.xlu0 %1784
  %v1787 = vmul.f32 %v1778, %v1785
  %1789 = vrot.lane.b32.xlu0 %v1787, 16
  %v1790 = vpop.permute.xlu0 %1789
  %v1792 = vadd.f32 %v1782, %v1790
  %v1793 = vtanh.pop %v1792
  %1795 = vrot.lane.b32.xlu0 %v1793, 32
  %v1796 = vpop.permute.xlu0 %1795
  %v1798 = vmul.f32 %v1778, %v1796
  %1800 = vrot.lane.b32.xlu0 %v1798, 80
  %v1801 = vpop.permute.xlu0 %1800
  %v1802 = vsel %vm170, %v1801, 0
  %1804 = vmatpush.msra.mxu0 0.0
  %1805 = vmatpush.msra.mxu0 0.0
  %1806 = vmatpush.msra.mxu0 0.0
  %1807 = vmatpush.msra.mxu0 0.0
  %1808 = vmatpush.msra.mxu0 0.0
  %1809 = vmatpush.msra.mxu0 0.0
  %1810 = vmatpush.msra.mxu0 0.0
  %1811 = vmatpush.msra.mxu0 0.0
  %1812 = vmatpush.msra.mxu0 0.0
  %1813 = vmatpush.msra.mxu0 0.0
  %1814 = vmatpush.msra.mxu0 0.0
  %1815 = vmatpush.msra.mxu0 0.0
  %1816 = vmatpush.msra.mxu0 0.0
  %1817 = vmatpush.msra.mxu0 0.0
  %1818 = vmatpush.msra.mxu0 %v1459
  %1819 = vmatpush.msra.mxu0 %v1458
  %1820 = vmatmul.f32.gmra.mxu0 %v1802
  %v1821 = vpop.f32.mrf.mxu0
  %v1822 = vadd.f32 0.0, %v1821
  %1823 = vdwg.mxu0
  %v1825 = vrot.slane %v1822, 6
  %v1827 = vadd.f32 %v1455, %v1825
  %v1828 = vtanh.pop %v1827
  %v1829 = vxor.u32 %v1827, 2147483648
  %v1830 = vmul.f32 %v1829, 1.442695
  %v1831 = vpow.pop %v1830
  %v1832 = vadd.f32 %v1831, 1.0
  %v1833 = vrcp.pop %v1832
  %v1834 = vmul.f32 %v1832, %v1833
  %v1835 = vsub.f32 1.0, %v1834
  %v1836 = vmul.f32 %v1833, %v1835
  %v1837 = vadd.f32 %v1833, %v1836
  %vm1838 = vweird.f32 %v1832
  %vm1839 = vweird.f32 %v1833
  %vm1840 = vmor %vm1838, %vm1839
  %v1841 = vsel %vm1840, %v1833, %v1837
  %v1842 = vand.u32 2147483647, %v1832
  %vm1843 = vcmp.eq.f32.partialorder %v1842, 8.507059e+37
  %v1844 = vand.u32 %v1832, 2147483648
  %v1845 = vor.u32 1.1754944e-38, %v1844
  %v1846 = vsel %vm1843, %v1845, %v1841
  %v1847 = vmul.f32 1.0, %v1846
  %v1848 = vsel %vm129, %v1828, %v1847
  %v1850 = vrot.slane %v1792, 6
  %v1852 = vmul.f32 %v1848, %v1850
  %1854 = vrot.lane.b32.xlu0 %v1848, 96
  %v1855 = vpop.permute.xlu0 %1854
  %v1857 = vmul.f32 %v1848, %v1855
  %1859 = vrot.lane.b32.xlu0 %v1857, 16
  %v1860 = vpop.permute.xlu0 %1859
  %v1862 = vadd.f32 %v1852, %v1860
  %v1863 = vtanh.pop %v1862
  %1865 = vrot.lane.b32.xlu0 %v1863, 32
  %v1866 = vpop.permute.xlu0 %1865
  %v1868 = vmul.f32 %v1848, %v1866
  %v1870 = vrot.slane %v1868, 2
  %1871 = vrot.lane.b32.xlu0 %v1870, 80
  %v1872 = vpop.permute.xlu0 %1871
  %v1873 = vsel %vm170, %v1872, 0
  %1875 = vmatpush.msra.mxu0 0.0
  %1876 = vmatpush.msra.mxu0 0.0
  %1877 = vmatpush.msra.mxu0 0.0
  %1878 = vmatpush.msra.mxu0 0.0
  %1879 = vmatpush.msra.mxu0 0.0
  %1880 = vmatpush.msra.mxu0 0.0
  %1881 = vmatpush.msra.mxu0 0.0
  %1882 = vmatpush.msra.mxu0 0.0
  %1883 = vmatpush.msra.mxu0 0.0
  %1884 = vmatpush.msra.mxu0 0.0
  %1885 = vmatpush.msra.mxu0 0.0
  %1886 = vmatpush.msra.mxu0 0.0
  %1887 = vmatpush.msra.mxu0 0.0
  %1888 = vmatpush.msra.mxu0 0.0
  %1889 = vmatpush.msra.mxu0 %v1459
  %1890 = vmatpush.msra.mxu0 %v1458
  %1891 = vmatmul.f32.gmra.mxu0 %v1873
  %v1892 = vpop.f32.mrf.mxu0
  %v1893 = vadd.f32 0.0, %v1892
  %1894 = vdwg.mxu0
  %v1896 = vrot.slane %v1893, 4
  %v1898 = vadd.f32 %v1455, %v1896
  %v1899 = vtanh.pop %v1898
  %v1900 = vxor.u32 %v1898, 2147483648
  %v1901 = vmul.f32 %v1900, 1.442695
  %v1902 = vpow.pop %v1901
  %v1903 = vadd.f32 %v1902, 1.0
  %v1904 = vrcp.pop %v1903
  %v1905 = vmul.f32 %v1903, %v1904
  %v1906 = vsub.f32 1.0, %v1905
  %v1907 = vmul.f32 %v1904, %v1906
  %v1908 = vadd.f32 %v1904, %v1907
  %vm1909 = vweird.f32 %v1903
  %vm1910 = vweird.f32 %v1904
  %vm1911 = vmor %vm1909, %vm1910
  %v1912 = vsel %vm1911, %v1904, %v1908
  %v1913 = vand.u32 2147483647, %v1903
  %vm1914 = vcmp.eq.f32.partialorder %v1913, 8.507059e+37
  %v1915 = vand.u32 %v1903, 2147483648
  %v1916 = vor.u32 1.1754944e-38, %v1915
  %v1917 = vsel %vm1914, %v1916, %v1912
  %v1918 = vmul.f32 1.0, %v1917
  %v1919 = vsel %vm129, %v1899, %v1918
  %v1921 = vrot.slane %v1862, 6
  %v1923 = vmul.f32 %v1919, %v1921
  %1925 = vrot.lane.b32.xlu0 %v1919, 96
  %v1926 = vpop.permute.xlu0 %1925
  %v1928 = vmul.f32 %v1919, %v1926
  %1930 = vrot.lane.b32.xlu0 %v1928, 16
  %v1931 = vpop.permute.xlu0 %1930
  %v1933 = vadd.f32 %v1923, %v1931
  %v1934 = vtanh.pop %v1933
  %1936 = vrot.lane.b32.xlu0 %v1934, 32
  %v1937 = vpop.permute.xlu0 %1936
  %v1939 = vmul.f32 %v1919, %v1937
  %v1941 = vrot.slane %v1939, 4
  %1942 = vrot.lane.b32.xlu0 %v1941, 80
  %v1943 = vpop.permute.xlu0 %1942
  %v1944 = vsel %vm170, %v1943, 0
  %1946 = vmatpush.msra.mxu0 0.0
  %1947 = vmatpush.msra.mxu0 0.0
  %1948 = vmatpush.msra.mxu0 0.0
  %1949 = vmatpush.msra.mxu0 0.0
  %1950 = vmatpush.msra.mxu0 0.0
  %1951 = vmatpush.msra.mxu0 0.0
  %1952 = vmatpush.msra.mxu0 0.0
  %1953 = vmatpush.msra.mxu0 0.0
  %1954 = vmatpush.msra.mxu0 0.0
  %1955 = vmatpush.msra.mxu0 0.0
  %1956 = vmatpush.msra.mxu0 0.0
  %1957 = vmatpush.msra.mxu0 0.0
  %1958 = vmatpush.msra.mxu0 0.0
  %1959 = vmatpush.msra.mxu0 0.0
  %1960 = vmatpush.msra.mxu0 %v1459
  %1961 = vmatpush.msra.mxu0 %v1458
  %1962 = vmatmul.f32.gmra.mxu0 %v1944
  %v1963 = vpop.f32.mrf.mxu0
  %v1964 = vadd.f32 0.0, %v1963
  %1965 = vdwg.mxu0
  %v1967 = vrot.slane %v1964, 2
  %v1969 = vadd.f32 %v1455, %v1967
  %v1970 = vtanh.pop %v1969
  %v1971 = vxor.u32 %v1969, 2147483648
  %v1972 = vmul.f32 %v1971, 1.442695
  %v1973 = vpow.pop %v1972
  %v1974 = vadd.f32 %v1973, 1.0
  %v1975 = vrcp.pop %v1974
  %v1976 = vmul.f32 %v1974, %v1975
  %v1977 = vsub.f32 1.0, %v1976
  %v1978 = vmul.f32 %v1975, %v1977
  %v1979 = vadd.f32 %v1975, %v1978
  %vm1980 = vweird.f32 %v1974
  %vm1981 = vweird.f32 %v1975
  %vm1982 = vmor %vm1980, %vm1981
  %v1983 = vsel %vm1982, %v1975, %v1979
  %v1984 = vand.u32 2147483647, %v1974
  %vm1985 = vcmp.eq.f32.partialorder %v1984, 8.507059e+37
  %v1986 = vand.u32 %v1974, 2147483648
  %v1987 = vor.u32 1.1754944e-38, %v1986
  %v1988 = vsel %vm1985, %v1987, %v1983
  %v1989 = vmul.f32 1.0, %v1988
  %v1990 = vsel %vm129, %v1970, %v1989
  %v1992 = vrot.slane %v1933, 6
  %v1994 = vmul.f32 %v1990, %v1992
  %1996 = vrot.lane.b32.xlu0 %v1990, 96
  %v1997 = vpop.permute.xlu0 %1996
  %v1999 = vmul.f32 %v1990, %v1997
  %2001 = vrot.lane.b32.xlu0 %v1999, 16
  %v2002 = vpop.permute.xlu0 %2001
  %v2004 = vadd.f32 %v1994, %v2002
  %v2005 = vtanh.pop %v2004
  %2007 = vrot.lane.b32.xlu0 %v2005, 32
  %v2008 = vpop.permute.xlu0 %2007
  %v2010 = vmul.f32 %v1990, %v2008
  %s2011 = scalar_lea.vmem %s3, 48
  %v2012 = vld [vmem:[%s2011] sm:$0xff]
  %v2013 = vld [vmem:[%s2011 + $0x8] sm:$0xff]
  %2014 = vmatpush.msra.mxu0 0.0
  %2015 = vmatpush.msra.mxu0 0.0
  %2016 = vmatpush.msra.mxu0 0.0
  %2017 = vmatpush.msra.mxu0 0.0
  %2018 = vmatpush.msra.mxu0 0.0
  %2019 = vmatpush.msra.mxu0 0.0
  %2020 = vmatpush.msra.mxu0 0.0
  %2021 = vmatpush.msra.mxu0 0.0
  %2022 = vmatpush.msra.mxu0 0.0
  %2023 = vmatpush.msra.mxu0 0.0
  %2024 = vmatpush.msra.mxu0 0.0
  %2025 = vmatpush.msra.mxu0 0.0
  %2026 = vmatpush.msra.mxu0 0.0
  %2027 = vmatpush.msra.mxu0 0.0
  %2028 = vmatpush.msra.mxu0 %v2013
  %2029 = vmatpush.msra.mxu0 %v2012
  %2030 = vmatmul.f32.gmra.mxu0 %v172
  %v2031 = vpop.f32.mrf.mxu0
  %v2032 = vadd.f32 0.0, %v2031
  %2033 = vdwg.mxu0
  %v2035 = vrot.slane %v2032, 2
  %2036 = vrot.lane.b32.xlu0 %v2035, 64
  %v2037 = vpop.permute.xlu0 %2036
  %v2039 = vadd.f32 %v1455, %v2037
  %v2040 = vtanh.pop %v2039
  %v2041 = vxor.u32 %v2039, 2147483648
  %v2042 = vmul.f32 %v2041, 1.442695
  %v2043 = vpow.pop %v2042
  %v2044 = vadd.f32 %v2043, 1.0
  %v2045 = vrcp.pop %v2044
  %v2046 = vmul.f32 %v2044, %v2045
  %v2047 = vsub.f32 1.0, %v2046
  %v2048 = vmul.f32 %v2045, %v2047
  %v2049 = vadd.f32 %v2045, %v2048
  %vm2050 = vweird.f32 %v2044
  %vm2051 = vweird.f32 %v2045
  %vm2052 = vmor %vm2050, %vm2051
  %v2053 = vsel %vm2052, %v2045, %v2049
  %v2054 = vand.u32 2147483647, %v2044
  %vm2055 = vcmp.eq.f32.partialorder %v2054, 8.507059e+37
  %v2056 = vand.u32 %v2044, 2147483648
  %v2057 = vor.u32 1.1754944e-38, %v2056
  %v2058 = vsel %vm2055, %v2057, %v2053
  %v2059 = vmul.f32 1.0, %v2058
  %v2061 = vrot.slane %v2040, 6
  %2062 = vrot.lane.b32.xlu0 %v2061, 64
  %v2063 = vpop.permute.xlu0 %2062
  %v2066 = vrot.slane %v2059, 6
  %2067 = vrot.lane.b32.xlu0 %v2066, 64
  %v2068 = vpop.permute.xlu0 %2067
  %v2070 = vsel %vm129, %v2063, %v2068
  %v2071 = vmul.f32 %v2070, 0.0
  %2073 = vrot.lane.b32.xlu0 %v2070, 96
  %v2074 = vpop.permute.xlu0 %2073
  %v2076 = vmul.f32 %v2070, %v2074
  %2078 = vrot.lane.b32.xlu0 %v2076, 16
  %v2079 = vpop.permute.xlu0 %2078
  %v2081 = vadd.f32 %v2071, %v2079
  %v2082 = vtanh.pop %v2081
  %2084 = vrot.lane.b32.xlu0 %v2082, 32
  %v2085 = vpop.permute.xlu0 %2084
  %v2087 = vmul.f32 %v2070, %v2085
  %2089 = vrot.lane.b32.xlu0 %v2087, 80
  %v2090 = vpop.permute.xlu0 %2089
  %v2091 = vsel %vm170, %v2090, 0
  %2093 = vmatpush.msra.mxu0 0.0
  %2094 = vmatpush.msra.mxu0 0.0
  %2095 = vmatpush.msra.mxu0 0.0
  %2096 = vmatpush.msra.mxu0 0.0
  %2097 = vmatpush.msra.mxu0 0.0
  %2098 = vmatpush.msra.mxu0 0.0
  %2099 = vmatpush.msra.mxu0 0.0
  %2100 = vmatpush.msra.mxu0 0.0
  %2101 = vmatpush.msra.mxu0 0.0
  %2102 = vmatpush.msra.mxu0 0.0
  %2103 = vmatpush.msra.mxu0 0.0
  %2104 = vmatpush.msra.mxu0 0.0
  %2105 = vmatpush.msra.mxu0 0.0
  %2106 = vmatpush.msra.mxu0 0.0
  %2107 = vmatpush.msra.mxu0 %v2013
  %2108 = vmatpush.msra.mxu0 %v2012
  %2109 = vmatmul.f32.gmra.mxu0 %v2091
  %v2110 = vpop.f32.mrf.mxu0
  %v2111 = vadd.f32 0.0, %v2110
  %2112 = vdwg.mxu0
  %v2114 = vrot.slane %v2111, 4
  %2115 = vrot.lane.b32.xlu0 %v2114, 64
  %v2116 = vpop.permute.xlu0 %2115
  %v2118 = vadd.f32 %v1455, %v2116
  %v2119 = vtanh.pop %v2118
  %v2120 = vxor.u32 %v2118, 2147483648
  %v2121 = vmul.f32 %v2120, 1.442695
  %v2122 = vpow.pop %v2121
  %v2123 = vadd.f32 %v2122, 1.0
  %v2124 = vrcp.pop %v2123
  %v2125 = vmul.f32 %v2123, %v2124
  %v2126 = vsub.f32 1.0, %v2125
  %v2127 = vmul.f32 %v2124, %v2126
  %v2128 = vadd.f32 %v2124, %v2127
  %vm2129 = vweird.f32 %v2123
  %vm2130 = vweird.f32 %v2124
  %vm2131 = vmor %vm2129, %vm2130
  %v2132 = vsel %vm2131, %v2124, %v2128
  %v2133 = vand.u32 2147483647, %v2123
  %vm2134 = vcmp.eq.f32.partialorder %v2133, 8.507059e+37
  %v2135 = vand.u32 %v2123, 2147483648
  %v2136 = vor.u32 1.1754944e-38, %v2135
  %v2137 = vsel %vm2134, %v2136, %v2132
  %v2138 = vmul.f32 1.0, %v2137
  %v2140 = vrot.slane %v2119, 4
  %2141 = vrot.lane.b32.xlu0 %v2140, 64
  %v2142 = vpop.permute.xlu0 %2141
  %v2145 = vrot.slane %v2138, 4
  %2146 = vrot.lane.b32.xlu0 %v2145, 64
  %v2147 = vpop.permute.xlu0 %2146
  %v2149 = vsel %vm129, %v2142, %v2147
  %v2150 = vmul.f32 %v2149, %v2081
  %2152 = vrot.lane.b32.xlu0 %v2149, 96
  %v2153 = vpop.permute.xlu0 %2152
  %v2155 = vmul.f32 %v2149, %v2153
  %2157 = vrot.lane.b32.xlu0 %v2155, 16
  %v2158 = vpop.permute.xlu0 %2157
  %v2160 = vadd.f32 %v2150, %v2158
  %v2161 = vtanh.pop %v2160
  %2163 = vrot.lane.b32.xlu0 %v2161, 32
  %v2164 = vpop.permute.xlu0 %2163
  %v2166 = vmul.f32 %v2149, %v2164
  %2168 = vrot.lane.b32.xlu0 %v2166, 80
  %v2169 = vpop.permute.xlu0 %2168
  %v2170 = vsel %vm170, %v2169, 0
  %2172 = vmatpush.msra.mxu0 0.0
  %2173 = vmatpush.msra.mxu0 0.0
  %2174 = vmatpush.msra.mxu0 0.0
  %2175 = vmatpush.msra.mxu0 0.0
  %2176 = vmatpush.msra.mxu0 0.0
  %2177 = vmatpush.msra.mxu0 0.0
  %2178 = vmatpush.msra.mxu0 0.0
  %2179 = vmatpush.msra.mxu0 0.0
  %2180 = vmatpush.msra.mxu0 0.0
  %2181 = vmatpush.msra.mxu0 0.0
  %2182 = vmatpush.msra.mxu0 0.0
  %2183 = vmatpush.msra.mxu0 0.0
  %2184 = vmatpush.msra.mxu0 0.0
  %2185 = vmatpush.msra.mxu0 0.0
  %2186 = vmatpush.msra.mxu0 %v2013
  %2187 = vmatpush.msra.mxu0 %v2012
  %2188 = vmatmul.f32.gmra.mxu0 %v2170
  %v2189 = vpop.f32.mrf.mxu0
  %v2190 = vadd.f32 0.0, %v2189
  %2191 = vdwg.mxu0
  %v2193 = vrot.slane %v2190, 6
  %2194 = vrot.lane.b32.xlu0 %v2193, 64
  %v2195 = vpop.permute.xlu0 %2194
  %v2197 = vadd.f32 %v1455, %v2195
  %v2198 = vtanh.pop %v2197
  %v2199 = vxor.u32 %v2197, 2147483648
  %v2200 = vmul.f32 %v2199, 1.442695
  %v2201 = vpow.pop %v2200
  %v2202 = vadd.f32 %v2201, 1.0
  %v2203 = vrcp.pop %v2202
  %v2204 = vmul.f32 %v2202, %v2203
  %v2205 = vsub.f32 1.0, %v2204
  %v2206 = vmul.f32 %v2203, %v2205
  %v2207 = vadd.f32 %v2203, %v2206
  %vm2208 = vweird.f32 %v2202
  %vm2209 = vweird.f32 %v2203
  %vm2210 = vmor %vm2208, %vm2209
  %v2211 = vsel %vm2210, %v2203, %v2207
  %v2212 = vand.u32 2147483647, %v2202
  %vm2213 = vcmp.eq.f32.partialorder %v2212, 8.507059e+37
  %v2214 = vand.u32 %v2202, 2147483648
  %v2215 = vor.u32 1.1754944e-38, %v2214
  %v2216 = vsel %vm2213, %v2215, %v2211
  %v2217 = vmul.f32 1.0, %v2216
  %v2219 = vrot.slane %v2198, 2
  %2220 = vrot.lane.b32.xlu0 %v2219, 64
  %v2221 = vpop.permute.xlu0 %2220
  %v2224 = vrot.slane %v2217, 2
  %2225 = vrot.lane.b32.xlu0 %v2224, 64
  %v2226 = vpop.permute.xlu0 %2225
  %v2228 = vsel %vm129, %v2221, %v2226
  %v2229 = vmul.f32 %v2228, %v2160
  %2231 = vrot.lane.b32.xlu0 %v2228, 96
  %v2232 = vpop.permute.xlu0 %2231
  %v2234 = vmul.f32 %v2228, %v2232
  %2236 = vrot.lane.b32.xlu0 %v2234, 16
  %v2237 = vpop.permute.xlu0 %2236
  %v2239 = vadd.f32 %v2229, %v2237
  %v2240 = vtanh.pop %v2239
  %2242 = vrot.lane.b32.xlu0 %v2240, 32
  %v2243 = vpop.permute.xlu0 %2242
  %v2245 = vmul.f32 %v2228, %v2243
  %2247 = vrot.lane.b32.xlu0 %v2245, 80
  %v2248 = vpop.permute.xlu0 %2247
  %v2249 = vsel %vm170, %v2248, 0
  %2251 = vmatpush.msra.mxu0 0.0
  %2252 = vmatpush.msra.mxu0 0.0
  %2253 = vmatpush.msra.mxu0 0.0
  %2254 = vmatpush.msra.mxu0 0.0
  %2255 = vmatpush.msra.mxu0 0.0
  %2256 = vmatpush.msra.mxu0 0.0
  %2257 = vmatpush.msra.mxu0 0.0
  %2258 = vmatpush.msra.mxu0 0.0
  %2259 = vmatpush.msra.mxu0 0.0
  %2260 = vmatpush.msra.mxu0 0.0
  %2261 = vmatpush.msra.mxu0 0.0
  %2262 = vmatpush.msra.mxu0 0.0
  %2263 = vmatpush.msra.mxu0 0.0
  %2264 = vmatpush.msra.mxu0 0.0
  %2265 = vmatpush.msra.mxu0 %v2013
  %2266 = vmatpush.msra.mxu0 %v2012
  %2267 = vmatmul.f32.gmra.mxu0 %v2249
  %v2268 = vpop.f32.mrf.mxu0
  %v2269 = vadd.f32 0.0, %v2268
  %2270 = vdwg.mxu0
  %2272 = vrot.lane.b32.xlu0 %v2269, 64
  %v2273 = vpop.permute.xlu0 %2272
  %v2275 = vadd.f32 %v1455, %v2273
  %v2276 = vtanh.pop %v2275
  %v2277 = vxor.u32 %v2275, 2147483648
  %v2278 = vmul.f32 %v2277, 1.442695
  %v2279 = vpow.pop %v2278
  %v2280 = vadd.f32 %v2279, 1.0
  %v2281 = vrcp.pop %v2280
  %v2282 = vmul.f32 %v2280, %v2281
  %v2283 = vsub.f32 1.0, %v2282
  %v2284 = vmul.f32 %v2281, %v2283
  %v2285 = vadd.f32 %v2281, %v2284
  %vm2286 = vweird.f32 %v2280
  %vm2287 = vweird.f32 %v2281
  %vm2288 = vmor %vm2286, %vm2287
  %v2289 = vsel %vm2288, %v2281, %v2285
  %v2290 = vand.u32 2147483647, %v2280
  %vm2291 = vcmp.eq.f32.partialorder %v2290, 8.507059e+37
  %v2292 = vand.u32 %v2280, 2147483648
  %v2293 = vor.u32 1.1754944e-38, %v2292
  %v2294 = vsel %vm2291, %v2293, %v2289
  %v2295 = vmul.f32 1.0, %v2294
  %2297 = vrot.lane.b32.xlu0 %v2276, 64
  %v2298 = vpop.permute.xlu0 %2297
  %2301 = vrot.lane.b32.xlu0 %v2295, 64
  %v2302 = vpop.permute.xlu0 %2301
  %v2304 = vsel %vm129, %v2298, %v2302
  %v2305 = vmul.f32 %v2304, %v2239
  %2307 = vrot.lane.b32.xlu0 %v2304, 96
  %v2308 = vpop.permute.xlu0 %2307
  %v2310 = vmul.f32 %v2304, %v2308
  %2312 = vrot.lane.b32.xlu0 %v2310, 16
  %v2313 = vpop.permute.xlu0 %2312
  %v2315 = vadd.f32 %v2305, %v2313
  %v2316 = vtanh.pop %v2315
  %2318 = vrot.lane.b32.xlu0 %v2316, 32
  %v2319 = vpop.permute.xlu0 %2318
  %v2321 = vmul.f32 %v2304, %v2319
  %2323 = vrot.lane.b32.xlu0 %v2321, 80
  %v2324 = vpop.permute.xlu0 %2323
  %v2325 = vsel %vm170, %v2324, 0
  %2327 = vmatpush.msra.mxu0 0.0
  %2328 = vmatpush.msra.mxu0 0.0
  %2329 = vmatpush.msra.mxu0 0.0
  %2330 = vmatpush.msra.mxu0 0.0
  %2331 = vmatpush.msra.mxu0 0.0
  %2332 = vmatpush.msra.mxu0 0.0
  %2333 = vmatpush.msra.mxu0 0.0
  %2334 = vmatpush.msra.mxu0 0.0
  %2335 = vmatpush.msra.mxu0 0.0
  %2336 = vmatpush.msra.mxu0 0.0
  %2337 = vmatpush.msra.mxu0 0.0
  %2338 = vmatpush.msra.mxu0 0.0
  %2339 = vmatpush.msra.mxu0 0.0
  %2340 = vmatpush.msra.mxu0 0.0
  %2341 = vmatpush.msra.mxu0 %v2013
  %2342 = vmatpush.msra.mxu0 %v2012
  %2343 = vmatmul.f32.gmra.mxu0 %v2325
  %v2344 = vpop.f32.mrf.mxu0
  %v2345 = vadd.f32 0.0, %v2344
  %2346 = vdwg.mxu0
  %v2348 = vrot.slane %v2345, 2
  %2349 = vrot.lane.b32.xlu0 %v2348, 64
  %v2350 = vpop.permute.xlu0 %2349
  %v2352 = vadd.f32 %v1452, %v2350
  %v2353 = vtanh.pop %v2352
  %v2354 = vxor.u32 %v2352, 2147483648
  %v2355 = vmul.f32 %v2354, 1.442695
  %v2356 = vpow.pop %v2355
  %v2357 = vadd.f32 %v2356, 1.0
  %v2358 = vrcp.pop %v2357
  %v2359 = vmul.f32 %v2357, %v2358
  %v2360 = vsub.f32 1.0, %v2359
  %v2361 = vmul.f32 %v2358, %v2360
  %v2362 = vadd.f32 %v2358, %v2361
  %vm2363 = vweird.f32 %v2357
  %vm2364 = vweird.f32 %v2358
  %vm2365 = vmor %vm2363, %vm2364
  %v2366 = vsel %vm2365, %v2358, %v2362
  %v2367 = vand.u32 2147483647, %v2357
  %vm2368 = vcmp.eq.f32.partialorder %v2367, 8.507059e+37
  %v2369 = vand.u32 %v2357, 2147483648
  %v2370 = vor.u32 1.1754944e-38, %v2369
  %v2371 = vsel %vm2368, %v2370, %v2366
  %v2372 = vmul.f32 1.0, %v2371
  %v2374 = vrot.slane %v2353, 6
  %2375 = vrot.lane.b32.xlu0 %v2374, 64
  %v2376 = vpop.permute.xlu0 %2375
  %v2379 = vrot.slane %v2372, 6
  %2380 = vrot.lane.b32.xlu0 %v2379, 64
  %v2381 = vpop.permute.xlu0 %2380
  %v2383 = vsel %vm129, %v2376, %v2381
  %v2384 = vmul.f32 %v2383, %v2315
  %2386 = vrot.lane.b32.xlu0 %v2383, 96
  %v2387 = vpop.permute.xlu0 %2386
  %v2389 = vmul.f32 %v2383, %v2387
  %2391 = vrot.lane.b32.xlu0 %v2389, 16
  %v2392 = vpop.permute.xlu0 %2391
  %v2394 = vadd.f32 %v2384, %v2392
  %v2395 = vtanh.pop %v2394
  %2397 = vrot.lane.b32.xlu0 %v2395, 32
  %v2398 = vpop.permute.xlu0 %2397
  %v2400 = vmul.f32 %v2383, %v2398
  %2402 = vrot.lane.b32.xlu0 %v2400, 80
  %v2403 = vpop.permute.xlu0 %2402
  %v2404 = vsel %vm170, %v2403, 0
  %2406 = vmatpush.msra.mxu0 0.0
  %2407 = vmatpush.msra.mxu0 0.0
  %2408 = vmatpush.msra.mxu0 0.0
  %2409 = vmatpush.msra.mxu0 0.0
  %2410 = vmatpush.msra.mxu0 0.0
  %2411 = vmatpush.msra.mxu0 0.0
  %2412 = vmatpush.msra.mxu0 0.0
  %2413 = vmatpush.msra.mxu0 0.0
  %2414 = vmatpush.msra.mxu0 0.0
  %2415 = vmatpush.msra.mxu0 0.0
  %2416 = vmatpush.msra.mxu0 0.0
  %2417 = vmatpush.msra.mxu0 0.0
  %2418 = vmatpush.msra.mxu0 0.0
  %2419 = vmatpush.msra.mxu0 0.0
  %2420 = vmatpush.msra.mxu0 %v2013
  %2421 = vmatpush.msra.mxu0 %v2012
  %2422 = vmatmul.f32.gmra.mxu0 %v2404
  %v2423 = vpop.f32.mrf.mxu0
  %v2424 = vadd.f32 0.0, %v2423
  %2425 = vdwg.mxu0
  %v2427 = vrot.slane %v2424, 4
  %2428 = vrot.lane.b32.xlu0 %v2427, 64
  %v2429 = vpop.permute.xlu0 %2428
  %v2431 = vadd.f32 %v1452, %v2429
  %v2432 = vtanh.pop %v2431
  %v2433 = vxor.u32 %v2431, 2147483648
  %v2434 = vmul.f32 %v2433, 1.442695
  %v2435 = vpow.pop %v2434
  %v2436 = vadd.f32 %v2435, 1.0
  %v2437 = vrcp.pop %v2436
  %v2438 = vmul.f32 %v2436, %v2437
  %v2439 = vsub.f32 1.0, %v2438
  %v2440 = vmul.f32 %v2437, %v2439
  %v2441 = vadd.f32 %v2437, %v2440
  %vm2442 = vweird.f32 %v2436
  %vm2443 = vweird.f32 %v2437
  %vm2444 = vmor %vm2442, %vm2443
  %v2445 = vsel %vm2444, %v2437, %v2441
  %v2446 = vand.u32 2147483647, %v2436
  %vm2447 = vcmp.eq.f32.partialorder %v2446, 8.507059e+37
  %v2448 = vand.u32 %v2436, 2147483648
  %v2449 = vor.u32 1.1754944e-38, %v2448
  %v2450 = vsel %vm2447, %v2449, %v2445
  %v2451 = vmul.f32 1.0, %v2450
  %v2453 = vrot.slane %v2432, 4
  %2454 = vrot.lane.b32.xlu0 %v2453, 64
  %v2455 = vpop.permute.xlu0 %2454
  %v2458 = vrot.slane %v2451, 4
  %2459 = vrot.lane.b32.xlu0 %v2458, 64
  %v2460 = vpop.permute.xlu0 %2459
  %v2462 = vsel %vm129, %v2455, %v2460
  %v2463 = vmul.f32 %v2462, %v2394
  %2465 = vrot.lane.b32.xlu0 %v2462, 96
  %v2466 = vpop.permute.xlu0 %2465
  %v2468 = vmul.f32 %v2462, %v2466
  %2470 = vrot.lane.b32.xlu0 %v2468, 16
  %v2471 = vpop.permute.xlu0 %2470
  %v2473 = vadd.f32 %v2463, %v2471
  %v2474 = vtanh.pop %v2473
  %2476 = vrot.lane.b32.xlu0 %v2474, 32
  %v2477 = vpop.permute.xlu0 %2476
  %v2479 = vmul.f32 %v2462, %v2477
  %2481 = vrot.lane.b32.xlu0 %v2479, 80
  %v2482 = vpop.permute.xlu0 %2481
  %v2483 = vsel %vm170, %v2482, 0
  %2485 = vmatpush.msra.mxu0 0.0
  %2486 = vmatpush.msra.mxu0 0.0
  %2487 = vmatpush.msra.mxu0 0.0
  %2488 = vmatpush.msra.mxu0 0.0
  %2489 = vmatpush.msra.mxu0 0.0
  %2490 = vmatpush.msra.mxu0 0.0
  %2491 = vmatpush.msra.mxu0 0.0
  %2492 = vmatpush.msra.mxu0 0.0
  %2493 = vmatpush.msra.mxu0 0.0
  %2494 = vmatpush.msra.mxu0 0.0
  %2495 = vmatpush.msra.mxu0 0.0
  %2496 = vmatpush.msra.mxu0 0.0
  %2497 = vmatpush.msra.mxu0 0.0
  %2498 = vmatpush.msra.mxu0 0.0
  %2499 = vmatpush.msra.mxu0 %v2013
  %2500 = vmatpush.msra.mxu0 %v2012
  %2501 = vmatmul.f32.gmra.mxu0 %v2483
  %v2502 = vpop.f32.mrf.mxu0
  %v2503 = vadd.f32 0.0, %v2502
  %2504 = vdwg.mxu0
  %v2506 = vrot.slane %v2503, 6
  %2507 = vrot.lane.b32.xlu0 %v2506, 64
  %v2508 = vpop.permute.xlu0 %2507
  %v2510 = vadd.f32 %v1452, %v2508
  %v2511 = vtanh.pop %v2510
  %v2512 = vxor.u32 %v2510, 2147483648
  %v2513 = vmul.f32 %v2512, 1.442695
  %v2514 = vpow.pop %v2513
  %v2515 = vadd.f32 %v2514, 1.0
  %v2516 = vrcp.pop %v2515
  %v2517 = vmul.f32 %v2515, %v2516
  %v2518 = vsub.f32 1.0, %v2517
  %v2519 = vmul.f32 %v2516, %v2518
  %v2520 = vadd.f32 %v2516, %v2519
  %vm2521 = vweird.f32 %v2515
  %vm2522 = vweird.f32 %v2516
  %vm2523 = vmor %vm2521, %vm2522
  %v2524 = vsel %vm2523, %v2516, %v2520
  %v2525 = vand.u32 2147483647, %v2515
  %vm2526 = vcmp.eq.f32.partialorder %v2525, 8.507059e+37
  %v2527 = vand.u32 %v2515, 2147483648
  %v2528 = vor.u32 1.1754944e-38, %v2527
  %v2529 = vsel %vm2526, %v2528, %v2524
  %v2530 = vmul.f32 1.0, %v2529
  %v2532 = vrot.slane %v2511, 2
  %2533 = vrot.lane.b32.xlu0 %v2532, 64
  %v2534 = vpop.permute.xlu0 %2533
  %v2537 = vrot.slane %v2530, 2
  %2538 = vrot.lane.b32.xlu0 %v2537, 64
  %v2539 = vpop.permute.xlu0 %2538
  %v2541 = vsel %vm129, %v2534, %v2539
  %v2542 = vmul.f32 %v2541, %v2473
  %2544 = vrot.lane.b32.xlu0 %v2541, 96
  %v2545 = vpop.permute.xlu0 %2544
  %v2547 = vmul.f32 %v2541, %v2545
  %2549 = vrot.lane.b32.xlu0 %v2547, 16
  %v2550 = vpop.permute.xlu0 %2549
  %v2552 = vadd.f32 %v2542, %v2550
  %v2553 = vtanh.pop %v2552
  %2555 = vrot.lane.b32.xlu0 %v2553, 32
  %v2556 = vpop.permute.xlu0 %2555
  %v2558 = vmul.f32 %v2541, %v2556
  %2560 = vrot.lane.b32.xlu0 %v2558, 80
  %v2561 = vpop.permute.xlu0 %2560
  %v2562 = vsel %vm170, %v2561, 0
  %2564 = vmatpush.msra.mxu0 0.0
  %2565 = vmatpush.msra.mxu0 0.0
  %2566 = vmatpush.msra.mxu0 0.0
  %2567 = vmatpush.msra.mxu0 0.0
  %2568 = vmatpush.msra.mxu0 0.0
  %2569 = vmatpush.msra.mxu0 0.0
  %2570 = vmatpush.msra.mxu0 0.0
  %2571 = vmatpush.msra.mxu0 0.0
  %2572 = vmatpush.msra.mxu0 0.0
  %2573 = vmatpush.msra.mxu0 0.0
  %2574 = vmatpush.msra.mxu0 0.0
  %2575 = vmatpush.msra.mxu0 0.0
  %2576 = vmatpush.msra.mxu0 0.0
  %2577 = vmatpush.msra.mxu0 0.0
  %2578 = vmatpush.msra.mxu0 %v2013
  %2579 = vmatpush.msra.mxu0 %v2012
  %2580 = vmatmul.f32.gmra.mxu0 %v2562
  %v2581 = vpop.f32.mrf.mxu0
  %v2582 = vadd.f32 0.0, %v2581
  %2583 = vdwg.mxu0
  %2585 = vrot.lane.b32.xlu0 %v2582, 64
  %v2586 = vpop.permute.xlu0 %2585
  %v2588 = vadd.f32 %v1452, %v2586
  %v2589 = vtanh.pop %v2588
  %v2590 = vxor.u32 %v2588, 2147483648
  %v2591 = vmul.f32 %v2590, 1.442695
  %v2592 = vpow.pop %v2591
  %v2593 = vadd.f32 %v2592, 1.0
  %v2594 = vrcp.pop %v2593
  %v2595 = vmul.f32 %v2593, %v2594
  %v2596 = vsub.f32 1.0, %v2595
  %v2597 = vmul.f32 %v2594, %v2596
  %v2598 = vadd.f32 %v2594, %v2597
  %vm2599 = vweird.f32 %v2593
  %vm2600 = vweird.f32 %v2594
  %vm2601 = vmor %vm2599, %vm2600
  %v2602 = vsel %vm2601, %v2594, %v2598
  %v2603 = vand.u32 2147483647, %v2593
  %vm2604 = vcmp.eq.f32.partialorder %v2603, 8.507059e+37
  %v2605 = vand.u32 %v2593, 2147483648
  %v2606 = vor.u32 1.1754944e-38, %v2605
  %v2607 = vsel %vm2604, %v2606, %v2602
  %v2608 = vmul.f32 1.0, %v2607
  %2610 = vrot.lane.b32.xlu0 %v2589, 64
  %v2611 = vpop.permute.xlu0 %2610
  %2614 = vrot.lane.b32.xlu0 %v2608, 64
  %v2615 = vpop.permute.xlu0 %2614
  %v2617 = vsel %vm129, %v2611, %v2615
  %v2618 = vmul.f32 %v2617, %v2552
  %2620 = vrot.lane.b32.xlu0 %v2617, 96
  %v2621 = vpop.permute.xlu0 %2620
  %v2623 = vmul.f32 %v2617, %v2621
  %2625 = vrot.lane.b32.xlu0 %v2623, 16
  %v2626 = vpop.permute.xlu0 %2625
  %v2628 = vadd.f32 %v2618, %v2626
  %v2629 = vtanh.pop %v2628
  %2631 = vrot.lane.b32.xlu0 %v2629, 32
  %v2632 = vpop.permute.xlu0 %2631
  %v2634 = vmul.f32 %v2617, %v2632
  %2637 = vrot.lane.b32.xlu0 %v2634, 96
  %v2638 = vpop.permute.xlu0 %2637
  %v2640 = vsel %vm170, %v1521, %v2638
  %2641 = vrot.lane.b32.xlu0 %v1588, 80
  %v2642 = vpop.permute.xlu0 %2641
  %v2644 = vrot.slane %v2558, 6
  %2645 = vrot.lane.b32.xlu0 %v2644, 96
  %v2646 = vpop.permute.xlu0 %2645
  %v2648 = vsel %vm170, %v2642, %v2646
  %2649 = vrot.lane.b32.xlu0 %v1659, 80
  %v2650 = vpop.permute.xlu0 %2649
  %v2652 = vrot.slane %v2479, 4
  %2653 = vrot.lane.b32.xlu0 %v2652, 96
  %v2654 = vpop.permute.xlu0 %2653
  %v2656 = vsel %vm170, %v2650, %v2654
  %2657 = vrot.lane.b32.xlu0 %v1730, 80
  %v2658 = vpop.permute.xlu0 %2657
  %v2660 = vrot.slane %v2400, 2
  %2661 = vrot.lane.b32.xlu0 %v2660, 96
  %v2662 = vpop.permute.xlu0 %2661
  %v2664 = vsel %vm170, %v2658, %v2662
  %2666 = vrot.lane.b32.xlu0 %v2321, 96
  %v2667 = vpop.permute.xlu0 %2666
  %v2669 = vsel %vm170, %v1801, %v2667
  %2670 = vrot.lane.b32.xlu0 %v1868, 80
  %v2671 = vpop.permute.xlu0 %2670
  %v2673 = vrot.slane %v2245, 6
  %2674 = vrot.lane.b32.xlu0 %v2673, 96
  %v2675 = vpop.permute.xlu0 %2674
  %v2677 = vsel %vm170, %v2671, %v2675
  %2678 = vrot.lane.b32.xlu0 %v1939, 80
  %v2679 = vpop.permute.xlu0 %2678
  %v2681 = vrot.slane %v2166, 4
  %2682 = vrot.lane.b32.xlu0 %v2681, 96
  %v2683 = vpop.permute.xlu0 %2682
  %v2685 = vsel %vm170, %v2679, %v2683
  %2687 = vrot.lane.b32.xlu0 %v2010, 80
  %v2688 = vpop.permute.xlu0 %2687
  %v2690 = vrot.slane %v2087, 2
  %2691 = vrot.lane.b32.xlu0 %v2690, 96
  %v2692 = vpop.permute.xlu0 %2691
  %v2694 = vsel %vm170, %v2688, %v2692
  %v2695 = vsel %vm1409, %v2640, %v2648
  %v2696 = vsel %vm1411, %v2695, %v2656
  %v2697 = vsel %vm1413, %v2696, %v2664
  %v2698 = vsel %vm1409, %v2669, %v2677
  %v2699 = vsel %vm1411, %v2698, %v2685
  %v2700 = vsel %vm1413, %v2699, %v2694
  %v2701 = vld [vmem:[%s5] sm:$0xff]
  %v2702 = vld [vmem:[%s5 + $0x8] sm:$0xff]
  %v2703 = vld [vmem:[%s5 + $0x10] sm:$0xff]
  %v2704 = vld [vmem:[%s5 + $0x18] sm:$0xff]
  %v2705 = vld [vmem:[%s6] sm:$0x1]
  %v2707 = vperm.slane %v2705, 0
  %v2710 = vsel %vm138, %v2697, 0
  %v2713 = vsel %vm138, %v2700, 0
  %2715 = vmatpush.msra.mxu0 0.0
  %2716 = vmatpush.msra.mxu0 0.0
  %2717 = vmatpush.msra.mxu0 0.0
  %2718 = vmatpush.msra.mxu0 0.0
  %2719 = vmatpush.msra.mxu0 0.0
  %2720 = vmatpush.msra.mxu0 0.0
  %2721 = vmatpush.msra.mxu0 0.0
  %2722 = vmatpush.msra.mxu0 0.0
  %2723 = vmatpush.msra.mxu0 0.0
  %2724 = vmatpush.msra.mxu0 0.0
  %2725 = vmatpush.msra.mxu0 0.0
  %2726 = vmatpush.msra.mxu0 0.0
  %2727 = vmatpush.msra.mxu0 %v2704
  %2728 = vmatpush.msra.mxu0 %v2703
  %2729 = vmatpush.msra.mxu0 %v2702
  %2730 = vmatpush.msra.mxu0 %v2701
  %2731 = vmatmul.f32.gmra.mxu0 %v2710
  %v2732 = vpop.f32.mrf.mxu0
  %v2733 = vadd.f32 %v2707, %v2732
  %2734 = vmatmul.f32.gmra.mxu0 %v2713
  %v2735 = vpop.f32.mrf.mxu0
  %v2736 = vadd.f32 %v2707, %v2735
  %2737 = vdwg.mxu0
  %vm2738 = vcmp.ge.s32.totalorder %v29, 0
  %vm2739 = vcmp.lt.s32.totalorder %v29, 12
  %vm2740 = vmand %vm2738, %vm2739
  %vm2741 = vcmp.ge.s32.totalorder %v29, 12
  %vm2742 = vcmp.lt.s32.totalorder %v29, 33
  %vm2743 = vmand %vm2741, %vm2742
  %vm2744 = vcmp.ge.s32.totalorder %v29, 33
  %vm2745 = vcmp.lt.s32.totalorder %v29, 43
  %vm2746 = vmand %vm2744, %vm2745
  %v2747 = vsel %vm2740, 1, 0
  %v2748 = vcvt.s32.f32 %v2747
  %v2749 = vsel %vm2743, 1, 0
  %v2750 = vcvt.s32.f32 %v2749
  %v2751 = vsel %vm2746, 1, 0
  %v2752 = vcvt.s32.f32 %v2751
  %v2753 = vsel %vm2745, 1, 0
  %v2754 = vcvt.s32.f32 %v2753
  %v2755 = vsub.f32 1.0, %v2754
  %v2756 = vsel %vm2740, %v2733, -1e+30
  %v2757 = vsel %vm2740, %v2736, -1e+30
  %2758 = vmax.xlane.f32.xlu0 %v2756
  %v2759 = vpop.xlane.xlu0 %2758
  %2760 = vmax.xlane.f32.xlu0 %v2757
  %v2761 = vpop.xlane.xlu0 %2760
  %v2762 = vmul.f32 %v2748, %v2759
  %v2763 = vmul.f32 %v2748, %v2761
  %v2764 = vadd.f32 %v2762, 0.0
  %v2765 = vadd.f32 %v2763, 0.0
  %v2766 = vsel %vm2743, %v2733, -1e+30
  %v2767 = vsel %vm2743, %v2736, -1e+30
  %2768 = vmax.xlane.f32.xlu0 %v2766
  %v2769 = vpop.xlane.xlu0 %2768
  %2770 = vmax.xlane.f32.xlu0 %v2767
  %v2771 = vpop.xlane.xlu0 %2770
  %v2772 = vmul.f32 %v2750, %v2769
  %v2773 = vmul.f32 %v2750, %v2771
  %v2774 = vadd.f32 %v2764, %v2772
  %v2775 = vadd.f32 %v2765, %v2773
  %v2776 = vsel %vm2746, %v2733, -1e+30
  %v2777 = vsel %vm2746, %v2736, -1e+30
  %2778 = vmax.xlane.f32.xlu0 %v2776
  %v2779 = vpop.xlane.xlu0 %2778
  %2780 = vmax.xlane.f32.xlu0 %v2777
  %v2781 = vpop.xlane.xlu0 %2780
  %v2782 = vmul.f32 %v2752, %v2779
  %v2783 = vmul.f32 %v2752, %v2781
  %v2784 = vadd.f32 %v2774, %v2782
  %v2785 = vadd.f32 %v2775, %v2783
  %v2786 = vsub.f32 %v2733, %v2784
  %v2787 = vsub.f32 %v2736, %v2785
  %v2788 = vmul.f32 %v2786, 1.442695
  %v2789 = vpow.pop %v2788
  %v2790 = vmul.f32 %v2787, 1.442695
  %v2791 = vpow.pop %v2790
  %v2792 = vmul.f32 %v2789, %v2754
  %v2793 = vmul.f32 %v2791, %v2754
  %v2794 = vmul.f32 %v2792, %v2748
  %v2795 = vmul.f32 %v2793, %v2748
  %2796 = vadd.xlane.f32.xlu0 %v2794
  %v2797 = vpop.xlane.xlu0 %2796
  %2798 = vadd.xlane.f32.xlu0 %v2795
  %v2799 = vpop.xlane.xlu0 %2798
  %v2800 = vmul.f32 %v2748, %v2797
  %v2801 = vmul.f32 %v2748, %v2799
  %v2802 = vadd.f32 %v2755, %v2800
  %v2803 = vadd.f32 %v2755, %v2801
  %v2804 = vmul.f32 %v2792, %v2750
  %v2805 = vmul.f32 %v2793, %v2750
  %2806 = vadd.xlane.f32.xlu0 %v2804
  %v2807 = vpop.xlane.xlu0 %2806
  %2808 = vadd.xlane.f32.xlu0 %v2805
  %v2809 = vpop.xlane.xlu0 %2808
  %v2810 = vmul.f32 %v2750, %v2807
  %v2811 = vmul.f32 %v2750, %v2809
  %v2812 = vadd.f32 %v2802, %v2810
  %v2813 = vadd.f32 %v2803, %v2811
  %v2814 = vmul.f32 %v2792, %v2752
  %v2815 = vmul.f32 %v2793, %v2752
  %2816 = vadd.xlane.f32.xlu0 %v2814
  %v2817 = vpop.xlane.xlu0 %2816
  %2818 = vadd.xlane.f32.xlu0 %v2815
  %v2819 = vpop.xlane.xlu0 %2818
  %v2820 = vmul.f32 %v2752, %v2817
  %v2821 = vmul.f32 %v2752, %v2819
  %v2822 = vadd.f32 %v2812, %v2820
  %v2823 = vadd.f32 %v2813, %v2821
  %v2824 = vrcp.pop %v2822
  %v2825 = vrcp.pop %v2823
  %v2826 = vmul.f32 %v2792, %v2824
  %v2827 = vmul.f32 %v2793, %v2825
  %2828 = vrot.lane.b32.xlu0 %v2697, 64
  %v2829 = vpop.permute.xlu0 %2828
  %2830 = vrot.lane.b32.xlu0 %v2700, 64
  %v2831 = vpop.permute.xlu0 %2830
  %vm2834 = vcmask 523264
  %v2835 = vsel %vm2834, 0.0, %v2829
  %v2836 = vsel %vm2834, 0.0, %v2831
  %vm2837 = vcmask 785408
  %v2838 = vsel %vm2837, %v2835, 0.0
  %v2839 = vsel %vm2837, %v2836, 0.0
  %v2840 = vadd.f32 %v2826, %v2838
  %v2841 = vadd.f32 %v2827, %v2839
  %2842 = vst [vmem:[%s7] sm:$0xff] %v2840
  %2843 = vst [vmem:[%s7 + $0x8] sm:$0xff] %v2841
  // Predicated region
  $region30: #{concept_identifier_forward.1} parent=0 // pred_check
    _
  $region31: #{concept_identifier_forward.1} parent=0 // pred_check_branch
    %2845 = sbr.rel (0) target = $region33
  $region32: #{concept_identifier_forward.1} parent=0 // pred_region
    _
  $region33: #{concept_identifier_forward.1} parent=0 // pred_fallthru
    _
  // Predicated region
  $region34: #{concept_identifier_forward.1} parent=0 // pred_check
    _
  $region35: #{concept_identifier_forward.1} parent=0 // pred_check_branch
    %2847 = sbr.rel (0) target = $region37
  $region36: #{concept_identifier_forward.1} parent=0 // pred_region
    _
  $region37: #{concept_identifier_forward.1} parent=0 // pred_fallthru
    _

</llo_original>
